<compile_context>
chip_gen: v7x
topology: tpu7x:2x2x1
jax: 0.10.0
libtpu: 0.0.40
codegen_flags: <defaults>
</compile_context>

<pallas_src>
import jax
import jax.numpy as jnp
from jax.experimental import pallas as pl
from jax.experimental.pallas import tpu as pltpu


# Layer dims as defined by the PyTorch module.
LAYER_DIMS = [784, 128, 64, 32, 18, 9, 18, 32, 64, 128, 784]
# Activation per layer: ReLU everywhere except the encoder's last Linear
# (none) and the decoder's last Linear (sigmoid).
ACTIVATIONS = ["relu", "relu", "relu", "relu", "none",
               "relu", "relu", "relu", "relu", "sigmoid"]

LANE = 128
SUBLANE = 8


def _round_up(x, m):
    return (x + m - 1) // m * m


# Padded per-layer feature dims: first/last stay 784, hidden dims pad to 128.
DIMS_PAD = ([LAYER_DIMS[0]]
            + [_round_up(d, LANE) for d in LAYER_DIMS[1:-1]]
            + [LAYER_DIMS[-1]])


def ae_kernel(x_ref, *refs):
    """Fused 10-layer MLP autoencoder forward for one batch tile.

    refs = (w1, b1, w2, b2, ..., w10, b10, o_ref)
    Weights are bf16 [in_pad, out_pad] (transposed + zero padded);
    biases are f32 [1, out_pad].  Output tile is bf16.
    """
    o_ref = refs[-1]
    params = refs[:-1]

    h = x_ref[...]                        # f32 or bf16, depending on producer
    for layer in range(10):
        w = params[2 * layer][...]        # bf16, resident in VMEM
        b = params[2 * layer + 1][...]    # f32
        # bf16 MXU matmul with f32 accumulation; bias/activation in f32.
        h = jnp.dot(h.astype(jnp.bfloat16), w,
                    preferred_element_type=jnp.float32) + b
        act = ACTIVATIONS[layer]
        if act == "relu":
            h = jnp.maximum(h, 0.0)
        elif act == "sigmoid":
            h = jax.nn.sigmoid(h)
    o_ref[...] = h.astype(o_ref.dtype)    # bf16 store -> halves output traffic


def init_params(key):
    """Deterministic PyTorch-style init: W, b ~ U(-1/sqrt(fan_in), 1/sqrt(fan_in))."""
    params = []
    for i in range(10):
        fan_in, fan_out = LAYER_DIMS[i], LAYER_DIMS[i + 1]
        key, kw, kb = jax.random.split(key, 3)
        bound = 1.0 / jnp.sqrt(jnp.float32(fan_in))
        # PyTorch stores W as (out, in); keep that convention here.
        w = jax.random.uniform(kw, (fan_out, fan_in), jnp.float32, -bound, bound)
        b = jax.random.uniform(kb, (fan_out,), jnp.float32, -bound, bound)
        params.append((w, b))
    return params


def pack_params(params):
    """Transpose to (in, out), zero-pad hidden dims to 128, cast weights to bf16."""
    packed = []
    for i, (w, b) in enumerate(params):
        in_p, out_p = DIMS_PAD[i], DIMS_PAD[i + 1]
        fan_out, fan_in = w.shape
        w_t = jnp.zeros((in_p, out_p), jnp.bfloat16)
        w_t = w_t.at[:fan_in, :fan_out].set(w.T.astype(jnp.bfloat16))
        b_p = jnp.zeros((1, out_p), jnp.float32).at[0, :fan_out].set(b)
        packed.extend([w_t, b_p])
    return packed


def _device_limits():
    """(tm_max, vmem_limit_bytes, num_tensorcores) tuned per TPU generation."""
    try:
        kind = jax.devices()[0].device_kind.lower()
    except Exception:
        kind = ""
    if "v5" in kind or "v6" in kind:
        # v5e / v6e: 128 MiB physical VMEM, single TensorCore per chip ->
        # big tiles amortize per-step overhead; no even-grid constraint.
        return 2048, 96 * 1024 * 1024, 1
    # v7x (64 MiB VMEM, 2 TensorCores) and unknown chips: conservative.
    return 1024, 48 * 1024 * 1024, 2


def _choose_tm(batch, *, tm_max, num_tc):
    """Pick the batch-tile height (rows).

    * If the whole batch fits in one tile and we aren't splitting for
      megacore, use block == full batch dim (no (8,128) padding games).
    * On dual-TC chips (v7x), split into an even number of grid steps >= 2
      once batch >= 256 so both TensorCores get (balanced) work.
    * Otherwise use the largest tile <= tm_max, rounded to 8 rows.
    """
    if num_tc >= 2 and batch >= 256:
        n_steps = 2
        while pl.cdiv(batch, n_steps) > tm_max:
            n_steps += 2
        return _round_up(pl.cdiv(batch, n_steps), SUBLANE)
    if batch <= tm_max:
        return batch
    n_steps = pl.cdiv(batch, tm_max)
    return _round_up(pl.cdiv(batch, n_steps), SUBLANE)


def _pallas_forward(x, packed, tm, vmem_limit, use_buffered):
    B = x.shape[0]
    grid = (pl.cdiv(B, tm),)   # ragged last block handled by Pallas (no pad)

    # Grid-invariant weights/biases: constant index maps -> fetched once and
    # kept resident; Buffered(1) drops the unnecessary second buffers.
    wb_kwargs = dict(pipeline_mode=pl.Buffered(1)) if use_buffered else {}

    in_specs = [pl.BlockSpec((tm, DIMS_PAD[0]), lambda i: (i, 0))]
    for layer in range(10):
        in_p, out_p = DIMS_PAD[layer], DIMS_PAD[layer + 1]
        in_specs.append(pl.BlockSpec((in_p, out_p), lambda i: (0, 0), **wb_kwargs))
        in_specs.append(pl.BlockSpec((1, out_p), lambda i: (0, 0), **wb_kwargs))

    return pl.pallas_call(
        ae_kernel,
        out_shape=jax.ShapeDtypeStruct((B, DIMS_PAD[-1]), jnp.bfloat16),
        grid_spec=pltpu.PrefetchScalarGridSpec(
            num_scalar_prefetch=0,
            grid=grid,
            in_specs=in_specs,
            out_specs=pl.BlockSpec((tm, DIMS_PAD[-1]), lambda i: (i, 0)),
        ),
        compiler_params=pltpu.CompilerParams(
            dimension_semantics=("parallel",),
            # ~20 MiB at tm=1024 (double-buffered f32-in/bf16-out tiles +
            # resident bf16 weights + f32 intermediates); 48 MiB stays under
            # v7x's 64 MiB physical VMEM, 96 MiB used on v5e/v6e (128 MiB).
            vmem_limit_bytes=vmem_limit,
        ),
    )(x, *packed)


def autoencoder_forward(x, packed, *, tm=None):
    """x: [B, 784] (f32 or bf16) -> [B, 784] bf16. `packed` from pack_params()."""
    B, D = x.shape
    assert D == LAYER_DIMS[0]

    tm_max, vmem_limit, num_tc = _device_limits()
    if tm is None:
        tm = _choose_tm(B, tm_max=tm_max, num_tc=num_tc)
    tm = min(tm, B)

    try:
        return _pallas_forward(x, packed, tm, vmem_limit, use_buffered=True)
    except Exception:
        # pipeline_mode=pl.Buffered(1) is only a VMEM/DMA-descriptor micro-opt
        # for the grid-invariant weights; fall back cleanly if this JAX build
        # does not accept it on top-level pallas_call BlockSpecs.
        return _pallas_forward(x, packed, tm, vmem_limit, use_buffered=False)


def reference_forward(x, params, *, match_kernel_precision=False):
    """Pure-JAX reference. With match_kernel_precision=True it mirrors the
    kernel's numerics (bf16 matmul operands, f32 accumulation; f32 output)."""
    h = x.astype(jnp.float32)
    for i, (w, b) in enumerate(params):
        if match_kernel_precision:
            h = jnp.dot(h.astype(jnp.bfloat16), w.T.astype(jnp.bfloat16),
                        preferred_element_type=jnp.float32) + b
        else:
            h = h @ w.T + b
        act = ACTIVATIONS[i]
        if act == "relu":
            h = jnp.maximum(h, 0.0)
        elif act == "sigmoid":
            h = jax.nn.sigmoid(h)
    return h


if __name__ == "__main__":
    key = jax.random.PRNGKey(0)
    key, kx = jax.random.split(key)

    B = 2
    x = jax.random.uniform(kx, (B, 784), jnp.float32)   # MNIST-like, [0, 1)
    params = init_params(key)
    packed = pack_params(params)

    # Recommended path: producer emits bf16 input (halves input HBM traffic).
    out_bf16_in = autoencoder_forward(x.astype(jnp.bfloat16), packed)
    # f32 input is also accepted as-is (no wrapper cast pass added).
    out_f32_in = autoencoder_forward(x, packed)
    # Ragged batch (B % tm != 0) exercises the no-pad / masked-boundary path.
    B2 = 13
    key, kx2 = jax.random.split(key)
    x2 = jax.random.uniform(kx2, (B2, 784), jnp.float32)
    out_ragged = autoencoder_forward(x2, packed, tm=8)

    out_bf16_in, out_f32_in, out_ragged = jax.block_until_ready(
        (out_bf16_in, out_f32_in, out_ragged))

    assert out_bf16_in.shape == (B, 784) and out_bf16_in.dtype == jnp.bfloat16
    assert out_f32_in.shape == (B, 784) and out_f32_in.dtype == jnp.bfloat16
    assert out_ragged.shape == (B2, 784) and out_ragged.dtype == jnp.bfloat16

    # bf16-input and f32-input runs share identical internal numerics.
    assert jnp.allclose(out_bf16_in.astype(jnp.float32),
                        out_f32_in.astype(jnp.float32), atol=1e-2), (
        float(jnp.max(jnp.abs(out_bf16_in.astype(jnp.float32)
                              - out_f32_in.astype(jnp.float32)))))

    # Check against a reference with the kernel's bf16-matmul / f32-accumulate
    # numerics (only remaining deviation: the final bf16 store rounding).
    ref_bf16 = reference_forward(x, params, match_kernel_precision=True)
    assert jnp.allclose(out_f32_in.astype(jnp.float32), ref_bf16,
                        atol=1e-2, rtol=1e-2), (
        float(jnp.max(jnp.abs(out_f32_in.astype(jnp.float32) - ref_bf16))))

    ref2_bf16 = reference_forward(x2, params, match_kernel_precision=True)
    assert jnp.allclose(out_ragged.astype(jnp.float32), ref2_bf16,
                        atol=1e-2, rtol=1e-2), (
        float(jnp.max(jnp.abs(out_ragged.astype(jnp.float32) - ref2_bf16))))

    # Loose sanity check against the full-f32 PyTorch-equivalent forward
    # (differences are bf16 weight/activation/output rounding; sigmoid output
    # lies in [0, 1]).
    ref_f32 = reference_forward(x, params)
    assert jnp.allclose(out_f32_in.astype(jnp.float32), ref_f32,
                        atol=5e-2, rtol=5e-2), (
        float(jnp.max(jnp.abs(out_f32_in.astype(jnp.float32) - ref_f32))))

    print("KERNEL_OK")
</pallas_src>

<mosaic_0001>
module attributes {stable_mosaic.version = 11 : i64} {
  func.func @ae_kernel(%arg0: i32, %arg1: memref<2x784xbf16, #tpu.memory_space<vmem>>, %arg2: memref<784x128xbf16, #tpu.memory_space<vmem>>, %arg3: memref<1x128xf32, #tpu.memory_space<vmem>>, %arg4: memref<128x128xbf16, #tpu.memory_space<vmem>>, %arg5: memref<1x128xf32, #tpu.memory_space<vmem>>, %arg6: memref<128x128xbf16, #tpu.memory_space<vmem>>, %arg7: memref<1x128xf32, #tpu.memory_space<vmem>>, %arg8: memref<128x128xbf16, #tpu.memory_space<vmem>>, %arg9: memref<1x128xf32, #tpu.memory_space<vmem>>, %arg10: memref<128x128xbf16, #tpu.memory_space<vmem>>, %arg11: memref<1x128xf32, #tpu.memory_space<vmem>>, %arg12: memref<128x128xbf16, #tpu.memory_space<vmem>>, %arg13: memref<1x128xf32, #tpu.memory_space<vmem>>, %arg14: memref<128x128xbf16, #tpu.memory_space<vmem>>, %arg15: memref<1x128xf32, #tpu.memory_space<vmem>>, %arg16: memref<128x128xbf16, #tpu.memory_space<vmem>>, %arg17: memref<1x128xf32, #tpu.memory_space<vmem>>, %arg18: memref<128x128xbf16, #tpu.memory_space<vmem>>, %arg19: memref<1x128xf32, #tpu.memory_space<vmem>>, %arg20: memref<128x784xbf16, #tpu.memory_space<vmem>>, %arg21: memref<1x784xf32, #tpu.memory_space<vmem>>, %arg22: memref<2x784xbf16, #tpu.memory_space<vmem>>) attributes {dimension_semantics = [#tpu.dimension_semantics<parallel>], iteration_bounds = array<i64: 1>, scalar_prefetch = 0 : i64, scratch_operands = 0 : i64, tpu.core_type = #tpu.core_type<tc>, window_params = [{transform_indices = @transform_0, window_bounds = array<i64: 2, 784>}, {pipeline_mode = #tpu.pipeline_mode<synchronous>, transform_indices = @transform_1, window_bounds = array<i64: 784, 128>}, {pipeline_mode = #tpu.pipeline_mode<synchronous>, transform_indices = @transform_2, window_bounds = array<i64: 1, 128>}, {pipeline_mode = #tpu.pipeline_mode<synchronous>, transform_indices = @transform_3, window_bounds = array<i64: 128, 128>}, {pipeline_mode = #tpu.pipeline_mode<synchronous>, transform_indices = @transform_4, window_bounds = array<i64: 1, 128>}, {pipeline_mode = #tpu.pipeline_mode<synchronous>, transform_indices = @transform_5, window_bounds = array<i64: 128, 128>}, {pipeline_mode = #tpu.pipeline_mode<synchronous>, transform_indices = @transform_6, window_bounds = array<i64: 1, 128>}, {pipeline_mode = #tpu.pipeline_mode<synchronous>, transform_indices = @transform_7, window_bounds = array<i64: 128, 128>}, {pipeline_mode = #tpu.pipeline_mode<synchronous>, transform_indices = @transform_8, window_bounds = array<i64: 1, 128>}, {pipeline_mode = #tpu.pipeline_mode<synchronous>, transform_indices = @transform_9, window_bounds = array<i64: 128, 128>}, {pipeline_mode = #tpu.pipeline_mode<synchronous>, transform_indices = @transform_10, window_bounds = array<i64: 1, 128>}, {pipeline_mode = #tpu.pipeline_mode<synchronous>, transform_indices = @transform_11, window_bounds = array<i64: 128, 128>}, {pipeline_mode = #tpu.pipeline_mode<synchronous>, transform_indices = @transform_12, window_bounds = array<i64: 1, 128>}, {pipeline_mode = #tpu.pipeline_mode<synchronous>, transform_indices = @transform_13, window_bounds = array<i64: 128, 128>}, {pipeline_mode = #tpu.pipeline_mode<synchronous>, transform_indices = @transform_14, window_bounds = array<i64: 1, 128>}, {pipeline_mode = #tpu.pipeline_mode<synchronous>, transform_indices = @transform_15, window_bounds = array<i64: 128, 128>}, {pipeline_mode = #tpu.pipeline_mode<synchronous>, transform_indices = @transform_16, window_bounds = array<i64: 1, 128>}, {pipeline_mode = #tpu.pipeline_mode<synchronous>, transform_indices = @transform_17, window_bounds = array<i64: 128, 128>}, {pipeline_mode = #tpu.pipeline_mode<synchronous>, transform_indices = @transform_18, window_bounds = array<i64: 1, 128>}, {pipeline_mode = #tpu.pipeline_mode<synchronous>, transform_indices = @transform_19, window_bounds = array<i64: 128, 784>}, {pipeline_mode = #tpu.pipeline_mode<synchronous>, transform_indices = @transform_20, window_bounds = array<i64: 1, 784>}, {transform_indices = @transform_21, window_bounds = array<i64: 2, 784>}]} {
    %c0 = arith.constant 0 : index
    %c0_0 = arith.constant 0 : index
    %0 = vector.load %arg1[%c0, %c0_0] : memref<2x784xbf16, #tpu.memory_space<vmem>>, vector<2x784xbf16>
    %c0_1 = arith.constant 0 : index
    %c0_2 = arith.constant 0 : index
    %1 = vector.load %arg2[%c0_1, %c0_2] : memref<784x128xbf16, #tpu.memory_space<vmem>>, vector<784x128xbf16>
    %c0_3 = arith.constant 0 : index
    %c0_4 = arith.constant 0 : index
    %2 = vector.load %arg3[%c0_3, %c0_4] : memref<1x128xf32, #tpu.memory_space<vmem>>, vector<1x128xf32>
    %cst = arith.constant dense<0.000000e+00> : vector<2x128xf32>
    %3 = tpu.matmul %0, %1, %cst {dimension_numbers = #tpu.dot_dimension_numbers<[1], [0], [0], [1], [0, 0, 1, 1], [], []>} : vector<2x784xbf16>, vector<784x128xbf16>, vector<2x128xf32> -> vector<2x128xf32>
    %4 = vector.broadcast %2 : vector<1x128xf32> to vector<2x128xf32>
    %5 = arith.addf %3, %4 : vector<2x128xf32>
    %cst_5 = arith.constant 0.000000e+00 : f32
    %6 = vector.broadcast %cst_5 : f32 to vector<2x128xf32>
    %7 = arith.maximumf %5, %6 : vector<2x128xf32>
    %c0_6 = arith.constant 0 : index
    %c0_7 = arith.constant 0 : index
    %8 = vector.load %arg4[%c0_6, %c0_7] : memref<128x128xbf16, #tpu.memory_space<vmem>>, vector<128x128xbf16>
    %c0_8 = arith.constant 0 : index
    %c0_9 = arith.constant 0 : index
    %9 = vector.load %arg5[%c0_8, %c0_9] : memref<1x128xf32, #tpu.memory_space<vmem>>, vector<1x128xf32>
    %10 = arith.truncf %7 : vector<2x128xf32> to vector<2x128xbf16>
    %cst_10 = arith.constant dense<0.000000e+00> : vector<2x128xf32>
    %11 = tpu.matmul %10, %8, %cst_10 {dimension_numbers = #tpu.dot_dimension_numbers<[1], [0], [0], [1], [0, 0, 1, 1], [], []>} : vector<2x128xbf16>, vector<128x128xbf16>, vector<2x128xf32> -> vector<2x128xf32>
    %12 = vector.broadcast %9 : vector<1x128xf32> to vector<2x128xf32>
    %13 = arith.addf %11, %12 : vector<2x128xf32>
    %cst_11 = arith.constant 0.000000e+00 : f32
    %14 = vector.broadcast %cst_11 : f32 to vector<2x128xf32>
    %15 = arith.maximumf %13, %14 : vector<2x128xf32>
    %c0_12 = arith.constant 0 : index
    %c0_13 = arith.constant 0 : index
    %16 = vector.load %arg6[%c0_12, %c0_13] : memref<128x128xbf16, #tpu.memory_space<vmem>>, vector<128x128xbf16>
    %c0_14 = arith.constant 0 : index
    %c0_15 = arith.constant 0 : index
    %17 = vector.load %arg7[%c0_14, %c0_15] : memref<1x128xf32, #tpu.memory_space<vmem>>, vector<1x128xf32>
    %18 = arith.truncf %15 : vector<2x128xf32> to vector<2x128xbf16>
    %cst_16 = arith.constant dense<0.000000e+00> : vector<2x128xf32>
    %19 = tpu.matmul %18, %16, %cst_16 {dimension_numbers = #tpu.dot_dimension_numbers<[1], [0], [0], [1], [0, 0, 1, 1], [], []>} : vector<2x128xbf16>, vector<128x128xbf16>, vector<2x128xf32> -> vector<2x128xf32>
    %20 = vector.broadcast %17 : vector<1x128xf32> to vector<2x128xf32>
    %21 = arith.addf %19, %20 : vector<2x128xf32>
    %cst_17 = arith.constant 0.000000e+00 : f32
    %22 = vector.broadcast %cst_17 : f32 to vector<2x128xf32>
    %23 = arith.maximumf %21, %22 : vector<2x128xf32>
    %c0_18 = arith.constant 0 : index
    %c0_19 = arith.constant 0 : index
    %24 = vector.load %arg8[%c0_18, %c0_19] : memref<128x128xbf16, #tpu.memory_space<vmem>>, vector<128x128xbf16>
    %c0_20 = arith.constant 0 : index
    %c0_21 = arith.constant 0 : index
    %25 = vector.load %arg9[%c0_20, %c0_21] : memref<1x128xf32, #tpu.memory_space<vmem>>, vector<1x128xf32>
    %26 = arith.truncf %23 : vector<2x128xf32> to vector<2x128xbf16>
    %cst_22 = arith.constant dense<0.000000e+00> : vector<2x128xf32>
    %27 = tpu.matmul %26, %24, %cst_22 {dimension_numbers = #tpu.dot_dimension_numbers<[1], [0], [0], [1], [0, 0, 1, 1], [], []>} : vector<2x128xbf16>, vector<128x128xbf16>, vector<2x128xf32> -> vector<2x128xf32>
    %28 = vector.broadcast %25 : vector<1x128xf32> to vector<2x128xf32>
    %29 = arith.addf %27, %28 : vector<2x128xf32>
    %cst_23 = arith.constant 0.000000e+00 : f32
    %30 = vector.broadcast %cst_23 : f32 to vector<2x128xf32>
    %31 = arith.maximumf %29, %30 : vector<2x128xf32>
    %c0_24 = arith.constant 0 : index
    %c0_25 = arith.constant 0 : index
    %32 = vector.load %arg10[%c0_24, %c0_25] : memref<128x128xbf16, #tpu.memory_space<vmem>>, vector<128x128xbf16>
    %c0_26 = arith.constant 0 : index
    %c0_27 = arith.constant 0 : index
    %33 = vector.load %arg11[%c0_26, %c0_27] : memref<1x128xf32, #tpu.memory_space<vmem>>, vector<1x128xf32>
    %34 = arith.truncf %31 : vector<2x128xf32> to vector<2x128xbf16>
    %cst_28 = arith.constant dense<0.000000e+00> : vector<2x128xf32>
    %35 = tpu.matmul %34, %32, %cst_28 {dimension_numbers = #tpu.dot_dimension_numbers<[1], [0], [0], [1], [0, 0, 1, 1], [], []>} : vector<2x128xbf16>, vector<128x128xbf16>, vector<2x128xf32> -> vector<2x128xf32>
    %36 = vector.broadcast %33 : vector<1x128xf32> to vector<2x128xf32>
    %37 = arith.addf %35, %36 : vector<2x128xf32>
    %c0_29 = arith.constant 0 : index
    %c0_30 = arith.constant 0 : index
    %38 = vector.load %arg12[%c0_29, %c0_30] : memref<128x128xbf16, #tpu.memory_space<vmem>>, vector<128x128xbf16>
    %c0_31 = arith.constant 0 : index
    %c0_32 = arith.constant 0 : index
    %39 = vector.load %arg13[%c0_31, %c0_32] : memref<1x128xf32, #tpu.memory_space<vmem>>, vector<1x128xf32>
    %40 = arith.truncf %37 : vector<2x128xf32> to vector<2x128xbf16>
    %cst_33 = arith.constant dense<0.000000e+00> : vector<2x128xf32>
    %41 = tpu.matmul %40, %38, %cst_33 {dimension_numbers = #tpu.dot_dimension_numbers<[1], [0], [0], [1], [0, 0, 1, 1], [], []>} : vector<2x128xbf16>, vector<128x128xbf16>, vector<2x128xf32> -> vector<2x128xf32>
    %42 = vector.broadcast %39 : vector<1x128xf32> to vector<2x128xf32>
    %43 = arith.addf %41, %42 : vector<2x128xf32>
    %cst_34 = arith.constant 0.000000e+00 : f32
    %44 = vector.broadcast %cst_34 : f32 to vector<2x128xf32>
    %45 = arith.maximumf %43, %44 : vector<2x128xf32>
    %c0_35 = arith.constant 0 : index
    %c0_36 = arith.constant 0 : index
    %46 = vector.load %arg14[%c0_35, %c0_36] : memref<128x128xbf16, #tpu.memory_space<vmem>>, vector<128x128xbf16>
    %c0_37 = arith.constant 0 : index
    %c0_38 = arith.constant 0 : index
    %47 = vector.load %arg15[%c0_37, %c0_38] : memref<1x128xf32, #tpu.memory_space<vmem>>, vector<1x128xf32>
    %48 = arith.truncf %45 : vector<2x128xf32> to vector<2x128xbf16>
    %cst_39 = arith.constant dense<0.000000e+00> : vector<2x128xf32>
    %49 = tpu.matmul %48, %46, %cst_39 {dimension_numbers = #tpu.dot_dimension_numbers<[1], [0], [0], [1], [0, 0, 1, 1], [], []>} : vector<2x128xbf16>, vector<128x128xbf16>, vector<2x128xf32> -> vector<2x128xf32>
    %50 = vector.broadcast %47 : vector<1x128xf32> to vector<2x128xf32>
    %51 = arith.addf %49, %50 : vector<2x128xf32>
    %cst_40 = arith.constant 0.000000e+00 : f32
    %52 = vector.broadcast %cst_40 : f32 to vector<2x128xf32>
    %53 = arith.maximumf %51, %52 : vector<2x128xf32>
    %c0_41 = arith.constant 0 : index
    %c0_42 = arith.constant 0 : index
    %54 = vector.load %arg16[%c0_41, %c0_42] : memref<128x128xbf16, #tpu.memory_space<vmem>>, vector<128x128xbf16>
    %c0_43 = arith.constant 0 : index
    %c0_44 = arith.constant 0 : index
    %55 = vector.load %arg17[%c0_43, %c0_44] : memref<1x128xf32, #tpu.memory_space<vmem>>, vector<1x128xf32>
    %56 = arith.truncf %53 : vector<2x128xf32> to vector<2x128xbf16>
    %cst_45 = arith.constant dense<0.000000e+00> : vector<2x128xf32>
    %57 = tpu.matmul %56, %54, %cst_45 {dimension_numbers = #tpu.dot_dimension_numbers<[1], [0], [0], [1], [0, 0, 1, 1], [], []>} : vector<2x128xbf16>, vector<128x128xbf16>, vector<2x128xf32> -> vector<2x128xf32>
    %58 = vector.broadcast %55 : vector<1x128xf32> to vector<2x128xf32>
    %59 = arith.addf %57, %58 : vector<2x128xf32>
    %cst_46 = arith.constant 0.000000e+00 : f32
    %60 = vector.broadcast %cst_46 : f32 to vector<2x128xf32>
    %61 = arith.maximumf %59, %60 : vector<2x128xf32>
    %c0_47 = arith.constant 0 : index
    %c0_48 = arith.constant 0 : index
    %62 = vector.load %arg18[%c0_47, %c0_48] : memref<128x128xbf16, #tpu.memory_space<vmem>>, vector<128x128xbf16>
    %c0_49 = arith.constant 0 : index
    %c0_50 = arith.constant 0 : index
    %63 = vector.load %arg19[%c0_49, %c0_50] : memref<1x128xf32, #tpu.memory_space<vmem>>, vector<1x128xf32>
    %64 = arith.truncf %61 : vector<2x128xf32> to vector<2x128xbf16>
    %cst_51 = arith.constant dense<0.000000e+00> : vector<2x128xf32>
    %65 = tpu.matmul %64, %62, %cst_51 {dimension_numbers = #tpu.dot_dimension_numbers<[1], [0], [0], [1], [0, 0, 1, 1], [], []>} : vector<2x128xbf16>, vector<128x128xbf16>, vector<2x128xf32> -> vector<2x128xf32>
    %66 = vector.broadcast %63 : vector<1x128xf32> to vector<2x128xf32>
    %67 = arith.addf %65, %66 : vector<2x128xf32>
    %cst_52 = arith.constant 0.000000e+00 : f32
    %68 = vector.broadcast %cst_52 : f32 to vector<2x128xf32>
    %69 = arith.maximumf %67, %68 : vector<2x128xf32>
    %c0_53 = arith.constant 0 : index
    %c0_54 = arith.constant 0 : index
    %70 = vector.load %arg20[%c0_53, %c0_54] : memref<128x784xbf16, #tpu.memory_space<vmem>>, vector<128x784xbf16>
    %c0_55 = arith.constant 0 : index
    %c0_56 = arith.constant 0 : index
    %71 = vector.load %arg21[%c0_55, %c0_56] : memref<1x784xf32, #tpu.memory_space<vmem>>, vector<1x784xf32>
    %72 = arith.truncf %69 : vector<2x128xf32> to vector<2x128xbf16>
    %cst_57 = arith.constant dense<0.000000e+00> : vector<2x784xf32>
    %73 = tpu.matmul %72, %70, %cst_57 {dimension_numbers = #tpu.dot_dimension_numbers<[1], [0], [0], [1], [0, 0, 1, 1], [], []>} : vector<2x128xbf16>, vector<128x784xbf16>, vector<2x784xf32> -> vector<2x784xf32>
    %74 = vector.broadcast %71 : vector<1x784xf32> to vector<2x784xf32>
    %75 = arith.addf %73, %74 : vector<2x784xf32>
    %76 = arith.negf %75 : vector<2x784xf32>
    %77 = math.exp %76 : vector<2x784xf32>
    %cst_58 = arith.constant 1.000000e+00 : f32
    %78 = vector.broadcast %cst_58 : f32 to vector<2x784xf32>
    %79 = arith.addf %78, %77 : vector<2x784xf32>
    %80 = arith.divf %78, %79 : vector<2x784xf32>
    %81 = arith.truncf %80 : vector<2x784xf32> to vector<2x784xbf16>
    %c0_59 = arith.constant 0 : index
    %c0_60 = arith.constant 0 : index
    %82 = vector.load %arg22[%c0_59, %c0_60] : memref<2x784xbf16, #tpu.memory_space<vmem>>, vector<2x784xbf16>
    tpu.vector_store %arg22[%c0_59, %c0_60], %81 {strides = array<i32>} : memref<2x784xbf16, #tpu.memory_space<vmem>>, vector<2x784xbf16>,
    return
  }
  func.func @transform_0(%arg0: i32) -> (i32, i32) {
    %c0_i32 = arith.constant 0 : i32
    %c0_i32_0 = arith.constant 0 : i32
    return %arg0, %c0_i32 : i32, i32
  }
  func.func @transform_1(%arg0: i32) -> (i32, i32) {
    %c0_i32 = arith.constant 0 : i32
    %c0_i32_0 = arith.constant 0 : i32
    %c0_i32_1 = arith.constant 0 : i32
    return %c0_i32, %c0_i32_0 : i32, i32
  }
  func.func @transform_2(%arg0: i32) -> (i32, i32) {
    %c0_i32 = arith.constant 0 : i32
    %c0_i32_0 = arith.constant 0 : i32
    %c0_i32_1 = arith.constant 0 : i32
    return %c0_i32, %c0_i32_0 : i32, i32
  }
  func.func @transform_3(%arg0: i32) -> (i32, i32) {
    %c0_i32 = arith.constant 0 : i32
    %c0_i32_0 = arith.constant 0 : i32
    %c0_i32_1 = arith.constant 0 : i32
    return %c0_i32, %c0_i32_0 : i32, i32
  }
  func.func @transform_4(%arg0: i32) -> (i32, i32) {
    %c0_i32 = arith.constant 0 : i32
    %c0_i32_0 = arith.constant 0 : i32
    %c0_i32_1 = arith.constant 0 : i32
    return %c0_i32, %c0_i32_0 : i32, i32
  }
  func.func @transform_5(%arg0: i32) -> (i32, i32) {
    %c0_i32 = arith.constant 0 : i32
    %c0_i32_0 = arith.constant 0 : i32
    %c0_i32_1 = arith.constant 0 : i32
    return %c0_i32, %c0_i32_0 : i32, i32
  }
  func.func @transform_6(%arg0: i32) -> (i32, i32) {
    %c0_i32 = arith.constant 0 : i32
    %c0_i32_0 = arith.constant 0 : i32
    %c0_i32_1 = arith.constant 0 : i32
    return %c0_i32, %c0_i32_0 : i32, i32
  }
  func.func @transform_7(%arg0: i32) -> (i32, i32) {
    %c0_i32 = arith.constant 0 : i32
    %c0_i32_0 = arith.constant 0 : i32
    %c0_i32_1 = arith.constant 0 : i32
    return %c0_i32, %c0_i32_0 : i32, i32
  }
  func.func @transform_8(%arg0: i32) -> (i32, i32) {
    %c0_i32 = arith.constant 0 : i32
    %c0_i32_0 = arith.constant 0 : i32
    %c0_i32_1 = arith.constant 0 : i32
    return %c0_i32, %c0_i32_0 : i32, i32
  }
  func.func @transform_9(%arg0: i32) -> (i32, i32) {
    %c0_i32 = arith.constant 0 : i32
    %c0_i32_0 = arith.constant 0 : i32
    %c0_i32_1 = arith.constant 0 : i32
    return %c0_i32, %c0_i32_0 : i32, i32
  }
  func.func @transform_10(%arg0: i32) -> (i32, i32) {
    %c0_i32 = arith.constant 0 : i32
    %c0_i32_0 = arith.constant 0 : i32
    %c0_i32_1 = arith.constant 0 : i32
    return %c0_i32, %c0_i32_0 : i32, i32
  }
  func.func @transform_11(%arg0: i32) -> (i32, i32) {
    %c0_i32 = arith.constant 0 : i32
    %c0_i32_0 = arith.constant 0 : i32
    %c0_i32_1 = arith.constant 0 : i32
    return %c0_i32, %c0_i32_0 : i32, i32
  }
  func.func @transform_12(%arg0: i32) -> (i32, i32) {
    %c0_i32 = arith.constant 0 : i32
    %c0_i32_0 = arith.constant 0 : i32
    %c0_i32_1 = arith.constant 0 : i32
    return %c0_i32, %c0_i32_0 : i32, i32
  }
  func.func @transform_13(%arg0: i32) -> (i32, i32) {
    %c0_i32 = arith.constant 0 : i32
    %c0_i32_0 = arith.constant 0 : i32
    %c0_i32_1 = arith.constant 0 : i32
    return %c0_i32, %c0_i32_0 : i32, i32
  }
  func.func @transform_14(%arg0: i32) -> (i32, i32) {
    %c0_i32 = arith.constant 0 : i32
    %c0_i32_0 = arith.constant 0 : i32
    %c0_i32_1 = arith.constant 0 : i32
    return %c0_i32, %c0_i32_0 : i32, i32
  }
  func.func @transform_15(%arg0: i32) -> (i32, i32) {
    %c0_i32 = arith.constant 0 : i32
    %c0_i32_0 = arith.constant 0 : i32
    %c0_i32_1 = arith.constant 0 : i32
    return %c0_i32, %c0_i32_0 : i32, i32
  }
  func.func @transform_16(%arg0: i32) -> (i32, i32) {
    %c0_i32 = arith.constant 0 : i32
    %c0_i32_0 = arith.constant 0 : i32
    %c0_i32_1 = arith.constant 0 : i32
    return %c0_i32, %c0_i32_0 : i32, i32
  }
  func.func @transform_17(%arg0: i32) -> (i32, i32) {
    %c0_i32 = arith.constant 0 : i32
    %c0_i32_0 = arith.constant 0 : i32
    %c0_i32_1 = arith.constant 0 : i32
    return %c0_i32, %c0_i32_0 : i32, i32
  }
  func.func @transform_18(%arg0: i32) -> (i32, i32) {
    %c0_i32 = arith.constant 0 : i32
    %c0_i32_0 = arith.constant 0 : i32
    %c0_i32_1 = arith.constant 0 : i32
    return %c0_i32, %c0_i32_0 : i32, i32
  }
  func.func @transform_19(%arg0: i32) -> (i32, i32) {
    %c0_i32 = arith.constant 0 : i32
    %c0_i32_0 = arith.constant 0 : i32
    %c0_i32_1 = arith.constant 0 : i32
    return %c0_i32, %c0_i32_0 : i32, i32
  }
  func.func @transform_20(%arg0: i32) -> (i32, i32) {
    %c0_i32 = arith.constant 0 : i32
    %c0_i32_0 = arith.constant 0 : i32
    %c0_i32_1 = arith.constant 0 : i32
    return %c0_i32, %c0_i32_0 : i32, i32
  }
  func.func @transform_21(%arg0: i32) -> (i32, i32) {
    %c0_i32 = arith.constant 0 : i32
    %c0_i32_0 = arith.constant 0 : i32
    return %arg0, %c0_i32 : i32, i32
  }
}

module attributes {stable_mosaic.version = 11 : i64} {
  func.func @ae_kernel(%arg0: i32, %arg1: memref<2x784xbf16, #tpu.memory_space<vmem>>, %arg2: memref<784x128xbf16, #tpu.memory_space<vmem>>, %arg3: memref<1x128xf32, #tpu.memory_space<vmem>>, %arg4: memref<128x128xbf16, #tpu.memory_space<vmem>>, %arg5: memref<1x128xf32, #tpu.memory_space<vmem>>, %arg6: memref<128x128xbf16, #tpu.memory_space<vmem>>, %arg7: memref<1x128xf32, #tpu.memory_space<vmem>>, %arg8: memref<128x128xbf16, #tpu.memory_space<vmem>>, %arg9: memref<1x128xf32, #tpu.memory_space<vmem>>, %arg10: memref<128x128xbf16, #tpu.memory_space<vmem>>, %arg11: memref<1x128xf32, #tpu.memory_space<vmem>>, %arg12: memref<128x128xbf16, #tpu.memory_space<vmem>>, %arg13: memref<1x128xf32, #tpu.memory_space<vmem>>, %arg14: memref<128x128xbf16, #tpu.memory_space<vmem>>, %arg15: memref<1x128xf32, #tpu.memory_space<vmem>>, %arg16: memref<128x128xbf16, #tpu.memory_space<vmem>>, %arg17: memref<1x128xf32, #tpu.memory_space<vmem>>, %arg18: memref<128x128xbf16, #tpu.memory_space<vmem>>, %arg19: memref<1x128xf32, #tpu.memory_space<vmem>>, %arg20: memref<128x784xbf16, #tpu.memory_space<vmem>>, %arg21: memref<1x784xf32, #tpu.memory_space<vmem>>, %arg22: memref<2x784xbf16, #tpu.memory_space<vmem>>) attributes {dimension_semantics = [#tpu.dimension_semantics<parallel>], iteration_bounds = array<i64: 1>, scalar_prefetch = 0 : i64, scratch_operands = 0 : i64, tpu.core_type = #tpu.core_type<tc>, window_params = [{transform_indices = @transform_0, window_bounds = array<i64: 2, 784>}, {pipeline_mode = #tpu.pipeline_mode<synchronous>, transform_indices = @transform_1, window_bounds = array<i64: 784, 128>}, {pipeline_mode = #tpu.pipeline_mode<synchronous>, transform_indices = @transform_2, window_bounds = array<i64: 1, 128>}, {pipeline_mode = #tpu.pipeline_mode<synchronous>, transform_indices = @transform_3, window_bounds = array<i64: 128, 128>}, {pipeline_mode = #tpu.pipeline_mode<synchronous>, transform_indices = @transform_4, window_bounds = array<i64: 1, 128>}, {pipeline_mode = #tpu.pipeline_mode<synchronous>, transform_indices = @transform_5, window_bounds = array<i64: 128, 128>}, {pipeline_mode = #tpu.pipeline_mode<synchronous>, transform_indices = @transform_6, window_bounds = array<i64: 1, 128>}, {pipeline_mode = #tpu.pipeline_mode<synchronous>, transform_indices = @transform_7, window_bounds = array<i64: 128, 128>}, {pipeline_mode = #tpu.pipeline_mode<synchronous>, transform_indices = @transform_8, window_bounds = array<i64: 1, 128>}, {pipeline_mode = #tpu.pipeline_mode<synchronous>, transform_indices = @transform_9, window_bounds = array<i64: 128, 128>}, {pipeline_mode = #tpu.pipeline_mode<synchronous>, transform_indices = @transform_10, window_bounds = array<i64: 1, 128>}, {pipeline_mode = #tpu.pipeline_mode<synchronous>, transform_indices = @transform_11, window_bounds = array<i64: 128, 128>}, {pipeline_mode = #tpu.pipeline_mode<synchronous>, transform_indices = @transform_12, window_bounds = array<i64: 1, 128>}, {pipeline_mode = #tpu.pipeline_mode<synchronous>, transform_indices = @transform_13, window_bounds = array<i64: 128, 128>}, {pipeline_mode = #tpu.pipeline_mode<synchronous>, transform_indices = @transform_14, window_bounds = array<i64: 1, 128>}, {pipeline_mode = #tpu.pipeline_mode<synchronous>, transform_indices = @transform_15, window_bounds = array<i64: 128, 128>}, {pipeline_mode = #tpu.pipeline_mode<synchronous>, transform_indices = @transform_16, window_bounds = array<i64: 1, 128>}, {pipeline_mode = #tpu.pipeline_mode<synchronous>, transform_indices = @transform_17, window_bounds = array<i64: 128, 128>}, {pipeline_mode = #tpu.pipeline_mode<synchronous>, transform_indices = @transform_18, window_bounds = array<i64: 1, 128>}, {pipeline_mode = #tpu.pipeline_mode<synchronous>, transform_indices = @transform_19, window_bounds = array<i64: 128, 784>}, {pipeline_mode = #tpu.pipeline_mode<synchronous>, transform_indices = @transform_20, window_bounds = array<i64: 1, 784>}, {transform_indices = @transform_21, window_bounds = array<i64: 2, 784>}]} {
    %c0 = arith.constant 0 : index
    %c0_0 = arith.constant 0 : index
    %0 = vector.load %arg1[%c0, %c0_0] : memref<2x784xbf16, #tpu.memory_space<vmem>>, vector<2x784xbf16>
    %c0_1 = arith.constant 0 : index
    %c0_2 = arith.constant 0 : index
    %1 = vector.load %arg2[%c0_1, %c0_2] : memref<784x128xbf16, #tpu.memory_space<vmem>>, vector<784x128xbf16>
    %c0_3 = arith.constant 0 : index
    %c0_4 = arith.constant 0 : index
    %2 = vector.load %arg3[%c0_3, %c0_4] : memref<1x128xf32, #tpu.memory_space<vmem>>, vector<1x128xf32>
    %cst = arith.constant dense<0.000000e+00> : vector<2x128xf32>
    %3 = tpu.matmul %0, %1, %cst {dimension_numbers = #tpu.dot_dimension_numbers<[1], [0], [0], [1], [0, 0, 1, 1], [], []>} : vector<2x784xbf16>, vector<784x128xbf16>, vector<2x128xf32> -> vector<2x128xf32>
    %4 = vector.broadcast %2 : vector<1x128xf32> to vector<2x128xf32>
    %5 = arith.addf %3, %4 : vector<2x128xf32>
    %cst_5 = arith.constant 0.000000e+00 : f32
    %6 = vector.broadcast %cst_5 : f32 to vector<2x128xf32>
    %7 = arith.maximumf %5, %6 : vector<2x128xf32>
    %c0_6 = arith.constant 0 : index
    %c0_7 = arith.constant 0 : index
    %8 = vector.load %arg4[%c0_6, %c0_7] : memref<128x128xbf16, #tpu.memory_space<vmem>>, vector<128x128xbf16>
    %c0_8 = arith.constant 0 : index
    %c0_9 = arith.constant 0 : index
    %9 = vector.load %arg5[%c0_8, %c0_9] : memref<1x128xf32, #tpu.memory_space<vmem>>, vector<1x128xf32>
    %10 = arith.truncf %7 : vector<2x128xf32> to vector<2x128xbf16>
    %cst_10 = arith.constant dense<0.000000e+00> : vector<2x128xf32>
    %11 = tpu.matmul %10, %8, %cst_10 {dimension_numbers = #tpu.dot_dimension_numbers<[1], [0], [0], [1], [0, 0, 1, 1], [], []>} : vector<2x128xbf16>, vector<128x128xbf16>, vector<2x128xf32> -> vector<2x128xf32>
    %12 = vector.broadcast %9 : vector<1x128xf32> to vector<2x128xf32>
    %13 = arith.addf %11, %12 : vector<2x128xf32>
    %cst_11 = arith.constant 0.000000e+00 : f32
    %14 = vector.broadcast %cst_11 : f32 to vector<2x128xf32>
    %15 = arith.maximumf %13, %14 : vector<2x128xf32>
    %c0_12 = arith.constant 0 : index
    %c0_13 = arith.constant 0 : index
    %16 = vector.load %arg6[%c0_12, %c0_13] : memref<128x128xbf16, #tpu.memory_space<vmem>>, vector<128x128xbf16>
    %c0_14 = arith.constant 0 : index
    %c0_15 = arith.constant 0 : index
    %17 = vector.load %arg7[%c0_14, %c0_15] : memref<1x128xf32, #tpu.memory_space<vmem>>, vector<1x128xf32>
    %18 = arith.truncf %15 : vector<2x128xf32> to vector<2x128xbf16>
    %cst_16 = arith.constant dense<0.000000e+00> : vector<2x128xf32>
    %19 = tpu.matmul %18, %16, %cst_16 {dimension_numbers = #tpu.dot_dimension_numbers<[1], [0], [0], [1], [0, 0, 1, 1], [], []>} : vector<2x128xbf16>, vector<128x128xbf16>, vector<2x128xf32> -> vector<2x128xf32>
    %20 = vector.broadcast %17 : vector<1x128xf32> to vector<2x128xf32>
    %21 = arith.addf %19, %20 : vector<2x128xf32>
    %cst_17 = arith.constant 0.000000e+00 : f32
    %22 = vector.broadcast %cst_17 : f32 to vector<2x128xf32>
    %23 = arith.maximumf %21, %22 : vector<2x128xf32>
    %c0_18 = arith.constant 0 : index
    %c0_19 = arith.constant 0 : index
    %24 = vector.load %arg8[%c0_18, %c0_19] : memref<128x128xbf16, #tpu.memory_space<vmem>>, vector<128x128xbf16>
    %c0_20 = arith.constant 0 : index
    %c0_21 = arith.constant 0 : index
    %25 = vector.load %arg9[%c0_20, %c0_21] : memref<1x128xf32, #tpu.memory_space<vmem>>, vector<1x128xf32>
    %26 = arith.truncf %23 : vector<2x128xf32> to vector<2x128xbf16>
    %cst_22 = arith.constant dense<0.000000e+00> : vector<2x128xf32>
    %27 = tpu.matmul %26, %24, %cst_22 {dimension_numbers = #tpu.dot_dimension_numbers<[1], [0], [0], [1], [0, 0, 1, 1], [], []>} : vector<2x128xbf16>, vector<128x128xbf16>, vector<2x128xf32> -> vector<2x128xf32>
    %28 = vector.broadcast %25 : vector<1x128xf32> to vector<2x128xf32>
    %29 = arith.addf %27, %28 : vector<2x128xf32>
    %cst_23 = arith.constant 0.000000e+00 : f32
    %30 = vector.broadcast %cst_23 : f32 to vector<2x128xf32>
    %31 = arith.maximumf %29, %30 : vector<2x128xf32>
    %c0_24 = arith.constant 0 : index
    %c0_25 = arith.constant 0 : index
    %32 = vector.load %arg10[%c0_24, %c0_25] : memref<128x128xbf16, #tpu.memory_space<vmem>>, vector<128x128xbf16>
    %c0_26 = arith.constant 0 : index
    %c0_27 = arith.constant 0 : index
    %33 = vector.load %arg11[%c0_26, %c0_27] : memref<1x128xf32, #tpu.memory_space<vmem>>, vector<1x128xf32>
    %34 = arith.truncf %31 : vector<2x128xf32> to vector<2x128xbf16>
    %cst_28 = arith.constant dense<0.000000e+00> : vector<2x128xf32>
    %35 = tpu.matmul %34, %32, %cst_28 {dimension_numbers = #tpu.dot_dimension_numbers<[1], [0], [0], [1], [0, 0, 1, 1], [], []>} : vector<2x128xbf16>, vector<128x128xbf16>, vector<2x128xf32> -> vector<2x128xf32>
    %36 = vector.broadcast %33 : vector<1x128xf32> to vector<2x128xf32>
    %37 = arith.addf %35, %36 : vector<2x128xf32>
    %c0_29 = arith.constant 0 : index
    %c0_30 = arith.constant 0 : index
    %38 = vector.load %arg12[%c0_29, %c0_30] : memref<128x128xbf16, #tpu.memory_space<vmem>>, vector<128x128xbf16>
    %c0_31 = arith.constant 0 : index
    %c0_32 = arith.constant 0 : index
    %39 = vector.load %arg13[%c0_31, %c0_32] : memref<1x128xf32, #tpu.memory_space<vmem>>, vector<1x128xf32>
    %40 = arith.truncf %37 : vector<2x128xf32> to vector<2x128xbf16>
    %cst_33 = arith.constant dense<0.000000e+00> : vector<2x128xf32>
    %41 = tpu.matmul %40, %38, %cst_33 {dimension_numbers = #tpu.dot_dimension_numbers<[1], [0], [0], [1], [0, 0, 1, 1], [], []>} : vector<2x128xbf16>, vector<128x128xbf16>, vector<2x128xf32> -> vector<2x128xf32>
    %42 = vector.broadcast %39 : vector<1x128xf32> to vector<2x128xf32>
    %43 = arith.addf %41, %42 : vector<2x128xf32>
    %cst_34 = arith.constant 0.000000e+00 : f32
    %44 = vector.broadcast %cst_34 : f32 to vector<2x128xf32>
    %45 = arith.maximumf %43, %44 : vector<2x128xf32>
    %c0_35 = arith.constant 0 : index
    %c0_36 = arith.constant 0 : index
    %46 = vector.load %arg14[%c0_35, %c0_36] : memref<128x128xbf16, #tpu.memory_space<vmem>>, vector<128x128xbf16>
    %c0_37 = arith.constant 0 : index
    %c0_38 = arith.constant 0 : index
    %47 = vector.load %arg15[%c0_37, %c0_38] : memref<1x128xf32, #tpu.memory_space<vmem>>, vector<1x128xf32>
    %48 = arith.truncf %45 : vector<2x128xf32> to vector<2x128xbf16>
    %cst_39 = arith.constant dense<0.000000e+00> : vector<2x128xf32>
    %49 = tpu.matmul %48, %46, %cst_39 {dimension_numbers = #tpu.dot_dimension_numbers<[1], [0], [0], [1], [0, 0, 1, 1], [], []>} : vector<2x128xbf16>, vector<128x128xbf16>, vector<2x128xf32> -> vector<2x128xf32>
    %50 = vector.broadcast %47 : vector<1x128xf32> to vector<2x128xf32>
    %51 = arith.addf %49, %50 : vector<2x128xf32>
    %cst_40 = arith.constant 0.000000e+00 : f32
    %52 = vector.broadcast %cst_40 : f32 to vector<2x128xf32>
    %53 = arith.maximumf %51, %52 : vector<2x128xf32>
    %c0_41 = arith.constant 0 : index
    %c0_42 = arith.constant 0 : index
    %54 = vector.load %arg16[%c0_41, %c0_42] : memref<128x128xbf16, #tpu.memory_space<vmem>>, vector<128x128xbf16>
    %c0_43 = arith.constant 0 : index
    %c0_44 = arith.constant 0 : index
    %55 = vector.load %arg17[%c0_43, %c0_44] : memref<1x128xf32, #tpu.memory_space<vmem>>, vector<1x128xf32>
    %56 = arith.truncf %53 : vector<2x128xf32> to vector<2x128xbf16>
    %cst_45 = arith.constant dense<0.000000e+00> : vector<2x128xf32>
    %57 = tpu.matmul %56, %54, %cst_45 {dimension_numbers = #tpu.dot_dimension_numbers<[1], [0], [0], [1], [0, 0, 1, 1], [], []>} : vector<2x128xbf16>, vector<128x128xbf16>, vector<2x128xf32> -> vector<2x128xf32>
    %58 = vector.broadcast %55 : vector<1x128xf32> to vector<2x128xf32>
    %59 = arith.addf %57, %58 : vector<2x128xf32>
    %cst_46 = arith.constant 0.000000e+00 : f32
    %60 = vector.broadcast %cst_46 : f32 to vector<2x128xf32>
    %61 = arith.maximumf %59, %60 : vector<2x128xf32>
    %c0_47 = arith.constant 0 : index
    %c0_48 = arith.constant 0 : index
    %62 = vector.load %arg18[%c0_47, %c0_48] : memref<128x128xbf16, #tpu.memory_space<vmem>>, vector<128x128xbf16>
    %c0_49 = arith.constant 0 : index
    %c0_50 = arith.constant 0 : index
    %63 = vector.load %arg19[%c0_49, %c0_50] : memref<1x128xf32, #tpu.memory_space<vmem>>, vector<1x128xf32>
    %64 = arith.truncf %61 : vector<2x128xf32> to vector<2x128xbf16>
    %cst_51 = arith.constant dense<0.000000e+00> : vector<2x128xf32>
    %65 = tpu.matmul %64, %62, %cst_51 {dimension_numbers = #tpu.dot_dimension_numbers<[1], [0], [0], [1], [0, 0, 1, 1], [], []>} : vector<2x128xbf16>, vector<128x128xbf16>, vector<2x128xf32> -> vector<2x128xf32>
    %66 = vector.broadcast %63 : vector<1x128xf32> to vector<2x128xf32>
    %67 = arith.addf %65, %66 : vector<2x128xf32>
    %cst_52 = arith.constant 0.000000e+00 : f32
    %68 = vector.broadcast %cst_52 : f32 to vector<2x128xf32>
    %69 = arith.maximumf %67, %68 : vector<2x128xf32>
    %c0_53 = arith.constant 0 : index
    %c0_54 = arith.constant 0 : index
    %70 = vector.load %arg20[%c0_53, %c0_54] : memref<128x784xbf16, #tpu.memory_space<vmem>>, vector<128x784xbf16>
    %c0_55 = arith.constant 0 : index
    %c0_56 = arith.constant 0 : index
    %71 = vector.load %arg21[%c0_55, %c0_56] : memref<1x784xf32, #tpu.memory_space<vmem>>, vector<1x784xf32>
    %72 = arith.truncf %69 : vector<2x128xf32> to vector<2x128xbf16>
    %cst_57 = arith.constant dense<0.000000e+00> : vector<2x784xf32>
    %73 = tpu.matmul %72, %70, %cst_57 {dimension_numbers = #tpu.dot_dimension_numbers<[1], [0], [0], [1], [0, 0, 1, 1], [], []>} : vector<2x128xbf16>, vector<128x784xbf16>, vector<2x784xf32> -> vector<2x784xf32>
    %74 = vector.broadcast %71 : vector<1x784xf32> to vector<2x784xf32>
    %75 = arith.addf %73, %74 : vector<2x784xf32>
    %76 = arith.negf %75 : vector<2x784xf32>
    %77 = math.exp %76 : vector<2x784xf32>
    %cst_58 = arith.constant 1.000000e+00 : f32
    %78 = vector.broadcast %cst_58 : f32 to vector<2x784xf32>
    %79 = arith.addf %78, %77 : vector<2x784xf32>
    %80 = arith.divf %78, %79 : vector<2x784xf32>
    %81 = arith.truncf %80 : vector<2x784xf32> to vector<2x784xbf16>
    %c0_59 = arith.constant 0 : index
    %c0_60 = arith.constant 0 : index
    %82 = vector.load %arg22[%c0_59, %c0_60] : memref<2x784xbf16, #tpu.memory_space<vmem>>, vector<2x784xbf16>
    tpu.vector_store %arg22[%c0_59, %c0_60], %81 {strides = array<i32>} : memref<2x784xbf16, #tpu.memory_space<vmem>>, vector<2x784xbf16>,
    return
  }
  func.func @transform_0(%arg0: i32) -> (i32, i32) {
    %c0_i32 = arith.constant 0 : i32
    %c0_i32_0 = arith.constant 0 : i32
    return %arg0, %c0_i32 : i32, i32
  }
  func.func @transform_1(%arg0: i32) -> (i32, i32) {
    %c0_i32 = arith.constant 0 : i32
    %c0_i32_0 = arith.constant 0 : i32
    %c0_i32_1 = arith.constant 0 : i32
    return %c0_i32, %c0_i32_0 : i32, i32
  }
  func.func @transform_2(%arg0: i32) -> (i32, i32) {
    %c0_i32 = arith.constant 0 : i32
    %c0_i32_0 = arith.constant 0 : i32
    %c0_i32_1 = arith.constant 0 : i32
    return %c0_i32, %c0_i32_0 : i32, i32
  }
  func.func @transform_3(%arg0: i32) -> (i32, i32) {
    %c0_i32 = arith.constant 0 : i32
    %c0_i32_0 = arith.constant 0 : i32
    %c0_i32_1 = arith.constant 0 : i32
    return %c0_i32, %c0_i32_0 : i32, i32
  }
  func.func @transform_4(%arg0: i32) -> (i32, i32) {
    %c0_i32 = arith.constant 0 : i32
    %c0_i32_0 = arith.constant 0 : i32
    %c0_i32_1 = arith.constant 0 : i32
    return %c0_i32, %c0_i32_0 : i32, i32
  }
  func.func @transform_5(%arg0: i32) -> (i32, i32) {
    %c0_i32 = arith.constant 0 : i32
    %c0_i32_0 = arith.constant 0 : i32
    %c0_i32_1 = arith.constant 0 : i32
    return %c0_i32, %c0_i32_0 : i32, i32
  }
  func.func @transform_6(%arg0: i32) -> (i32, i32) {
    %c0_i32 = arith.constant 0 : i32
    %c0_i32_0 = arith.constant 0 : i32
    %c0_i32_1 = arith.constant 0 : i32
    return %c0_i32, %c0_i32_0 : i32, i32
  }
  func.func @transform_7(%arg0: i32) -> (i32, i32) {
    %c0_i32 = arith.constant 0 : i32
    %c0_i32_0 = arith.constant 0 : i32
    %c0_i32_1 = arith.constant 0 : i32
    return %c0_i32, %c0_i32_0 : i32, i32
  }
  func.func @transform_8(%arg0: i32) -> (i32, i32) {
    %c0_i32 = arith.constant 0 : i32
    %c0_i32_0 = arith.constant 0 : i32
    %c0_i32_1 = arith.constant 0 : i32
    return %c0_i32, %c0_i32_0 : i32, i32
  }
  func.func @transform_9(%arg0: i32) -> (i32, i32) {
    %c0_i32 = arith.constant 0 : i32
    %c0_i32_0 = arith.constant 0 : i32
    %c0_i32_1 = arith.constant 0 : i32
    return %c0_i32, %c0_i32_0 : i32, i32
  }
  func.func @transform_10(%arg0: i32) -> (i32, i32) {
    %c0_i32 = arith.constant 0 : i32
    %c0_i32_0 = arith.constant 0 : i32
    %c0_i32_1 = arith.constant 0 : i32
    return %c0_i32, %c0_i32_0 : i32, i32
  }
  func.func @transform_11(%arg0: i32) -> (i32, i32) {
    %c0_i32 = arith.constant 0 : i32
    %c0_i32_0 = arith.constant 0 : i32
    %c0_i32_1 = arith.constant 0 : i32
    return %c0_i32, %c0_i32_0 : i32, i32
  }
  func.func @transform_12(%arg0: i32) -> (i32, i32) {
    %c0_i32 = arith.constant 0 : i32
    %c0_i32_0 = arith.constant 0 : i32
    %c0_i32_1 = arith.constant 0 : i32
    return %c0_i32, %c0_i32_0 : i32, i32
  }
  func.func @transform_13(%arg0: i32) -> (i32, i32) {
    %c0_i32 = arith.constant 0 : i32
    %c0_i32_0 = arith.constant 0 : i32
    %c0_i32_1 = arith.constant 0 : i32
    return %c0_i32, %c0_i32_0 : i32, i32
  }
  func.func @transform_14(%arg0: i32) -> (i32, i32) {
    %c0_i32 = arith.constant 0 : i32
    %c0_i32_0 = arith.constant 0 : i32
    %c0_i32_1 = arith.constant 0 : i32
    return %c0_i32, %c0_i32_0 : i32, i32
  }
  func.func @transform_15(%arg0: i32) -> (i32, i32) {
    %c0_i32 = arith.constant 0 : i32
    %c0_i32_0 = arith.constant 0 : i32
    %c0_i32_1 = arith.constant 0 : i32
    return %c0_i32, %c0_i32_0 : i32, i32
  }
  func.func @transform_16(%arg0: i32) -> (i32, i32) {
    %c0_i32 = arith.constant 0 : i32
    %c0_i32_0 = arith.constant 0 : i32
    %c0_i32_1 = arith.constant 0 : i32
    return %c0_i32, %c0_i32_0 : i32, i32
  }
  func.func @transform_17(%arg0: i32) -> (i32, i32) {
    %c0_i32 = arith.constant 0 : i32
    %c0_i32_0 = arith.constant 0 : i32
    %c0_i32_1 = arith.constant 0 : i32
    return %c0_i32, %c0_i32_0 : i32, i32
  }
  func.func @transform_18(%arg0: i32) -> (i32, i32) {
    %c0_i32 = arith.constant 0 : i32
    %c0_i32_0 = arith.constant 0 : i32
    %c0_i32_1 = arith.constant 0 : i32
    return %c0_i32, %c0_i32_0 : i32, i32
  }
  func.func @transform_19(%arg0: i32) -> (i32, i32) {
    %c0_i32 = arith.constant 0 : i32
    %c0_i32_0 = arith.constant 0 : i32
    %c0_i32_1 = arith.constant 0 : i32
    return %c0_i32, %c0_i32_0 : i32, i32
  }
  func.func @transform_20(%arg0: i32) -> (i32, i32) {
    %c0_i32 = arith.constant 0 : i32
    %c0_i32_0 = arith.constant 0 : i32
    %c0_i32_1 = arith.constant 0 : i32
    return %c0_i32, %c0_i32_0 : i32, i32
  }
  func.func @transform_21(%arg0: i32) -> (i32, i32) {
    %c0_i32 = arith.constant 0 : i32
    %c0_i32_0 = arith.constant 0 : i32
    return %arg0, %c0_i32 : i32, i32
  }
}

</mosaic_0001>

<llo_original>
// kernel: tpu_custom_call.1
$region0: #{tpu_custom_call.1}
  #allocation0 [shape = 'u32[]', space=smem, size = 0x4, offset = 0x4, fixed_abs, tag = 'smem constant byte address 0x4 - core index']
  #allocation1 [shape = 'u32[144,128]{1,0:T(1,128)}', space=vmem, size = 0x12000, scoped, tag = 'internal scratch']
  %s0 = inlined_call_operand.hbm [shape: bf16[2,784], index: 0, kind: input, shape index: {}]
  %s1 = inlined_call_operand.vmem [shape: bf16[784,128], index: 1, kind: input, shape index: {}]
  %s2 = inlined_call_operand.hbm [shape: f32[1,128], index: 2, kind: input, shape index: {}]
  %s3 = inlined_call_operand.vmem [shape: bf16[128,128], index: 3, kind: input, shape index: {}]
  %s4 = inlined_call_operand.vmem [shape: f32[1,128], index: 4, kind: input, shape index: {}]
  %s5 = inlined_call_operand.vmem [shape: bf16[128,128], index: 5, kind: input, shape index: {}]
  %s6 = inlined_call_operand.vmem [shape: f32[1,128], index: 6, kind: input, shape index: {}]
  %s7 = inlined_call_operand.vmem [shape: bf16[128,128], index: 7, kind: input, shape index: {}]
  %s8 = inlined_call_operand.vmem [shape: f32[1,128], index: 8, kind: input, shape index: {}]
  %s9 = inlined_call_operand.vmem [shape: bf16[128,128], index: 9, kind: input, shape index: {}]
  %s10 = inlined_call_operand.vmem [shape: f32[1,128], index: 10, kind: input, shape index: {}]
  %s11 = inlined_call_operand.vmem [shape: bf16[128,128], index: 11, kind: input, shape index: {}]
  %s12 = inlined_call_operand.vmem [shape: f32[1,128], index: 12, kind: input, shape index: {}]
  %s13 = inlined_call_operand.vmem [shape: bf16[128,128], index: 13, kind: input, shape index: {}]
  %s14 = inlined_call_operand.vmem [shape: f32[1,128], index: 14, kind: input, shape index: {}]
  %s15 = inlined_call_operand.vmem [shape: bf16[128,128], index: 15, kind: input, shape index: {}]
  %s16 = inlined_call_operand.vmem [shape: f32[1,128], index: 16, kind: input, shape index: {}]
  %s17 = inlined_call_operand.hbm [shape: bf16[128,128], index: 17, kind: input, shape index: {}]
  %s18 = inlined_call_operand.vmem [shape: f32[1,128], index: 18, kind: input, shape index: {}]
  %s19 = inlined_call_operand.vmem [shape: bf16[128,784], index: 19, kind: input, shape index: {}]
  %s20 = inlined_call_operand.vmem [shape: f32[1,784], index: 20, kind: input, shape index: {}]
  %s21 = inlined_call_operand.hbm [shape: bf16[2,784], index: 21, kind: output, shape index: {}]
  %s22 = sld [smem:[#allocation0]]
  $region106: #{tpu_custom_call.1} parent=0
    _
  %s24 = ssub.s32 1, %s22
  %s25 = scalar_select 0, %s24, %s22
  $region1: #{tpu_custom_call.1} parent=0
    #allocation2 [shape = 'u8[3584]{0}', space=vmem, size = 0x1000, scoped, tag = 'input window, operand 0, single buffered']
    #allocation3 [shape = 's32[1]{0}', space=sflag, size = 0x4, scoped, tag = 'scoped memory for tpu_custom_call.1']
    #allocation4 [shape = 's32[1]{0}', space=sflag, size = 0x4, scoped, tag = 'scoped memory for tpu_custom_call.1']
    #allocation5 [shape = 'u8[512]{0}', space=vmem, size = 0x400, scoped, tag = 'input window, operand 2, single buffered']
    #allocation6 [shape = 's32[1]{0}', space=sflag, size = 0x4, scoped, tag = 'scoped memory for tpu_custom_call.1']
    #allocation7 [shape = 'u8[32768]{0}', space=vmem, size = 0x8000, scoped, tag = 'input window, operand 17, single buffered']
    #allocation8 [shape = 'u8[3584]{0}', space=vmem, size = 0x1000, scoped, tag = 'output window, operand 0, single buffered']
    %26 = vsyncpa [#allocation3], 0
    %27 = vsyncpa [#allocation6], 0
    %28 = vsyncpa [#allocation4], 0
    // Predicated region
    $region2: #{tpu_custom_call.1} parent=1 // pred_check
      _
    $region3: #{tpu_custom_call.1} parent=1 // pred_check_branch
      %30 = sbr.rel (0) target = $region5
    $region4: #{tpu_custom_call.1} parent=1 // pred_region
      %s32 = ssub.s32 112, 112
      %33 = vsyncadd [#allocation3], %s32
      %s35 = sshll.u32 [#allocation2], 4
      %s36 = int_to_ptr.vmem [resolvable:$true] %s35
      %38 = dma.hbm_to_vmem [thread:$0]  %s0, 112, %s36, [#allocation3]
    $region5: #{tpu_custom_call.1} parent=1 // pred_fallthru
      _
    // Predicated region
    $region6: #{tpu_custom_call.1} parent=1 // pred_check
      _
    $region7: #{tpu_custom_call.1} parent=1 // pred_check_branch
      %40 = sbr.rel (0) target = $region9
    $region8: #{tpu_custom_call.1} parent=1 // pred_region
      _
    $region9: #{tpu_custom_call.1} parent=1 // pred_fallthru
      _
    // Predicated region
    $region10: #{tpu_custom_call.1} parent=1 // pred_check
      _
    $region11: #{tpu_custom_call.1} parent=1 // pred_check_branch
      %42 = sbr.rel (0) target = $region13
    $region12: #{tpu_custom_call.1} parent=1 // pred_region
      %s44 = ssub.s32 16, 16
      %45 = vsyncadd [#allocation6], %s44
      %s47 = sshll.u32 [#allocation5], 4
      %s48 = int_to_ptr.vmem [resolvable:$true] %s47
      %50 = dma.hbm_to_vmem [thread:$0]  %s2, 16, %s48, [#allocation6]
    $region13: #{tpu_custom_call.1} parent=1 // pred_fallthru
      _
    // Predicated region
    $region14: #{tpu_custom_call.1} parent=1 // pred_check
      _
    $region15: #{tpu_custom_call.1} parent=1 // pred_check_branch
      %52 = sbr.rel (0) target = $region17
    $region16: #{tpu_custom_call.1} parent=1 // pred_region
      _
    $region17: #{tpu_custom_call.1} parent=1 // pred_fallthru
      _
    // Predicated region
    $region18: #{tpu_custom_call.1} parent=1 // pred_check
      _
    $region19: #{tpu_custom_call.1} parent=1 // pred_check_branch
      %54 = sbr.rel (0) target = $region21
    $region20: #{tpu_custom_call.1} parent=1 // pred_region
      _
    $region21: #{tpu_custom_call.1} parent=1 // pred_fallthru
      _
    // Predicated region
    $region22: #{tpu_custom_call.1} parent=1 // pred_check
      _
    $region23: #{tpu_custom_call.1} parent=1 // pred_check_branch
      %56 = sbr.rel (0) target = $region25
    $region24: #{tpu_custom_call.1} parent=1 // pred_region
      _
    $region25: #{tpu_custom_call.1} parent=1 // pred_fallthru
      _
    // Predicated region
    $region26: #{tpu_custom_call.1} parent=1 // pred_check
      _
    $region27: #{tpu_custom_call.1} parent=1 // pred_check_branch
      %58 = sbr.rel (0) target = $region29
    $region28: #{tpu_custom_call.1} parent=1 // pred_region
      _
    $region29: #{tpu_custom_call.1} parent=1 // pred_fallthru
      _
    // Predicated region
    $region30: #{tpu_custom_call.1} parent=1 // pred_check
      _
    $region31: #{tpu_custom_call.1} parent=1 // pred_check_branch
      %60 = sbr.rel (0) target = $region33
    $region32: #{tpu_custom_call.1} parent=1 // pred_region
      _
    $region33: #{tpu_custom_call.1} parent=1 // pred_fallthru
      _
    // Predicated region
    $region34: #{tpu_custom_call.1} parent=1 // pred_check
      _
    $region35: #{tpu_custom_call.1} parent=1 // pred_check_branch
      %62 = sbr.rel (0) target = $region37
    $region36: #{tpu_custom_call.1} parent=1 // pred_region
      _
    $region37: #{tpu_custom_call.1} parent=1 // pred_fallthru
      _
    // Predicated region
    $region38: #{tpu_custom_call.1} parent=1 // pred_check
      _
    $region39: #{tpu_custom_call.1} parent=1 // pred_check_branch
      %64 = sbr.rel (0) target = $region41
    $region40: #{tpu_custom_call.1} parent=1 // pred_region
      _
    $region41: #{tpu_custom_call.1} parent=1 // pred_fallthru
      _
    // Predicated region
    $region42: #{tpu_custom_call.1} parent=1 // pred_check
      _
    $region43: #{tpu_custom_call.1} parent=1 // pred_check_branch
      %66 = sbr.rel (0) target = $region45
    $region44: #{tpu_custom_call.1} parent=1 // pred_region
      _
    $region45: #{tpu_custom_call.1} parent=1 // pred_fallthru
      _
    // Predicated region
    $region46: #{tpu_custom_call.1} parent=1 // pred_check
      _
    $region47: #{tpu_custom_call.1} parent=1 // pred_check_branch
      %68 = sbr.rel (0) target = $region49
    $region48: #{tpu_custom_call.1} parent=1 // pred_region
      _
    $region49: #{tpu_custom_call.1} parent=1 // pred_fallthru
      _
    // Predicated region
    $region50: #{tpu_custom_call.1} parent=1 // pred_check
      _
    $region51: #{tpu_custom_call.1} parent=1 // pred_check_branch
      %70 = sbr.rel (0) target = $region53
    $region52: #{tpu_custom_call.1} parent=1 // pred_region
      _
    $region53: #{tpu_custom_call.1} parent=1 // pred_fallthru
      _
    // Predicated region
    $region54: #{tpu_custom_call.1} parent=1 // pred_check
      _
    $region55: #{tpu_custom_call.1} parent=1 // pred_check_branch
      %72 = sbr.rel (0) target = $region57
    $region56: #{tpu_custom_call.1} parent=1 // pred_region
      _
    $region57: #{tpu_custom_call.1} parent=1 // pred_fallthru
      _
    // Predicated region
    $region58: #{tpu_custom_call.1} parent=1 // pred_check
      _
    $region59: #{tpu_custom_call.1} parent=1 // pred_check_branch
      %74 = sbr.rel (0) target = $region61
    $region60: #{tpu_custom_call.1} parent=1 // pred_region
      _
    $region61: #{tpu_custom_call.1} parent=1 // pred_fallthru
      _
    // Predicated region
    $region62: #{tpu_custom_call.1} parent=1 // pred_check
      _
    $region63: #{tpu_custom_call.1} parent=1 // pred_check_branch
      %76 = sbr.rel (0) target = $region65
    $region64: #{tpu_custom_call.1} parent=1 // pred_region
      _
    $region65: #{tpu_custom_call.1} parent=1 // pred_fallthru
      _
    // Predicated region
    $region66: #{tpu_custom_call.1} parent=1 // pred_check
      _
    $region67: #{tpu_custom_call.1} parent=1 // pred_check_branch
      %78 = sbr.rel (0) target = $region69
    $region68: #{tpu_custom_call.1} parent=1 // pred_region
      _
    $region69: #{tpu_custom_call.1} parent=1 // pred_fallthru
      _
    // Predicated region
    $region70: #{tpu_custom_call.1} parent=1 // pred_check
      _
    $region71: #{tpu_custom_call.1} parent=1 // pred_check_branch
      %80 = sbr.rel (0) target = $region73
    $region72: #{tpu_custom_call.1} parent=1 // pred_region
      %s82 = ssub.s32 1024, 1024
      %83 = vsyncadd [#allocation6], %s82
      %s84 = sshll.u32 [#allocation7], 4
      %s85 = int_to_ptr.vmem [resolvable:$true] %s84
      %90 = dma.hbm_to_vmem [thread:$0]  %s17, 1024, %s85, [#allocation6], 64, 64, 4
    $region73: #{tpu_custom_call.1} parent=1 // pred_fallthru
      _
    // Predicated region
    $region74: #{tpu_custom_call.1} parent=1 // pred_check
      _
    $region75: #{tpu_custom_call.1} parent=1 // pred_check_branch
      %92 = sbr.rel (0) target = $region77
    $region76: #{tpu_custom_call.1} parent=1 // pred_region
      _
    $region77: #{tpu_custom_call.1} parent=1 // pred_fallthru
      _
    // Predicated region
    $region78: #{tpu_custom_call.1} parent=1 // pred_check
      _
    $region79: #{tpu_custom_call.1} parent=1 // pred_check_branch
      %94 = sbr.rel (0) target = $region81
    $region80: #{tpu_custom_call.1} parent=1 // pred_region
      _
    $region81: #{tpu_custom_call.1} parent=1 // pred_fallthru
      _
    // Predicated region
    $region82: #{tpu_custom_call.1} parent=1 // pred_check
      _
    $region83: #{tpu_custom_call.1} parent=1 // pred_check_branch
      %96 = sbr.rel (0) target = $region85
    $region84: #{tpu_custom_call.1} parent=1 // pred_region
      _
    $region85: #{tpu_custom_call.1} parent=1 // pred_fallthru
      _
    // Predicated region
    $region86: #{tpu_custom_call.1} parent=1 // pred_check
      _
    $region87: #{tpu_custom_call.1} parent=1 // pred_check_branch
      %98 = sbr.rel (0) target = $region89
    $region88: #{tpu_custom_call.1} parent=1 // pred_region
      %99 = dma.done [#allocation3], 112
    $region89: #{tpu_custom_call.1} parent=1 // pred_fallthru
      _
    // Predicated region
    $region90: #{tpu_custom_call.1} parent=1 // pred_check
      _
    $region91: #{tpu_custom_call.1} parent=1 // pred_check_branch
      %101 = sbr.rel (0) target = $region93
    $region92: #{tpu_custom_call.1} parent=1 // pred_region
      %102 = dma.done [#allocation6], 16
    $region93: #{tpu_custom_call.1} parent=1 // pred_fallthru
      _
    // Predicated region
    $region94: #{tpu_custom_call.1} parent=1 // pred_check
      _
    $region95: #{tpu_custom_call.1} parent=1 // pred_check_branch
      %104 = sbr.rel (0) target = $region97
    $region96: #{tpu_custom_call.1} parent=1 // pred_region
      %105 = dma.done [#allocation6], 1024
    $region97: #{tpu_custom_call.1} parent=1 // pred_fallthru
      _
    %v107 = vld [vmem:[#allocation2] sm:$0x7f]
    %v108 = vld [vmem:[%s1] sm:$0xf]
    %v109 = vld [vmem:[%s1 + $0x4] sm:$0xf]
    %v110 = vld [vmem:[%s1 + $0x8] sm:$0xf]
    %v111 = vld [vmem:[%s1 + $0xc] sm:$0xf]
    %v112 = vld [vmem:[%s1 + $0x10] sm:$0xf]
    %v113 = vld [vmem:[%s1 + $0x14] sm:$0xf]
    %v114 = vld [vmem:[%s1 + $0x18] sm:$0xf]
    %v115 = vld [vmem:[%s1 + $0x1c] sm:$0xf]
    %v116 = vld [vmem:[%s1 + $0x20] sm:$0xf]
    %v117 = vld [vmem:[%s1 + $0x24] sm:$0xf]
    %v118 = vld [vmem:[%s1 + $0x28] sm:$0xf]
    %v119 = vld [vmem:[%s1 + $0x2c] sm:$0xf]
    %v120 = vld [vmem:[%s1 + $0x30] sm:$0xf]
    %v121 = vld [vmem:[%s1 + $0x34] sm:$0xf]
    %v122 = vld [vmem:[%s1 + $0x38] sm:$0xf]
    %v123 = vld [vmem:[%s1 + $0x3c] sm:$0xf]
    %v124 = vld [vmem:[%s1 + $0x40] sm:$0xf]
    %v125 = vld [vmem:[%s1 + $0x44] sm:$0xf]
    %v126 = vld [vmem:[%s1 + $0x48] sm:$0xf]
    %v127 = vld [vmem:[%s1 + $0x4c] sm:$0xf]
    %v128 = vld [vmem:[%s1 + $0x50] sm:$0xf]
    %v129 = vld [vmem:[%s1 + $0x54] sm:$0xf]
    %v130 = vld [vmem:[%s1 + $0x58] sm:$0xf]
    %v131 = vld [vmem:[%s1 + $0x5c] sm:$0xf]
    %v132 = vld [vmem:[%s1 + $0x60] sm:$0xf]
    %v133 = vld [vmem:[%s1 + $0x64] sm:$0xf]
    %v134 = vld [vmem:[%s1 + $0x68] sm:$0xf]
    %v135 = vld [vmem:[%s1 + $0x6c] sm:$0xf]
    %v136 = vld [vmem:[%s1 + $0x70] sm:$0xf]
    %v137 = vld [vmem:[%s1 + $0x74] sm:$0xf]
    %v138 = vld [vmem:[%s1 + $0x78] sm:$0xf]
    %v139 = vld [vmem:[%s1 + $0x7c] sm:$0xf]
    %v140 = vld [vmem:[%s1 + $0x80] sm:$0xf]
    %v141 = vld [vmem:[%s1 + $0x84] sm:$0xf]
    %v142 = vld [vmem:[%s1 + $0x88] sm:$0xf]
    %v143 = vld [vmem:[%s1 + $0x8c] sm:$0xf]
    %v144 = vld [vmem:[%s1 + $0x90] sm:$0xf]
    %v145 = vld [vmem:[%s1 + $0x94] sm:$0xf]
    %v146 = vld [vmem:[%s1 + $0x98] sm:$0xf]
    %v147 = vld [vmem:[%s1 + $0x9c] sm:$0xf]
    %v148 = vld [vmem:[%s1 + $0xa0] sm:$0xf]
    %v149 = vld [vmem:[%s1 + $0xa4] sm:$0xf]
    %v150 = vld [vmem:[%s1 + $0xa8] sm:$0xf]
    %v151 = vld [vmem:[%s1 + $0xac] sm:$0xf]
    %v152 = vld [vmem:[%s1 + $0xb0] sm:$0xf]
    %v153 = vld [vmem:[%s1 + $0xb4] sm:$0xf]
    %v154 = vld [vmem:[%s1 + $0xb8] sm:$0xf]
    %v155 = vld [vmem:[%s1 + $0xbc] sm:$0xf]
    %v156 = vld [vmem:[%s1 + $0xc0] sm:$0xf]
    %v157 = vld [vmem:[%s1 + $0xc4] sm:$0xf]
    %v158 = vld [vmem:[%s1 + $0xc8] sm:$0xf]
    %v159 = vld [vmem:[%s1 + $0xcc] sm:$0xf]
    %v160 = vld [vmem:[%s1 + $0xd0] sm:$0xf]
    %v161 = vld [vmem:[%s1 + $0xd4] sm:$0xf]
    %v162 = vld [vmem:[%s1 + $0xd8] sm:$0xf]
    %v163 = vld [vmem:[%s1 + $0xdc] sm:$0xf]
    %v164 = vld [vmem:[%s1 + $0xe0] sm:$0xf]
    %v165 = vld [vmem:[%s1 + $0xe4] sm:$0xf]
    %v166 = vld [vmem:[%s1 + $0xe8] sm:$0xf]
    %v167 = vld [vmem:[%s1 + $0xec] sm:$0xf]
    %v168 = vld [vmem:[%s1 + $0xf0] sm:$0xf]
    %v169 = vld [vmem:[%s1 + $0xf4] sm:$0xf]
    %v170 = vld [vmem:[%s1 + $0xf8] sm:$0xf]
    %v171 = vld [vmem:[%s1 + $0xfc] sm:$0xf]
    %v172 = vld [vmem:[%s1 + $0x100] sm:$0xf]
    %v173 = vld [vmem:[%s1 + $0x104] sm:$0xf]
    %v174 = vld [vmem:[%s1 + $0x108] sm:$0xf]
    %v175 = vld [vmem:[%s1 + $0x10c] sm:$0xf]
    %v176 = vld [vmem:[%s1 + $0x110] sm:$0xf]
    %v177 = vld [vmem:[%s1 + $0x114] sm:$0xf]
    %v178 = vld [vmem:[%s1 + $0x118] sm:$0xf]
    %v179 = vld [vmem:[%s1 + $0x11c] sm:$0xf]
    %v180 = vld [vmem:[%s1 + $0x120] sm:$0xf]
    %v181 = vld [vmem:[%s1 + $0x124] sm:$0xf]
    %v182 = vld [vmem:[%s1 + $0x128] sm:$0xf]
    %v183 = vld [vmem:[%s1 + $0x12c] sm:$0xf]
    %v184 = vld [vmem:[%s1 + $0x130] sm:$0xf]
    %v185 = vld [vmem:[%s1 + $0x134] sm:$0xf]
    %v186 = vld [vmem:[%s1 + $0x138] sm:$0xf]
    %v187 = vld [vmem:[%s1 + $0x13c] sm:$0xf]
    %v188 = vld [vmem:[%s1 + $0x140] sm:$0xf]
    %v189 = vld [vmem:[%s1 + $0x144] sm:$0xf]
    %v190 = vld [vmem:[%s1 + $0x148] sm:$0xf]
    %v191 = vld [vmem:[%s1 + $0x14c] sm:$0xf]
    %v192 = vld [vmem:[%s1 + $0x150] sm:$0xf]
    %v193 = vld [vmem:[%s1 + $0x154] sm:$0xf]
    %v194 = vld [vmem:[%s1 + $0x158] sm:$0xf]
    %v195 = vld [vmem:[%s1 + $0x15c] sm:$0xf]
    %v196 = vld [vmem:[%s1 + $0x160] sm:$0xf]
    %v197 = vld [vmem:[%s1 + $0x164] sm:$0xf]
    %v198 = vld [vmem:[%s1 + $0x168] sm:$0xf]
    %v199 = vld [vmem:[%s1 + $0x16c] sm:$0xf]
    %v200 = vld [vmem:[%s1 + $0x170] sm:$0xf]
    %v201 = vld [vmem:[%s1 + $0x174] sm:$0xf]
    %v202 = vld [vmem:[%s1 + $0x178] sm:$0xf]
    %v203 = vld [vmem:[%s1 + $0x17c] sm:$0xf]
    %v204 = vld [vmem:[%s1 + $0x180] sm:$0xf]
    %v205 = vld [vmem:[%s1 + $0x184] sm:$0xf]
    %v206 = vld [vmem:[#allocation5] sm:$0x1]
    %v208 = vlaneseq
    %v209 = vshrl.u32 %v208, 7
    %v210 = vsub.s32 0, %v209
    %v211 = vrot.slane %v206, %v210
    %v214 = vcombine.high %v107, %v107
    %v216 = vunpack.c.l.s4 1966171168
    %v217 = vunpack.c.0.s8 %v216
    %v218 = vlaneseq
    %v219 = vshrl.u32 %v218, 7
    %v220 = vsub.s32 %v217, %v219
    %v221 = vrot.slane %v107, %v220
    %v223 = vunpack.c.l.s4 1966171168
    %v224 = vunpack.c.0.s8 %v223
    %v225 = vlaneseq
    %v226 = vshrl.u32 %v225, 7
    %v227 = vsub.s32 %v224, %v226
    %v228 = vrot.slane %v214, %v227
    %v229 = vcombine.high %v221, %v221
    %v230 = vcombine.high %v228, %v228
    %v232 = vunpack.c.l.s4 1966171168
    %v233 = vunpack.c.0.s8 %v232
    %v234 = vlaneseq
    %v235 = vshrl.u32 %v234, 7
    %v236 = vsub.s32 %v233, %v235
    %v237 = vrot.slane %v221, %v236
    %v239 = vunpack.c.l.s4 1966171168
    %v240 = vunpack.c.0.s8 %v239
    %v241 = vlaneseq
    %v242 = vshrl.u32 %v241, 7
    %v243 = vsub.s32 %v240, %v242
    %v244 = vrot.slane %v228, %v243
    %v246 = vunpack.c.l.s4 1966171168
    %v247 = vunpack.c.0.s8 %v246
    %v248 = vlaneseq
    %v249 = vshrl.u32 %v248, 7
    %v250 = vsub.s32 %v247, %v249
    %v251 = vrot.slane %v229, %v250
    %v253 = vunpack.c.l.s4 1966171168
    %v254 = vunpack.c.0.s8 %v253
    %v255 = vlaneseq
    %v256 = vshrl.u32 %v255, 7
    %v257 = vsub.s32 %v254, %v256
    %v258 = vrot.slane %v230, %v257
    %v259 = vcombine.high %v237, %v237
    %v260 = vcombine.high %v244, %v244
    %v261 = vcombine.high %v251, %v251
    %v366 = vunpack.c.l.b16 %v108
    %v367 = vunpack.c.l.b16 %v109
    %v368 = vunpack.c.l.b16 %v110
    %v369 = vunpack.c.l.b16 %v111
    %v370 = vunpack.c.l.b16 %v112
    %v371 = vunpack.c.l.b16 %v113
    %v372 = vunpack.c.l.b16 %v114
    %v373 = vunpack.c.l.b16 %v115
    %v374 = vunpack.c.l.b16 %v116
    %v375 = vunpack.c.l.b16 %v117
    %v376 = vunpack.c.l.b16 %v118
    %v377 = vunpack.c.l.b16 %v119
    %v378 = vunpack.c.l.b16 %v120
    %v379 = vunpack.c.l.b16 %v121
    %v380 = vunpack.c.l.b16 %v122
    %v381 = vunpack.c.l.b16 %v123
    %v382 = vunpack.c.l.b16 %v124
    %v383 = vunpack.c.l.b16 %v125
    %v384 = vunpack.c.l.b16 %v126
    %v385 = vunpack.c.l.b16 %v127
    %v386 = vunpack.c.l.b16 %v128
    %v387 = vunpack.c.l.b16 %v129
    %v388 = vunpack.c.l.b16 %v130
    %v389 = vunpack.c.l.b16 %v131
    %v390 = vunpack.c.l.b16 %v132
    %v391 = vunpack.c.l.b16 %v133
    %v392 = vunpack.c.l.b16 %v134
    %v393 = vunpack.c.l.b16 %v135
    %v394 = vunpack.c.l.b16 %v136
    %v395 = vunpack.c.l.b16 %v137
    %v396 = vunpack.c.l.b16 %v138
    %v397 = vunpack.c.l.b16 %v139
    %v398 = vunpack.c.l.b16 %v140
    %v399 = vunpack.c.l.b16 %v141
    %v400 = vunpack.c.l.b16 %v142
    %v401 = vunpack.c.l.b16 %v143
    %v402 = vunpack.c.l.b16 %v144
    %v403 = vunpack.c.l.b16 %v145
    %v404 = vunpack.c.l.b16 %v146
    %v405 = vunpack.c.l.b16 %v147
    %v406 = vunpack.c.l.b16 %v148
    %v407 = vunpack.c.l.b16 %v149
    %v408 = vunpack.c.l.b16 %v150
    %v409 = vunpack.c.l.b16 %v151
    %v410 = vunpack.c.l.b16 %v152
    %v411 = vunpack.c.l.b16 %v153
    %v412 = vunpack.c.l.b16 %v154
    %v413 = vunpack.c.l.b16 %v155
    %v414 = vunpack.c.l.b16 %v156
    %v415 = vunpack.c.l.b16 %v157
    %v416 = vunpack.c.l.b16 %v158
    %v417 = vunpack.c.l.b16 %v159
    %v418 = vunpack.c.l.b16 %v160
    %v419 = vunpack.c.l.b16 %v161
    %v420 = vunpack.c.l.b16 %v162
    %v421 = vunpack.c.l.b16 %v163
    %v422 = vunpack.c.l.b16 %v164
    %v423 = vunpack.c.l.b16 %v165
    %v424 = vunpack.c.l.b16 %v166
    %v425 = vunpack.c.l.b16 %v167
    %v426 = vunpack.c.l.b16 %v168
    %v427 = vunpack.c.l.b16 %v169
    %v428 = vunpack.c.l.b16 %v170
    %v429 = vunpack.c.l.b16 %v171
    %v430 = vunpack.c.l.b16 %v172
    %v431 = vunpack.c.l.b16 %v173
    %v432 = vunpack.c.l.b16 %v174
    %v433 = vunpack.c.l.b16 %v175
    %v434 = vunpack.c.l.b16 %v176
    %v435 = vunpack.c.l.b16 %v177
    %v436 = vunpack.c.l.b16 %v178
    %v437 = vunpack.c.l.b16 %v179
    %v438 = vunpack.c.l.b16 %v180
    %v439 = vunpack.c.l.b16 %v181
    %v440 = vunpack.c.l.b16 %v182
    %v441 = vunpack.c.l.b16 %v183
    %v442 = vunpack.c.l.b16 %v184
    %v443 = vunpack.c.l.b16 %v185
    %v444 = vunpack.c.l.b16 %v186
    %v445 = vunpack.c.l.b16 %v187
    %v446 = vunpack.c.l.b16 %v188
    %v447 = vunpack.c.l.b16 %v189
    %v448 = vunpack.c.l.b16 %v190
    %v449 = vunpack.c.l.b16 %v191
    %v450 = vunpack.c.l.b16 %v192
    %v451 = vunpack.c.l.b16 %v193
    %v452 = vunpack.c.l.b16 %v194
    %v453 = vunpack.c.l.b16 %v195
    %v454 = vunpack.c.l.b16 %v196
    %v455 = vunpack.c.l.b16 %v197
    %v456 = vunpack.c.l.b16 %v198
    %v457 = vunpack.c.l.b16 %v199
    %v458 = vunpack.c.l.b16 %v200
    %v459 = vunpack.c.l.b16 %v201
    %v460 = vunpack.c.l.b16 %v202
    %v461 = vunpack.c.l.b16 %v203
    %v462 = vunpack.c.l.b16 %v204
    %v463 = vunpack.c.l.b16 %v205
    %v464 = vpack.c.b16 %v367, %v366
    %v465 = vpack.c.b16 %v369, %v368
    %v466 = vpack.c.b16 %v371, %v370
    %v467 = vpack.c.b16 %v373, %v372
    %v468 = vpack.c.b16 %v375, %v374
    %v469 = vpack.c.b16 %v377, %v376
    %v470 = vpack.c.b16 %v379, %v378
    %v471 = vpack.c.b16 %v381, %v380
    %v472 = vpack.c.b16 %v383, %v382
    %v473 = vpack.c.b16 %v385, %v384
    %v474 = vpack.c.b16 %v387, %v386
    %v475 = vpack.c.b16 %v389, %v388
    %v476 = vpack.c.b16 %v391, %v390
    %v477 = vpack.c.b16 %v393, %v392
    %v478 = vpack.c.b16 %v395, %v394
    %v479 = vpack.c.b16 %v397, %v396
    %v480 = vpack.c.b16 %v399, %v398
    %v481 = vpack.c.b16 %v401, %v400
    %v482 = vpack.c.b16 %v403, %v402
    %v483 = vpack.c.b16 %v405, %v404
    %v484 = vpack.c.b16 %v407, %v406
    %v485 = vpack.c.b16 %v409, %v408
    %v486 = vpack.c.b16 %v411, %v410
    %v487 = vpack.c.b16 %v413, %v412
    %v488 = vpack.c.b16 %v415, %v414
    %v489 = vpack.c.b16 %v417, %v416
    %v490 = vpack.c.b16 %v419, %v418
    %v491 = vpack.c.b16 %v421, %v420
    %v492 = vpack.c.b16 %v423, %v422
    %v493 = vpack.c.b16 %v425, %v424
    %v494 = vpack.c.b16 %v427, %v426
    %v495 = vpack.c.b16 %v429, %v428
    %v496 = vpack.c.b16 %v431, %v430
    %v497 = vpack.c.b16 %v433, %v432
    %v498 = vpack.c.b16 %v435, %v434
    %v499 = vpack.c.b16 %v437, %v436
    %v500 = vpack.c.b16 %v439, %v438
    %v501 = vpack.c.b16 %v441, %v440
    %v502 = vpack.c.b16 %v443, %v442
    %v503 = vpack.c.b16 %v445, %v444
    %v504 = vpack.c.b16 %v447, %v446
    %v505 = vpack.c.b16 %v449, %v448
    %v506 = vpack.c.b16 %v451, %v450
    %v507 = vpack.c.b16 %v453, %v452
    %v508 = vpack.c.b16 %v455, %v454
    %v509 = vpack.c.b16 %v457, %v456
    %v510 = vpack.c.b16 %v459, %v458
    %v511 = vpack.c.b16 %v461, %v460
    %v512 = vpack.c.b16 %v463, %v462
    %vm562 = vcmask 130048
    %v564 = vsel %vm562, %v260, 0
    %566 = vmatprep.subr.bf16.mxu0 0
    %567 = vmatpush1.bf16.msra.mxu0 %v464
    %568 = vmatprep.subr.bf16.mxu0 0
    %569 = vmatpush1.bf16.msra.mxu0 %v465
    %570 = vmatprep.subr.bf16.mxu0 0
    %571 = vmatpush1.bf16.msra.mxu0 %v466
    %572 = vmatprep.subr.bf16.mxu0 0
    %573 = vmatpush1.bf16.msra.mxu0 %v467
    %574 = vmatprep.subr.bf16.mxu0 0
    %575 = vmatpush1.bf16.msra.mxu0 %v468
    %576 = vmatprep.subr.bf16.mxu0 0
    %577 = vmatpush1.bf16.msra.mxu0 %v469
    %578 = vmatprep.subr.bf16.mxu0 0
    %579 = vmatpush1.bf16.msra.mxu0 %v470
    %580 = vmatprep.subr.bf16.mxu0 0
    %581 = vmatpush1.bf16.msra.mxu0 %v471
    %582 = vmatprep.subr.bf16.mxu0 0
    %583 = vmatpush1.bf16.msra.mxu0 %v472
    %584 = vmatprep.subr.bf16.mxu0 0
    %585 = vmatpush1.bf16.msra.mxu0 %v473
    %586 = vmatprep.subr.bf16.mxu0 0
    %587 = vmatpush1.bf16.msra.mxu0 %v474
    %588 = vmatprep.subr.bf16.mxu0 0
    %589 = vmatpush1.bf16.msra.mxu0 %v475
    %590 = vmatprep.subr.bf16.mxu0 0
    %591 = vmatpush1.bf16.msra.mxu0 %v476
    %592 = vmatprep.subr.bf16.mxu0 0
    %593 = vmatpush1.bf16.msra.mxu0 %v477
    %594 = vmatprep.subr.bf16.mxu0 0
    %595 = vmatpush1.bf16.msra.mxu0 %v478
    %596 = vmatprep.subr.bf16.mxu0 0
    %597 = vmatpush1.bf16.msra.mxu0 %v479
    %598 = vmatprep.mubr.bf16.mxu0 %v251
    %599 = vmatmul.mubr.bf16.gmra.mrb[0].mxu0 %v237
    %v600 = vpop.f32.mrb[0].mxu0
    %v601 = vadd.f32 %v211, %v600
    %v602 = vpop.f32.mrb[0].mxu0
    %v603 = vpop.f32.mrb[0].mxu0
    %v604 = vpop.f32.mrb[0].mxu0
    %605 = vdwg.mxu0
    %606 = vmatprep.subr.bf16.mxu0 0
    %607 = vmatpush1.bf16.msra.mxu0 %v480
    %608 = vmatprep.subr.bf16.mxu0 0
    %609 = vmatpush1.bf16.msra.mxu0 %v481
    %610 = vmatprep.subr.bf16.mxu0 0
    %611 = vmatpush1.bf16.msra.mxu0 %v482
    %612 = vmatprep.subr.bf16.mxu0 0
    %613 = vmatpush1.bf16.msra.mxu0 %v483
    %614 = vmatprep.subr.bf16.mxu0 0
    %615 = vmatpush1.bf16.msra.mxu0 %v484
    %616 = vmatprep.subr.bf16.mxu0 0
    %617 = vmatpush1.bf16.msra.mxu0 %v485
    %618 = vmatprep.subr.bf16.mxu0 0
    %619 = vmatpush1.bf16.msra.mxu0 %v486
    %620 = vmatprep.subr.bf16.mxu0 0
    %621 = vmatpush1.bf16.msra.mxu0 %v487
    %622 = vmatprep.subr.bf16.mxu0 0
    %623 = vmatpush1.bf16.msra.mxu0 %v488
    %624 = vmatprep.subr.bf16.mxu0 0
    %625 = vmatpush1.bf16.msra.mxu0 %v489
    %626 = vmatprep.subr.bf16.mxu0 0
    %627 = vmatpush1.bf16.msra.mxu0 %v490
    %628 = vmatprep.subr.bf16.mxu0 0
    %629 = vmatpush1.bf16.msra.mxu0 %v491
    %630 = vmatprep.subr.bf16.mxu0 0
    %631 = vmatpush1.bf16.msra.mxu0 %v492
    %632 = vmatprep.subr.bf16.mxu0 0
    %633 = vmatpush1.bf16.msra.mxu0 %v493
    %634 = vmatprep.subr.bf16.mxu0 0
    %635 = vmatpush1.bf16.msra.mxu0 %v494
    %636 = vmatprep.subr.bf16.mxu0 0
    %637 = vmatpush1.bf16.msra.mxu0 %v495
    %638 = vmatprep.mubr.bf16.mxu0 %v261
    %639 = vmatmul.mubr.bf16.gmra.mrb[0].mxu0 %v259
    %v640 = vpop.f32.mrb[0].mxu0
    %v641 = vadd.f32 %v601, %v640
    %v642 = vpop.f32.mrb[0].mxu0
    %v643 = vpop.f32.mrb[0].mxu0
    %v644 = vpop.f32.mrb[0].mxu0
    %645 = vdwg.mxu0
    %646 = vmatprep.subr.bf16.mxu0 0
    %647 = vmatpush1.bf16.msra.mxu0 %v496
    %648 = vmatprep.subr.bf16.mxu0 0
    %649 = vmatpush1.bf16.msra.mxu0 %v497
    %650 = vmatprep.subr.bf16.mxu0 0
    %651 = vmatpush1.bf16.msra.mxu0 %v498
    %652 = vmatprep.subr.bf16.mxu0 0
    %653 = vmatpush1.bf16.msra.mxu0 %v499
    %654 = vmatprep.subr.bf16.mxu0 0
    %655 = vmatpush1.bf16.msra.mxu0 %v500
    %656 = vmatprep.subr.bf16.mxu0 0
    %657 = vmatpush1.bf16.msra.mxu0 %v501
    %658 = vmatprep.subr.bf16.mxu0 0
    %659 = vmatpush1.bf16.msra.mxu0 %v502
    %660 = vmatprep.subr.bf16.mxu0 0
    %661 = vmatpush1.bf16.msra.mxu0 %v503
    %662 = vmatprep.subr.bf16.mxu0 0
    %663 = vmatpush1.bf16.msra.mxu0 %v504
    %664 = vmatprep.subr.bf16.mxu0 0
    %665 = vmatpush1.bf16.msra.mxu0 %v505
    %666 = vmatprep.subr.bf16.mxu0 0
    %667 = vmatpush1.bf16.msra.mxu0 %v506
    %668 = vmatprep.subr.bf16.mxu0 0
    %669 = vmatpush1.bf16.msra.mxu0 %v507
    %670 = vmatprep.subr.bf16.mxu0 0
    %671 = vmatpush1.bf16.msra.mxu0 %v508
    %672 = vmatprep.subr.bf16.mxu0 0
    %673 = vmatpush1.bf16.msra.mxu0 %v509
    %674 = vmatprep.subr.bf16.mxu0 0
    %675 = vmatpush1.bf16.msra.mxu0 %v510
    %676 = vmatprep.subr.bf16.mxu0 0
    %677 = vmatpush1.bf16.msra.mxu0 %v511
    %678 = vmatprep.mubr.bf16.mxu0 %v258
    %679 = vmatmul.mubr.bf16.gmra.mrb[0].mxu0 %v244
    %v680 = vpop.f32.mrb[0].mxu0
    %v681 = vadd.f32 %v641, %v680
    %v682 = vpop.f32.mrb[0].mxu0
    %v683 = vpop.f32.mrb[0].mxu0
    %v684 = vpop.f32.mrb[0].mxu0
    %685 = vdwg.mxu0
    %686 = vmatprep.subr.bf16.mxu0 0
    %687 = vmatpush1.bf16.msra.mxu0 %v512
    %688 = vmatprep.subr.bf16.mxu0 0
    %689 = vmatpush1.bf16.msra.mxu0 0
    %690 = vmatprep.subr.bf16.mxu0 0
    %691 = vmatpush1.bf16.msra.mxu0 0
    %692 = vmatprep.subr.bf16.mxu0 0
    %693 = vmatpush1.bf16.msra.mxu0 0
    %694 = vmatprep.subr.bf16.mxu0 0
    %695 = vmatpush1.bf16.msra.mxu0 0
    %696 = vmatprep.subr.bf16.mxu0 0
    %697 = vmatpush1.bf16.msra.mxu0 0
    %698 = vmatprep.subr.bf16.mxu0 0
    %699 = vmatpush1.bf16.msra.mxu0 0
    %700 = vmatprep.subr.bf16.mxu0 0
    %701 = vmatpush1.bf16.msra.mxu0 0
    %702 = vmatprep.subr.bf16.mxu0 0
    %703 = vmatpush1.bf16.msra.mxu0 0
    %704 = vmatprep.subr.bf16.mxu0 0
    %705 = vmatpush1.bf16.msra.mxu0 0
    %706 = vmatprep.subr.bf16.mxu0 0
    %707 = vmatpush1.bf16.msra.mxu0 0
    %708 = vmatprep.subr.bf16.mxu0 0
    %709 = vmatpush1.bf16.msra.mxu0 0
    %710 = vmatprep.subr.bf16.mxu0 0
    %711 = vmatpush1.bf16.msra.mxu0 0
    %712 = vmatprep.subr.bf16.mxu0 0
    %713 = vmatpush1.bf16.msra.mxu0 0
    %714 = vmatprep.subr.bf16.mxu0 0
    %715 = vmatpush1.bf16.msra.mxu0 0
    %716 = vmatprep.subr.bf16.mxu0 0
    %717 = vmatpush1.bf16.msra.mxu0 0
    %718 = vmatprep.mubr.bf16.mxu0 0
    %719 = vmatmul.mubr.bf16.gmra.mrb[0].mxu0 %v564
    %v720 = vpop.f32.mrb[0].mxu0
    %v721 = vadd.f32 %v681, %v720
    %v722 = vpop.f32.mrb[0].mxu0
    %v723 = vpop.f32.mrb[0].mxu0
    %v724 = vpop.f32.mrb[0].mxu0
    %725 = vdwg.mxu0
    %v726 = vmax.f32 %v721, 0.0
    %v727 = vld [vmem:[%s3] sm:$0xf]
    %v728 = vld [vmem:[%s3 + $0x4] sm:$0xf]
    %v729 = vld [vmem:[%s3 + $0x8] sm:$0xf]
    %v730 = vld [vmem:[%s3 + $0xc] sm:$0xf]
    %v731 = vld [vmem:[%s3 + $0x10] sm:$0xf]
    %v732 = vld [vmem:[%s3 + $0x14] sm:$0xf]
    %v733 = vld [vmem:[%s3 + $0x18] sm:$0xf]
    %v734 = vld [vmem:[%s3 + $0x1c] sm:$0xf]
    %v735 = vld [vmem:[%s3 + $0x20] sm:$0xf]
    %v736 = vld [vmem:[%s3 + $0x24] sm:$0xf]
    %v737 = vld [vmem:[%s3 + $0x28] sm:$0xf]
    %v738 = vld [vmem:[%s3 + $0x2c] sm:$0xf]
    %v739 = vld [vmem:[%s3 + $0x30] sm:$0xf]
    %v740 = vld [vmem:[%s3 + $0x34] sm:$0xf]
    %v741 = vld [vmem:[%s3 + $0x38] sm:$0xf]
    %v742 = vld [vmem:[%s3 + $0x3c] sm:$0xf]
    %v743 = vld [vmem:[%s4] sm:$0x1]
    %v744 = vpack.c.bf16 %v726, %v726
    %v746 = vlaneseq
    %v747 = vshrl.u32 %v746, 7
    %v748 = vsub.s32 0, %v747
    %v749 = vrot.slane %v743, %v748
    %v767 = vunpack.c.l.b16 %v727
    %v768 = vunpack.c.l.b16 %v728
    %v769 = vunpack.c.l.b16 %v729
    %v770 = vunpack.c.l.b16 %v730
    %v771 = vunpack.c.l.b16 %v731
    %v772 = vunpack.c.l.b16 %v732
    %v773 = vunpack.c.l.b16 %v733
    %v774 = vunpack.c.l.b16 %v734
    %v775 = vunpack.c.l.b16 %v735
    %v776 = vunpack.c.l.b16 %v736
    %v777 = vunpack.c.l.b16 %v737
    %v778 = vunpack.c.l.b16 %v738
    %v779 = vunpack.c.l.b16 %v739
    %v780 = vunpack.c.l.b16 %v740
    %v781 = vunpack.c.l.b16 %v741
    %v782 = vunpack.c.l.b16 %v742
    %v783 = vpack.c.b16 %v768, %v767
    %v784 = vpack.c.b16 %v770, %v769
    %v785 = vpack.c.b16 %v772, %v771
    %v786 = vpack.c.b16 %v774, %v773
    %v787 = vpack.c.b16 %v776, %v775
    %v788 = vpack.c.b16 %v778, %v777
    %v789 = vpack.c.b16 %v780, %v779
    %v790 = vpack.c.b16 %v782, %v781
    %799 = vmatprep.subr.bf16.mxu0 0
    %800 = vmatpush1.bf16.msra.mxu0 %v783
    %801 = vmatprep.subr.bf16.mxu0 0
    %802 = vmatpush1.bf16.msra.mxu0 %v784
    %803 = vmatprep.subr.bf16.mxu0 0
    %804 = vmatpush1.bf16.msra.mxu0 %v785
    %805 = vmatprep.subr.bf16.mxu0 0
    %806 = vmatpush1.bf16.msra.mxu0 %v786
    %807 = vmatprep.subr.bf16.mxu0 0
    %808 = vmatpush1.bf16.msra.mxu0 %v787
    %809 = vmatprep.subr.bf16.mxu0 0
    %810 = vmatpush1.bf16.msra.mxu0 %v788
    %811 = vmatprep.subr.bf16.mxu0 0
    %812 = vmatpush1.bf16.msra.mxu0 %v789
    %813 = vmatprep.subr.bf16.mxu0 0
    %814 = vmatpush1.bf16.msra.mxu0 %v790
    %815 = vmatprep.subr.bf16.mxu0 0
    %816 = vmatpush1.bf16.msra.mxu0 0
    %817 = vmatprep.subr.bf16.mxu0 0
    %818 = vmatpush1.bf16.msra.mxu0 0
    %819 = vmatprep.subr.bf16.mxu0 0
    %820 = vmatpush1.bf16.msra.mxu0 0
    %821 = vmatprep.subr.bf16.mxu0 0
    %822 = vmatpush1.bf16.msra.mxu0 0
    %823 = vmatprep.subr.bf16.mxu0 0
    %824 = vmatpush1.bf16.msra.mxu0 0
    %825 = vmatprep.subr.bf16.mxu0 0
    %826 = vmatpush1.bf16.msra.mxu0 0
    %827 = vmatprep.subr.bf16.mxu0 0
    %828 = vmatpush1.bf16.msra.mxu0 0
    %829 = vmatprep.subr.bf16.mxu0 0
    %830 = vmatpush1.bf16.msra.mxu0 0
    %831 = vmatprep.mubr.bf16.mxu0 0
    %832 = vmatmul.mubr.bf16.gmra.mrb[0].mxu0 %v744
    %v833 = vpop.f32.mrb[0].mxu0
    %v834 = vadd.f32 %v749, %v833
    %v835 = vpop.f32.mrb[0].mxu0
    %v836 = vpop.f32.mrb[0].mxu0
    %v837 = vpop.f32.mrb[0].mxu0
    %838 = vdwg.mxu0
    %v839 = vmax.f32 %v834, 0.0
    %v840 = vld [vmem:[%s5] sm:$0xf]
    %v841 = vld [vmem:[%s5 + $0x4] sm:$0xf]
    %v842 = vld [vmem:[%s5 + $0x8] sm:$0xf]
    %v843 = vld [vmem:[%s5 + $0xc] sm:$0xf]
    %v844 = vld [vmem:[%s5 + $0x10] sm:$0xf]
    %v845 = vld [vmem:[%s5 + $0x14] sm:$0xf]
    %v846 = vld [vmem:[%s5 + $0x18] sm:$0xf]
    %v847 = vld [vmem:[%s5 + $0x1c] sm:$0xf]
    %v848 = vld [vmem:[%s5 + $0x20] sm:$0xf]
    %v849 = vld [vmem:[%s5 + $0x24] sm:$0xf]
    %v850 = vld [vmem:[%s5 + $0x28] sm:$0xf]
    %v851 = vld [vmem:[%s5 + $0x2c] sm:$0xf]
    %v852 = vld [vmem:[%s5 + $0x30] sm:$0xf]
    %v853 = vld [vmem:[%s5 + $0x34] sm:$0xf]
    %v854 = vld [vmem:[%s5 + $0x38] sm:$0xf]
    %v855 = vld [vmem:[%s5 + $0x3c] sm:$0xf]
    %v856 = vld [vmem:[%s6] sm:$0x1]
    %v857 = vpack.c.bf16 %v839, %v839
    %v859 = vlaneseq
    %v860 = vshrl.u32 %v859, 7
    %v861 = vsub.s32 0, %v860
    %v862 = vrot.slane %v856, %v861
    %v880 = vunpack.c.l.b16 %v840
    %v881 = vunpack.c.l.b16 %v841
    %v882 = vunpack.c.l.b16 %v842
    %v883 = vunpack.c.l.b16 %v843
    %v884 = vunpack.c.l.b16 %v844
    %v885 = vunpack.c.l.b16 %v845
    %v886 = vunpack.c.l.b16 %v846
    %v887 = vunpack.c.l.b16 %v847
    %v888 = vunpack.c.l.b16 %v848
    %v889 = vunpack.c.l.b16 %v849
    %v890 = vunpack.c.l.b16 %v850
    %v891 = vunpack.c.l.b16 %v851
    %v892 = vunpack.c.l.b16 %v852
    %v893 = vunpack.c.l.b16 %v853
    %v894 = vunpack.c.l.b16 %v854
    %v895 = vunpack.c.l.b16 %v855
    %v896 = vpack.c.b16 %v881, %v880
    %v897 = vpack.c.b16 %v883, %v882
    %v898 = vpack.c.b16 %v885, %v884
    %v899 = vpack.c.b16 %v887, %v886
    %v900 = vpack.c.b16 %v889, %v888
    %v901 = vpack.c.b16 %v891, %v890
    %v902 = vpack.c.b16 %v893, %v892
    %v903 = vpack.c.b16 %v895, %v894
    %912 = vmatprep.subr.bf16.mxu0 0
    %913 = vmatpush1.bf16.msra.mxu0 %v896
    %914 = vmatprep.subr.bf16.mxu0 0
    %915 = vmatpush1.bf16.msra.mxu0 %v897
    %916 = vmatprep.subr.bf16.mxu0 0
    %917 = vmatpush1.bf16.msra.mxu0 %v898
    %918 = vmatprep.subr.bf16.mxu0 0
    %919 = vmatpush1.bf16.msra.mxu0 %v899
    %920 = vmatprep.subr.bf16.mxu0 0
    %921 = vmatpush1.bf16.msra.mxu0 %v900
    %922 = vmatprep.subr.bf16.mxu0 0
    %923 = vmatpush1.bf16.msra.mxu0 %v901
    %924 = vmatprep.subr.bf16.mxu0 0
    %925 = vmatpush1.bf16.msra.mxu0 %v902
    %926 = vmatprep.subr.bf16.mxu0 0
    %927 = vmatpush1.bf16.msra.mxu0 %v903
    %928 = vmatprep.subr.bf16.mxu0 0
    %929 = vmatpush1.bf16.msra.mxu0 0
    %930 = vmatprep.subr.bf16.mxu0 0
    %931 = vmatpush1.bf16.msra.mxu0 0
    %932 = vmatprep.subr.bf16.mxu0 0
    %933 = vmatpush1.bf16.msra.mxu0 0
    %934 = vmatprep.subr.bf16.mxu0 0
    %935 = vmatpush1.bf16.msra.mxu0 0
    %936 = vmatprep.subr.bf16.mxu0 0
    %937 = vmatpush1.bf16.msra.mxu0 0
    %938 = vmatprep.subr.bf16.mxu0 0
    %939 = vmatpush1.bf16.msra.mxu0 0
    %940 = vmatprep.subr.bf16.mxu0 0
    %941 = vmatpush1.bf16.msra.mxu0 0
    %942 = vmatprep.subr.bf16.mxu0 0
    %943 = vmatpush1.bf16.msra.mxu0 0
    %944 = vmatprep.mubr.bf16.mxu0 0
    %945 = vmatmul.mubr.bf16.gmra.mrb[0].mxu0 %v857
    %v946 = vpop.f32.mrb[0].mxu0
    %v947 = vadd.f32 %v862, %v946
    %v948 = vpop.f32.mrb[0].mxu0
    %v949 = vpop.f32.mrb[0].mxu0
    %v950 = vpop.f32.mrb[0].mxu0
    %951 = vdwg.mxu0
    %v952 = vmax.f32 %v947, 0.0
    %v953 = vld [vmem:[%s7] sm:$0xf]
    %v954 = vld [vmem:[%s7 + $0x4] sm:$0xf]
    %v955 = vld [vmem:[%s7 + $0x8] sm:$0xf]
    %v956 = vld [vmem:[%s7 + $0xc] sm:$0xf]
    %v957 = vld [vmem:[%s7 + $0x10] sm:$0xf]
    %v958 = vld [vmem:[%s7 + $0x14] sm:$0xf]
    %v959 = vld [vmem:[%s7 + $0x18] sm:$0xf]
    %v960 = vld [vmem:[%s7 + $0x1c] sm:$0xf]
    %v961 = vld [vmem:[%s7 + $0x20] sm:$0xf]
    %v962 = vld [vmem:[%s7 + $0x24] sm:$0xf]
    %v963 = vld [vmem:[%s7 + $0x28] sm:$0xf]
    %v964 = vld [vmem:[%s7 + $0x2c] sm:$0xf]
    %v965 = vld [vmem:[%s7 + $0x30] sm:$0xf]
    %v966 = vld [vmem:[%s7 + $0x34] sm:$0xf]
    %v967 = vld [vmem:[%s7 + $0x38] sm:$0xf]
    %v968 = vld [vmem:[%s7 + $0x3c] sm:$0xf]
    %v969 = vld [vmem:[%s8] sm:$0x1]
    %v970 = vpack.c.bf16 %v952, %v952
    %v972 = vlaneseq
    %v973 = vshrl.u32 %v972, 7
    %v974 = vsub.s32 0, %v973
    %v975 = vrot.slane %v969, %v974
    %v993 = vunpack.c.l.b16 %v953
    %v994 = vunpack.c.l.b16 %v954
    %v995 = vunpack.c.l.b16 %v955
    %v996 = vunpack.c.l.b16 %v956
    %v997 = vunpack.c.l.b16 %v957
    %v998 = vunpack.c.l.b16 %v958
    %v999 = vunpack.c.l.b16 %v959
    %v1000 = vunpack.c.l.b16 %v960
    %v1001 = vunpack.c.l.b16 %v961
    %v1002 = vunpack.c.l.b16 %v962
    %v1003 = vunpack.c.l.b16 %v963
    %v1004 = vunpack.c.l.b16 %v964
    %v1005 = vunpack.c.l.b16 %v965
    %v1006 = vunpack.c.l.b16 %v966
    %v1007 = vunpack.c.l.b16 %v967
    %v1008 = vunpack.c.l.b16 %v968
    %v1009 = vpack.c.b16 %v994, %v993
    %v1010 = vpack.c.b16 %v996, %v995
    %v1011 = vpack.c.b16 %v998, %v997
    %v1012 = vpack.c.b16 %v1000, %v999
    %v1013 = vpack.c.b16 %v1002, %v1001
    %v1014 = vpack.c.b16 %v1004, %v1003
    %v1015 = vpack.c.b16 %v1006, %v1005
    %v1016 = vpack.c.b16 %v1008, %v1007
    %1025 = vmatprep.subr.bf16.mxu0 0
    %1026 = vmatpush1.bf16.msra.mxu0 %v1009
    %1027 = vmatprep.subr.bf16.mxu0 0
    %1028 = vmatpush1.bf16.msra.mxu0 %v1010
    %1029 = vmatprep.subr.bf16.mxu0 0
    %1030 = vmatpush1.bf16.msra.mxu0 %v1011
    %1031 = vmatprep.subr.bf16.mxu0 0
    %1032 = vmatpush1.bf16.msra.mxu0 %v1012
    %1033 = vmatprep.subr.bf16.mxu0 0
    %1034 = vmatpush1.bf16.msra.mxu0 %v1013
    %1035 = vmatprep.subr.bf16.mxu0 0
    %1036 = vmatpush1.bf16.msra.mxu0 %v1014
    %1037 = vmatprep.subr.bf16.mxu0 0
    %1038 = vmatpush1.bf16.msra.mxu0 %v1015
    %1039 = vmatprep.subr.bf16.mxu0 0
    %1040 = vmatpush1.bf16.msra.mxu0 %v1016
    %1041 = vmatprep.subr.bf16.mxu0 0
    %1042 = vmatpush1.bf16.msra.mxu0 0
    %1043 = vmatprep.subr.bf16.mxu0 0
    %1044 = vmatpush1.bf16.msra.mxu0 0
    %1045 = vmatprep.subr.bf16.mxu0 0
    %1046 = vmatpush1.bf16.msra.mxu0 0
    %1047 = vmatprep.subr.bf16.mxu0 0
    %1048 = vmatpush1.bf16.msra.mxu0 0
    %1049 = vmatprep.subr.bf16.mxu0 0
    %1050 = vmatpush1.bf16.msra.mxu0 0
    %1051 = vmatprep.subr.bf16.mxu0 0
    %1052 = vmatpush1.bf16.msra.mxu0 0
    %1053 = vmatprep.subr.bf16.mxu0 0
    %1054 = vmatpush1.bf16.msra.mxu0 0
    %1055 = vmatprep.subr.bf16.mxu0 0
    %1056 = vmatpush1.bf16.msra.mxu0 0
    %1057 = vmatprep.mubr.bf16.mxu0 0
    %1058 = vmatmul.mubr.bf16.gmra.mrb[0].mxu0 %v970
    %v1059 = vpop.f32.mrb[0].mxu0
    %v1060 = vadd.f32 %v975, %v1059
    %v1061 = vpop.f32.mrb[0].mxu0
    %v1062 = vpop.f32.mrb[0].mxu0
    %v1063 = vpop.f32.mrb[0].mxu0
    %1064 = vdwg.mxu0
    %v1065 = vmax.f32 %v1060, 0.0
    %v1066 = vld [vmem:[%s9] sm:$0xf]
    %v1067 = vld [vmem:[%s9 + $0x4] sm:$0xf]
    %v1068 = vld [vmem:[%s9 + $0x8] sm:$0xf]
    %v1069 = vld [vmem:[%s9 + $0xc] sm:$0xf]
    %v1070 = vld [vmem:[%s9 + $0x10] sm:$0xf]
    %v1071 = vld [vmem:[%s9 + $0x14] sm:$0xf]
    %v1072 = vld [vmem:[%s9 + $0x18] sm:$0xf]
    %v1073 = vld [vmem:[%s9 + $0x1c] sm:$0xf]
    %v1074 = vld [vmem:[%s9 + $0x20] sm:$0xf]
    %v1075 = vld [vmem:[%s9 + $0x24] sm:$0xf]
    %v1076 = vld [vmem:[%s9 + $0x28] sm:$0xf]
    %v1077 = vld [vmem:[%s9 + $0x2c] sm:$0xf]
    %v1078 = vld [vmem:[%s9 + $0x30] sm:$0xf]
    %v1079 = vld [vmem:[%s9 + $0x34] sm:$0xf]
    %v1080 = vld [vmem:[%s9 + $0x38] sm:$0xf]
    %v1081 = vld [vmem:[%s9 + $0x3c] sm:$0xf]
    %v1082 = vld [vmem:[%s10] sm:$0x1]
    %v1083 = vpack.c.bf16 %v1065, %v1065
    %v1085 = vlaneseq
    %v1086 = vshrl.u32 %v1085, 7
    %v1087 = vsub.s32 0, %v1086
    %v1088 = vrot.slane %v1082, %v1087
    %v1106 = vunpack.c.l.b16 %v1066
    %v1107 = vunpack.c.l.b16 %v1067
    %v1108 = vunpack.c.l.b16 %v1068
    %v1109 = vunpack.c.l.b16 %v1069
    %v1110 = vunpack.c.l.b16 %v1070
    %v1111 = vunpack.c.l.b16 %v1071
    %v1112 = vunpack.c.l.b16 %v1072
    %v1113 = vunpack.c.l.b16 %v1073
    %v1114 = vunpack.c.l.b16 %v1074
    %v1115 = vunpack.c.l.b16 %v1075
    %v1116 = vunpack.c.l.b16 %v1076
    %v1117 = vunpack.c.l.b16 %v1077
    %v1118 = vunpack.c.l.b16 %v1078
    %v1119 = vunpack.c.l.b16 %v1079
    %v1120 = vunpack.c.l.b16 %v1080
    %v1121 = vunpack.c.l.b16 %v1081
    %v1122 = vpack.c.b16 %v1107, %v1106
    %v1123 = vpack.c.b16 %v1109, %v1108
    %v1124 = vpack.c.b16 %v1111, %v1110
    %v1125 = vpack.c.b16 %v1113, %v1112
    %v1126 = vpack.c.b16 %v1115, %v1114
    %v1127 = vpack.c.b16 %v1117, %v1116
    %v1128 = vpack.c.b16 %v1119, %v1118
    %v1129 = vpack.c.b16 %v1121, %v1120
    %1138 = vmatprep.subr.bf16.mxu0 0
    %1139 = vmatpush1.bf16.msra.mxu0 %v1122
    %1140 = vmatprep.subr.bf16.mxu0 0
    %1141 = vmatpush1.bf16.msra.mxu0 %v1123
    %1142 = vmatprep.subr.bf16.mxu0 0
    %1143 = vmatpush1.bf16.msra.mxu0 %v1124
    %1144 = vmatprep.subr.bf16.mxu0 0
    %1145 = vmatpush1.bf16.msra.mxu0 %v1125
    %1146 = vmatprep.subr.bf16.mxu0 0
    %1147 = vmatpush1.bf16.msra.mxu0 %v1126
    %1148 = vmatprep.subr.bf16.mxu0 0
    %1149 = vmatpush1.bf16.msra.mxu0 %v1127
    %1150 = vmatprep.subr.bf16.mxu0 0
    %1151 = vmatpush1.bf16.msra.mxu0 %v1128
    %1152 = vmatprep.subr.bf16.mxu0 0
    %1153 = vmatpush1.bf16.msra.mxu0 %v1129
    %1154 = vmatprep.subr.bf16.mxu0 0
    %1155 = vmatpush1.bf16.msra.mxu0 0
    %1156 = vmatprep.subr.bf16.mxu0 0
    %1157 = vmatpush1.bf16.msra.mxu0 0
    %1158 = vmatprep.subr.bf16.mxu0 0
    %1159 = vmatpush1.bf16.msra.mxu0 0
    %1160 = vmatprep.subr.bf16.mxu0 0
    %1161 = vmatpush1.bf16.msra.mxu0 0
    %1162 = vmatprep.subr.bf16.mxu0 0
    %1163 = vmatpush1.bf16.msra.mxu0 0
    %1164 = vmatprep.subr.bf16.mxu0 0
    %1165 = vmatpush1.bf16.msra.mxu0 0
    %1166 = vmatprep.subr.bf16.mxu0 0
    %1167 = vmatpush1.bf16.msra.mxu0 0
    %1168 = vmatprep.subr.bf16.mxu0 0
    %1169 = vmatpush1.bf16.msra.mxu0 0
    %1170 = vmatprep.mubr.bf16.mxu0 0
    %1171 = vmatmul.mubr.bf16.gmra.mrb[0].mxu0 %v1083
    %v1172 = vpop.f32.mrb[0].mxu0
    %v1173 = vadd.f32 %v1088, %v1172
    %v1174 = vpop.f32.mrb[0].mxu0
    %v1175 = vpop.f32.mrb[0].mxu0
    %v1176 = vpop.f32.mrb[0].mxu0
    %1177 = vdwg.mxu0
    %v1178 = vld [vmem:[%s11] sm:$0xf]
    %v1179 = vld [vmem:[%s11 + $0x4] sm:$0xf]
    %v1180 = vld [vmem:[%s11 + $0x8] sm:$0xf]
    %v1181 = vld [vmem:[%s11 + $0xc] sm:$0xf]
    %v1182 = vld [vmem:[%s11 + $0x10] sm:$0xf]
    %v1183 = vld [vmem:[%s11 + $0x14] sm:$0xf]
    %v1184 = vld [vmem:[%s11 + $0x18] sm:$0xf]
    %v1185 = vld [vmem:[%s11 + $0x1c] sm:$0xf]
    %v1186 = vld [vmem:[%s11 + $0x20] sm:$0xf]
    %v1187 = vld [vmem:[%s11 + $0x24] sm:$0xf]
    %v1188 = vld [vmem:[%s11 + $0x28] sm:$0xf]
    %v1189 = vld [vmem:[%s11 + $0x2c] sm:$0xf]
    %v1190 = vld [vmem:[%s11 + $0x30] sm:$0xf]
    %v1191 = vld [vmem:[%s11 + $0x34] sm:$0xf]
    %v1192 = vld [vmem:[%s11 + $0x38] sm:$0xf]
    %v1193 = vld [vmem:[%s11 + $0x3c] sm:$0xf]
    %v1194 = vld [vmem:[%s12] sm:$0x1]
    %v1195 = vpack.c.bf16 %v1173, %v1173
    %v1197 = vlaneseq
    %v1198 = vshrl.u32 %v1197, 7
    %v1199 = vsub.s32 0, %v1198
    %v1200 = vrot.slane %v1194, %v1199
    %v1218 = vunpack.c.l.b16 %v1178
    %v1219 = vunpack.c.l.b16 %v1179
    %v1220 = vunpack.c.l.b16 %v1180
    %v1221 = vunpack.c.l.b16 %v1181
    %v1222 = vunpack.c.l.b16 %v1182
    %v1223 = vunpack.c.l.b16 %v1183
    %v1224 = vunpack.c.l.b16 %v1184
    %v1225 = vunpack.c.l.b16 %v1185
    %v1226 = vunpack.c.l.b16 %v1186
    %v1227 = vunpack.c.l.b16 %v1187
    %v1228 = vunpack.c.l.b16 %v1188
    %v1229 = vunpack.c.l.b16 %v1189
    %v1230 = vunpack.c.l.b16 %v1190
    %v1231 = vunpack.c.l.b16 %v1191
    %v1232 = vunpack.c.l.b16 %v1192
    %v1233 = vunpack.c.l.b16 %v1193
    %v1234 = vpack.c.b16 %v1219, %v1218
    %v1235 = vpack.c.b16 %v1221, %v1220
    %v1236 = vpack.c.b16 %v1223, %v1222
    %v1237 = vpack.c.b16 %v1225, %v1224
    %v1238 = vpack.c.b16 %v1227, %v1226
    %v1239 = vpack.c.b16 %v1229, %v1228
    %v1240 = vpack.c.b16 %v1231, %v1230
    %v1241 = vpack.c.b16 %v1233, %v1232
    %1250 = vmatprep.subr.bf16.mxu0 0
    %1251 = vmatpush1.bf16.msra.mxu0 %v1234
    %1252 = vmatprep.subr.bf16.mxu0 0
    %1253 = vmatpush1.bf16.msra.mxu0 %v1235
    %1254 = vmatprep.subr.bf16.mxu0 0
    %1255 = vmatpush1.bf16.msra.mxu0 %v1236
    %1256 = vmatprep.subr.bf16.mxu0 0
    %1257 = vmatpush1.bf16.msra.mxu0 %v1237
    %1258 = vmatprep.subr.bf16.mxu0 0
    %1259 = vmatpush1.bf16.msra.mxu0 %v1238
    %1260 = vmatprep.subr.bf16.mxu0 0
    %1261 = vmatpush1.bf16.msra.mxu0 %v1239
    %1262 = vmatprep.subr.bf16.mxu0 0
    %1263 = vmatpush1.bf16.msra.mxu0 %v1240
    %1264 = vmatprep.subr.bf16.mxu0 0
    %1265 = vmatpush1.bf16.msra.mxu0 %v1241
    %1266 = vmatprep.subr.bf16.mxu0 0
    %1267 = vmatpush1.bf16.msra.mxu0 0
    %1268 = vmatprep.subr.bf16.mxu0 0
    %1269 = vmatpush1.bf16.msra.mxu0 0
    %1270 = vmatprep.subr.bf16.mxu0 0
    %1271 = vmatpush1.bf16.msra.mxu0 0
    %1272 = vmatprep.subr.bf16.mxu0 0
    %1273 = vmatpush1.bf16.msra.mxu0 0
    %1274 = vmatprep.subr.bf16.mxu0 0
    %1275 = vmatpush1.bf16.msra.mxu0 0
    %1276 = vmatprep.subr.bf16.mxu0 0
    %1277 = vmatpush1.bf16.msra.mxu0 0
    %1278 = vmatprep.subr.bf16.mxu0 0
    %1279 = vmatpush1.bf16.msra.mxu0 0
    %1280 = vmatprep.subr.bf16.mxu0 0
    %1281 = vmatpush1.bf16.msra.mxu0 0
    %1282 = vmatprep.mubr.bf16.mxu0 0
    %1283 = vmatmul.mubr.bf16.gmra.mrb[0].mxu0 %v1195
    %v1284 = vpop.f32.mrb[0].mxu0
    %v1285 = vadd.f32 %v1200, %v1284
    %v1286 = vpop.f32.mrb[0].mxu0
    %v1287 = vpop.f32.mrb[0].mxu0
    %v1288 = vpop.f32.mrb[0].mxu0
    %1289 = vdwg.mxu0
    %v1290 = vmax.f32 %v1285, 0.0
    %v1291 = vld [vmem:[%s13] sm:$0xf]
    %v1292 = vld [vmem:[%s13 + $0x4] sm:$0xf]
    %v1293 = vld [vmem:[%s13 + $0x8] sm:$0xf]
    %v1294 = vld [vmem:[%s13 + $0xc] sm:$0xf]
    %v1295 = vld [vmem:[%s13 + $0x10] sm:$0xf]
    %v1296 = vld [vmem:[%s13 + $0x14] sm:$0xf]
    %v1297 = vld [vmem:[%s13 + $0x18] sm:$0xf]
    %v1298 = vld [vmem:[%s13 + $0x1c] sm:$0xf]
    %v1299 = vld [vmem:[%s13 + $0x20] sm:$0xf]
    %v1300 = vld [vmem:[%s13 + $0x24] sm:$0xf]
    %v1301 = vld [vmem:[%s13 + $0x28] sm:$0xf]
    %v1302 = vld [vmem:[%s13 + $0x2c] sm:$0xf]
    %v1303 = vld [vmem:[%s13 + $0x30] sm:$0xf]
    %v1304 = vld [vmem:[%s13 + $0x34] sm:$0xf]
    %v1305 = vld [vmem:[%s13 + $0x38] sm:$0xf]
    %v1306 = vld [vmem:[%s13 + $0x3c] sm:$0xf]
    %v1307 = vld [vmem:[%s14] sm:$0x1]
    %v1308 = vpack.c.bf16 %v1290, %v1290
    %v1310 = vlaneseq
    %v1311 = vshrl.u32 %v1310, 7
    %v1312 = vsub.s32 0, %v1311
    %v1313 = vrot.slane %v1307, %v1312
    %v1331 = vunpack.c.l.b16 %v1291
    %v1332 = vunpack.c.l.b16 %v1292
    %v1333 = vunpack.c.l.b16 %v1293
    %v1334 = vunpack.c.l.b16 %v1294
    %v1335 = vunpack.c.l.b16 %v1295
    %v1336 = vunpack.c.l.b16 %v1296
    %v1337 = vunpack.c.l.b16 %v1297
    %v1338 = vunpack.c.l.b16 %v1298
    %v1339 = vunpack.c.l.b16 %v1299
    %v1340 = vunpack.c.l.b16 %v1300
    %v1341 = vunpack.c.l.b16 %v1301
    %v1342 = vunpack.c.l.b16 %v1302
    %v1343 = vunpack.c.l.b16 %v1303
    %v1344 = vunpack.c.l.b16 %v1304
    %v1345 = vunpack.c.l.b16 %v1305
    %v1346 = vunpack.c.l.b16 %v1306
    %v1347 = vpack.c.b16 %v1332, %v1331
    %v1348 = vpack.c.b16 %v1334, %v1333
    %v1349 = vpack.c.b16 %v1336, %v1335
    %v1350 = vpack.c.b16 %v1338, %v1337
    %v1351 = vpack.c.b16 %v1340, %v1339
    %v1352 = vpack.c.b16 %v1342, %v1341
    %v1353 = vpack.c.b16 %v1344, %v1343
    %v1354 = vpack.c.b16 %v1346, %v1345
    %1363 = vmatprep.subr.bf16.mxu0 0
    %1364 = vmatpush1.bf16.msra.mxu0 %v1347
    %1365 = vmatprep.subr.bf16.mxu0 0
    %1366 = vmatpush1.bf16.msra.mxu0 %v1348
    %1367 = vmatprep.subr.bf16.mxu0 0
    %1368 = vmatpush1.bf16.msra.mxu0 %v1349
    %1369 = vmatprep.subr.bf16.mxu0 0
    %1370 = vmatpush1.bf16.msra.mxu0 %v1350
    %1371 = vmatprep.subr.bf16.mxu0 0
    %1372 = vmatpush1.bf16.msra.mxu0 %v1351
    %1373 = vmatprep.subr.bf16.mxu0 0
    %1374 = vmatpush1.bf16.msra.mxu0 %v1352
    %1375 = vmatprep.subr.bf16.mxu0 0
    %1376 = vmatpush1.bf16.msra.mxu0 %v1353
    %1377 = vmatprep.subr.bf16.mxu0 0
    %1378 = vmatpush1.bf16.msra.mxu0 %v1354
    %1379 = vmatprep.subr.bf16.mxu0 0
    %1380 = vmatpush1.bf16.msra.mxu0 0
    %1381 = vmatprep.subr.bf16.mxu0 0
    %1382 = vmatpush1.bf16.msra.mxu0 0
    %1383 = vmatprep.subr.bf16.mxu0 0
    %1384 = vmatpush1.bf16.msra.mxu0 0
    %1385 = vmatprep.subr.bf16.mxu0 0
    %1386 = vmatpush1.bf16.msra.mxu0 0
    %1387 = vmatprep.subr.bf16.mxu0 0
    %1388 = vmatpush1.bf16.msra.mxu0 0
    %1389 = vmatprep.subr.bf16.mxu0 0
    %1390 = vmatpush1.bf16.msra.mxu0 0
    %1391 = vmatprep.subr.bf16.mxu0 0
    %1392 = vmatpush1.bf16.msra.mxu0 0
    %1393 = vmatprep.subr.bf16.mxu0 0
    %1394 = vmatpush1.bf16.msra.mxu0 0
    %1395 = vmatprep.mubr.bf16.mxu0 0
    %1396 = vmatmul.mubr.bf16.gmra.mrb[0].mxu0 %v1308
    %v1397 = vpop.f32.mrb[0].mxu0
    %v1398 = vadd.f32 %v1313, %v1397
    %v1399 = vpop.f32.mrb[0].mxu0
    %v1400 = vpop.f32.mrb[0].mxu0
    %v1401 = vpop.f32.mrb[0].mxu0
    %1402 = vdwg.mxu0
    %v1403 = vmax.f32 %v1398, 0.0
    %v1404 = vld [vmem:[%s15] sm:$0xf]
    %v1405 = vld [vmem:[%s15 + $0x4] sm:$0xf]
    %v1406 = vld [vmem:[%s15 + $0x8] sm:$0xf]
    %v1407 = vld [vmem:[%s15 + $0xc] sm:$0xf]
    %v1408 = vld [vmem:[%s15 + $0x10] sm:$0xf]
    %v1409 = vld [vmem:[%s15 + $0x14] sm:$0xf]
    %v1410 = vld [vmem:[%s15 + $0x18] sm:$0xf]
    %v1411 = vld [vmem:[%s15 + $0x1c] sm:$0xf]
    %v1412 = vld [vmem:[%s15 + $0x20] sm:$0xf]
    %v1413 = vld [vmem:[%s15 + $0x24] sm:$0xf]
    %v1414 = vld [vmem:[%s15 + $0x28] sm:$0xf]
    %v1415 = vld [vmem:[%s15 + $0x2c] sm:$0xf]
    %v1416 = vld [vmem:[%s15 + $0x30] sm:$0xf]
    %v1417 = vld [vmem:[%s15 + $0x34] sm:$0xf]
    %v1418 = vld [vmem:[%s15 + $0x38] sm:$0xf]
    %v1419 = vld [vmem:[%s15 + $0x3c] sm:$0xf]
    %v1420 = vld [vmem:[%s16] sm:$0x1]
    %v1421 = vpack.c.bf16 %v1403, %v1403
    %v1423 = vlaneseq
    %v1424 = vshrl.u32 %v1423, 7
    %v1425 = vsub.s32 0, %v1424
    %v1426 = vrot.slane %v1420, %v1425
    %v1444 = vunpack.c.l.b16 %v1404
    %v1445 = vunpack.c.l.b16 %v1405
    %v1446 = vunpack.c.l.b16 %v1406
    %v1447 = vunpack.c.l.b16 %v1407
    %v1448 = vunpack.c.l.b16 %v1408
    %v1449 = vunpack.c.l.b16 %v1409
    %v1450 = vunpack.c.l.b16 %v1410
    %v1451 = vunpack.c.l.b16 %v1411
    %v1452 = vunpack.c.l.b16 %v1412
    %v1453 = vunpack.c.l.b16 %v1413
    %v1454 = vunpack.c.l.b16 %v1414
    %v1455 = vunpack.c.l.b16 %v1415
    %v1456 = vunpack.c.l.b16 %v1416
    %v1457 = vunpack.c.l.b16 %v1417
    %v1458 = vunpack.c.l.b16 %v1418
    %v1459 = vunpack.c.l.b16 %v1419
    %v1460 = vpack.c.b16 %v1445, %v1444
    %v1461 = vpack.c.b16 %v1447, %v1446
    %v1462 = vpack.c.b16 %v1449, %v1448
    %v1463 = vpack.c.b16 %v1451, %v1450
    %v1464 = vpack.c.b16 %v1453, %v1452
    %v1465 = vpack.c.b16 %v1455, %v1454
    %v1466 = vpack.c.b16 %v1457, %v1456
    %v1467 = vpack.c.b16 %v1459, %v1458
    %1476 = vmatprep.subr.bf16.mxu0 0
    %1477 = vmatpush1.bf16.msra.mxu0 %v1460
    %1478 = vmatprep.subr.bf16.mxu0 0
    %1479 = vmatpush1.bf16.msra.mxu0 %v1461
    %1480 = vmatprep.subr.bf16.mxu0 0
    %1481 = vmatpush1.bf16.msra.mxu0 %v1462
    %1482 = vmatprep.subr.bf16.mxu0 0
    %1483 = vmatpush1.bf16.msra.mxu0 %v1463
    %1484 = vmatprep.subr.bf16.mxu0 0
    %1485 = vmatpush1.bf16.msra.mxu0 %v1464
    %1486 = vmatprep.subr.bf16.mxu0 0
    %1487 = vmatpush1.bf16.msra.mxu0 %v1465
    %1488 = vmatprep.subr.bf16.mxu0 0
    %1489 = vmatpush1.bf16.msra.mxu0 %v1466
    %1490 = vmatprep.subr.bf16.mxu0 0
    %1491 = vmatpush1.bf16.msra.mxu0 %v1467
    %1492 = vmatprep.subr.bf16.mxu0 0
    %1493 = vmatpush1.bf16.msra.mxu0 0
    %1494 = vmatprep.subr.bf16.mxu0 0
    %1495 = vmatpush1.bf16.msra.mxu0 0
    %1496 = vmatprep.subr.bf16.mxu0 0
    %1497 = vmatpush1.bf16.msra.mxu0 0
    %1498 = vmatprep.subr.bf16.mxu0 0
    %1499 = vmatpush1.bf16.msra.mxu0 0
    %1500 = vmatprep.subr.bf16.mxu0 0
    %1501 = vmatpush1.bf16.msra.mxu0 0
    %1502 = vmatprep.subr.bf16.mxu0 0
    %1503 = vmatpush1.bf16.msra.mxu0 0
    %1504 = vmatprep.subr.bf16.mxu0 0
    %1505 = vmatpush1.bf16.msra.mxu0 0
    %1506 = vmatprep.subr.bf16.mxu0 0
    %1507 = vmatpush1.bf16.msra.mxu0 0
    %1508 = vmatprep.mubr.bf16.mxu0 0
    %1509 = vmatmul.mubr.bf16.gmra.mrb[0].mxu0 %v1421
    %v1510 = vpop.f32.mrb[0].mxu0
    %v1511 = vadd.f32 %v1426, %v1510
    %v1512 = vpop.f32.mrb[0].mxu0
    %v1513 = vpop.f32.mrb[0].mxu0
    %v1514 = vpop.f32.mrb[0].mxu0
    %1515 = vdwg.mxu0
    %v1516 = vmax.f32 %v1511, 0.0
    %v1517 = vld [vmem:[#allocation7] sm:$0xf]
    %v1518 = vld [vmem:[#allocation7 + $0x4] sm:$0xf]
    %v1519 = vld [vmem:[#allocation7 + $0x8] sm:$0xf]
    %v1520 = vld [vmem:[#allocation7 + $0xc] sm:$0xf]
    %v1521 = vld [vmem:[#allocation7 + $0x10] sm:$0xf]
    %v1522 = vld [vmem:[#allocation7 + $0x14] sm:$0xf]
    %v1523 = vld [vmem:[#allocation7 + $0x18] sm:$0xf]
    %v1524 = vld [vmem:[#allocation7 + $0x1c] sm:$0xf]
    %v1525 = vld [vmem:[#allocation7 + $0x20] sm:$0xf]
    %v1526 = vld [vmem:[#allocation7 + $0x24] sm:$0xf]
    %v1527 = vld [vmem:[#allocation7 + $0x28] sm:$0xf]
    %v1528 = vld [vmem:[#allocation7 + $0x2c] sm:$0xf]
    %v1529 = vld [vmem:[#allocation7 + $0x30] sm:$0xf]
    %v1530 = vld [vmem:[#allocation7 + $0x34] sm:$0xf]
    %v1531 = vld [vmem:[#allocation7 + $0x38] sm:$0xf]
    %v1532 = vld [vmem:[#allocation7 + $0x3c] sm:$0xf]
    %v1533 = vld [vmem:[%s18] sm:$0x1]
    %v1534 = vpack.c.bf16 %v1516, %v1516
    %v1536 = vlaneseq
    %v1537 = vshrl.u32 %v1536, 7
    %v1538 = vsub.s32 0, %v1537
    %v1539 = vrot.slane %v1533, %v1538
    %v1557 = vunpack.c.l.b16 %v1517
    %v1558 = vunpack.c.l.b16 %v1518
    %v1559 = vunpack.c.l.b16 %v1519
    %v1560 = vunpack.c.l.b16 %v1520
    %v1561 = vunpack.c.l.b16 %v1521
    %v1562 = vunpack.c.l.b16 %v1522
    %v1563 = vunpack.c.l.b16 %v1523
    %v1564 = vunpack.c.l.b16 %v1524
    %v1565 = vunpack.c.l.b16 %v1525
    %v1566 = vunpack.c.l.b16 %v1526
    %v1567 = vunpack.c.l.b16 %v1527
    %v1568 = vunpack.c.l.b16 %v1528
    %v1569 = vunpack.c.l.b16 %v1529
    %v1570 = vunpack.c.l.b16 %v1530
    %v1571 = vunpack.c.l.b16 %v1531
    %v1572 = vunpack.c.l.b16 %v1532
    %v1573 = vpack.c.b16 %v1558, %v1557
    %v1574 = vpack.c.b16 %v1560, %v1559
    %v1575 = vpack.c.b16 %v1562, %v1561
    %v1576 = vpack.c.b16 %v1564, %v1563
    %v1577 = vpack.c.b16 %v1566, %v1565
    %v1578 = vpack.c.b16 %v1568, %v1567
    %v1579 = vpack.c.b16 %v1570, %v1569
    %v1580 = vpack.c.b16 %v1572, %v1571
    %1589 = vmatprep.subr.bf16.mxu0 0
    %1590 = vmatpush1.bf16.msra.mxu0 %v1573
    %1591 = vmatprep.subr.bf16.mxu0 0
    %1592 = vmatpush1.bf16.msra.mxu0 %v1574
    %1593 = vmatprep.subr.bf16.mxu0 0
    %1594 = vmatpush1.bf16.msra.mxu0 %v1575
    %1595 = vmatprep.subr.bf16.mxu0 0
    %1596 = vmatpush1.bf16.msra.mxu0 %v1576
    %1597 = vmatprep.subr.bf16.mxu0 0
    %1598 = vmatpush1.bf16.msra.mxu0 %v1577
    %1599 = vmatprep.subr.bf16.mxu0 0
    %1600 = vmatpush1.bf16.msra.mxu0 %v1578
    %1601 = vmatprep.subr.bf16.mxu0 0
    %1602 = vmatpush1.bf16.msra.mxu0 %v1579
    %1603 = vmatprep.subr.bf16.mxu0 0
    %1604 = vmatpush1.bf16.msra.mxu0 %v1580
    %1605 = vmatprep.subr.bf16.mxu0 0
    %1606 = vmatpush1.bf16.msra.mxu0 0
    %1607 = vmatprep.subr.bf16.mxu0 0
    %1608 = vmatpush1.bf16.msra.mxu0 0
    %1609 = vmatprep.subr.bf16.mxu0 0
    %1610 = vmatpush1.bf16.msra.mxu0 0
    %1611 = vmatprep.subr.bf16.mxu0 0
    %1612 = vmatpush1.bf16.msra.mxu0 0
    %1613 = vmatprep.subr.bf16.mxu0 0
    %1614 = vmatpush1.bf16.msra.mxu0 0
    %1615 = vmatprep.subr.bf16.mxu0 0
    %1616 = vmatpush1.bf16.msra.mxu0 0
    %1617 = vmatprep.subr.bf16.mxu0 0
    %1618 = vmatpush1.bf16.msra.mxu0 0
    %1619 = vmatprep.subr.bf16.mxu0 0
    %1620 = vmatpush1.bf16.msra.mxu0 0
    %1621 = vmatprep.mubr.bf16.mxu0 0
    %1622 = vmatmul.mubr.bf16.gmra.mrb[0].mxu0 %v1534
    %v1623 = vpop.f32.mrb[0].mxu0
    %v1624 = vadd.f32 %v1539, %v1623
    %v1625 = vpop.f32.mrb[0].mxu0
    %v1626 = vpop.f32.mrb[0].mxu0
    %v1627 = vpop.f32.mrb[0].mxu0
    %1628 = vdwg.mxu0
    %v1629 = vmax.f32 %v1624, 0.0
    %v1630 = vld [vmem:[%s19] sm:$0xff]
    %v1631 = vld [vmem:[%s19 + $0x8] sm:$0xff]
    %v1632 = vld [vmem:[%s19 + $0x10] sm:$0xff]
    %v1633 = vld [vmem:[%s19 + $0x18] sm:$0xf]
    %v1634 = vld [vmem:[%s19 + $0x1c] sm:$0xff]
    %v1635 = vld [vmem:[%s19 + $0x24] sm:$0xff]
    %v1636 = vld [vmem:[%s19 + $0x2c] sm:$0xff]
    %v1637 = vld [vmem:[%s19 + $0x34] sm:$0xf]
    %v1638 = vld [vmem:[%s19 + $0x38] sm:$0xff]
    %v1639 = vld [vmem:[%s19 + $0x40] sm:$0xff]
    %v1640 = vld [vmem:[%s19 + $0x48] sm:$0xff]
    %v1641 = vld [vmem:[%s19 + $0x50] sm:$0xf]
    %v1642 = vld [vmem:[%s19 + $0x54] sm:$0xff]
    %v1643 = vld [vmem:[%s19 + $0x5c] sm:$0xff]
    %v1644 = vld [vmem:[%s19 + $0x64] sm:$0xff]
    %v1645 = vld [vmem:[%s19 + $0x6c] sm:$0xf]
    %v1646 = vld [vmem:[%s19 + $0x70] sm:$0xff]
    %v1647 = vld [vmem:[%s19 + $0x78] sm:$0xff]
    %v1648 = vld [vmem:[%s19 + $0x80] sm:$0xff]
    %v1649 = vld [vmem:[%s19 + $0x88] sm:$0xf]
    %v1650 = vld [vmem:[%s19 + $0x8c] sm:$0xff]
    %v1651 = vld [vmem:[%s19 + $0x94] sm:$0xff]
    %v1652 = vld [vmem:[%s19 + $0x9c] sm:$0xff]
    %v1653 = vld [vmem:[%s19 + $0xa4] sm:$0xf]
    %v1654 = vld [vmem:[%s19 + $0xa8] sm:$0xff]
    %v1655 = vld [vmem:[%s19 + $0xb0] sm:$0xff]
    %v1656 = vld [vmem:[%s19 + $0xb8] sm:$0xff]
    %v1657 = vld [vmem:[%s19 + $0xc0] sm:$0xf]
    %v1658 = vld [vmem:[%s19 + $0xc4] sm:$0xff]
    %v1659 = vld [vmem:[%s19 + $0xcc] sm:$0xff]
    %v1660 = vld [vmem:[%s19 + $0xd4] sm:$0xff]
    %v1661 = vld [vmem:[%s19 + $0xdc] sm:$0xf]
    %v1662 = vld [vmem:[%s19 + $0xe0] sm:$0xff]
    %v1663 = vld [vmem:[%s19 + $0xe8] sm:$0xff]
    %v1664 = vld [vmem:[%s19 + $0xf0] sm:$0xff]
    %v1665 = vld [vmem:[%s19 + $0xf8] sm:$0xf]
    %v1666 = vld [vmem:[%s19 + $0xfc] sm:$0xff]
    %v1667 = vld [vmem:[%s19 + $0x104] sm:$0xff]
    %v1668 = vld [vmem:[%s19 + $0x10c] sm:$0xff]
    %v1669 = vld [vmem:[%s19 + $0x114] sm:$0xf]
    %v1670 = vld [vmem:[%s19 + $0x118] sm:$0xff]
    %v1671 = vld [vmem:[%s19 + $0x120] sm:$0xff]
    %v1672 = vld [vmem:[%s19 + $0x128] sm:$0xff]
    %v1673 = vld [vmem:[%s19 + $0x130] sm:$0xf]
    %v1674 = vld [vmem:[%s19 + $0x134] sm:$0xff]
    %v1675 = vld [vmem:[%s19 + $0x13c] sm:$0xff]
    %v1676 = vld [vmem:[%s19 + $0x144] sm:$0xff]
    %v1677 = vld [vmem:[%s19 + $0x14c] sm:$0xf]
    %v1678 = vld [vmem:[%s19 + $0x150] sm:$0xff]
    %v1679 = vld [vmem:[%s19 + $0x158] sm:$0xff]
    %v1680 = vld [vmem:[%s19 + $0x160] sm:$0xff]
    %v1681 = vld [vmem:[%s19 + $0x168] sm:$0xf]
    %v1682 = vld [vmem:[%s19 + $0x16c] sm:$0xff]
    %v1683 = vld [vmem:[%s19 + $0x174] sm:$0xff]
    %v1684 = vld [vmem:[%s19 + $0x17c] sm:$0xff]
    %v1685 = vld [vmem:[%s19 + $0x184] sm:$0xf]
    %v1686 = vld [vmem:[%s19 + $0x188] sm:$0xff]
    %v1687 = vld [vmem:[%s19 + $0x190] sm:$0xff]
    %v1688 = vld [vmem:[%s19 + $0x198] sm:$0xff]
    %v1689 = vld [vmem:[%s19 + $0x1a0] sm:$0xf]
    %v1690 = vld [vmem:[%s19 + $0x1a4] sm:$0xff]
    %v1691 = vld [vmem:[%s19 + $0x1ac] sm:$0xff]
    %v1692 = vld [vmem:[%s19 + $0x1b4] sm:$0xff]
    %v1693 = vld [vmem:[%s19 + $0x1bc] sm:$0xf]
    %v1694 = vld [vmem:[%s20] sm:$0x7f]
    %v1695 = vpack.c.bf16 %v1629, %v1629
    %v1697 = vlaneseq
    %v1698 = vshrl.u32 %v1697, 7
    %v1699 = vsub.s32 0, %v1698
    %v1700 = vrot.slane %v1694, %v1699
    %v1701 = vlaneseq
    %v1702 = vshrl.u32 %v1701, 7
    %v1703 = vsub.s32 1, %v1702
    %v1704 = vrot.slane %v1694, %v1703
    %v1705 = vlaneseq
    %v1706 = vshrl.u32 %v1705, 7
    %v1707 = vsub.s32 2, %v1706
    %v1708 = vrot.slane %v1694, %v1707
    %v1709 = vlaneseq
    %v1710 = vshrl.u32 %v1709, 7
    %v1711 = vsub.s32 3, %v1710
    %v1712 = vrot.slane %v1694, %v1711
    %v1713 = vlaneseq
    %v1714 = vshrl.u32 %v1713, 7
    %v1715 = vsub.s32 4, %v1714
    %v1716 = vrot.slane %v1694, %v1715
    %v1717 = vlaneseq
    %v1718 = vshrl.u32 %v1717, 7
    %v1719 = vsub.s32 5, %v1718
    %v1720 = vrot.slane %v1694, %v1719
    %v1721 = vlaneseq
    %v1722 = vshrl.u32 %v1721, 7
    %v1723 = vsub.s32 6, %v1722
    %v1724 = vrot.slane %v1694, %v1723
    %v1796 = vunpack.c.l.b16 %v1630
    %v1797 = vunpack.c.h.b16 %v1630
    %v1798 = vunpack.c.l.b16 %v1631
    %v1799 = vunpack.c.h.b16 %v1631
    %v1800 = vunpack.c.l.b16 %v1632
    %v1801 = vunpack.c.h.b16 %v1632
    %v1802 = vunpack.c.l.b16 %v1633
    %v1803 = vunpack.c.l.b16 %v1634
    %v1804 = vunpack.c.h.b16 %v1634
    %v1805 = vunpack.c.l.b16 %v1635
    %v1806 = vunpack.c.h.b16 %v1635
    %v1807 = vunpack.c.l.b16 %v1636
    %v1808 = vunpack.c.h.b16 %v1636
    %v1809 = vunpack.c.l.b16 %v1637
    %v1810 = vunpack.c.l.b16 %v1638
    %v1811 = vunpack.c.h.b16 %v1638
    %v1812 = vunpack.c.l.b16 %v1639
    %v1813 = vunpack.c.h.b16 %v1639
    %v1814 = vunpack.c.l.b16 %v1640
    %v1815 = vunpack.c.h.b16 %v1640
    %v1816 = vunpack.c.l.b16 %v1641
    %v1817 = vunpack.c.l.b16 %v1642
    %v1818 = vunpack.c.h.b16 %v1642
    %v1819 = vunpack.c.l.b16 %v1643
    %v1820 = vunpack.c.h.b16 %v1643
    %v1821 = vunpack.c.l.b16 %v1644
    %v1822 = vunpack.c.h.b16 %v1644
    %v1823 = vunpack.c.l.b16 %v1645
    %v1824 = vunpack.c.l.b16 %v1646
    %v1825 = vunpack.c.h.b16 %v1646
    %v1826 = vunpack.c.l.b16 %v1647
    %v1827 = vunpack.c.h.b16 %v1647
    %v1828 = vunpack.c.l.b16 %v1648
    %v1829 = vunpack.c.h.b16 %v1648
    %v1830 = vunpack.c.l.b16 %v1649
    %v1831 = vunpack.c.l.b16 %v1650
    %v1832 = vunpack.c.h.b16 %v1650
    %v1833 = vunpack.c.l.b16 %v1651
    %v1834 = vunpack.c.h.b16 %v1651
    %v1835 = vunpack.c.l.b16 %v1652
    %v1836 = vunpack.c.h.b16 %v1652
    %v1837 = vunpack.c.l.b16 %v1653
    %v1838 = vunpack.c.l.b16 %v1654
    %v1839 = vunpack.c.h.b16 %v1654
    %v1840 = vunpack.c.l.b16 %v1655
    %v1841 = vunpack.c.h.b16 %v1655
    %v1842 = vunpack.c.l.b16 %v1656
    %v1843 = vunpack.c.h.b16 %v1656
    %v1844 = vunpack.c.l.b16 %v1657
    %v1845 = vunpack.c.l.b16 %v1658
    %v1846 = vunpack.c.h.b16 %v1658
    %v1847 = vunpack.c.l.b16 %v1659
    %v1848 = vunpack.c.h.b16 %v1659
    %v1849 = vunpack.c.l.b16 %v1660
    %v1850 = vunpack.c.h.b16 %v1660
    %v1851 = vunpack.c.l.b16 %v1661
    %v1852 = vunpack.c.l.b16 %v1662
    %v1853 = vunpack.c.h.b16 %v1662
    %v1854 = vunpack.c.l.b16 %v1663
    %v1855 = vunpack.c.h.b16 %v1663
    %v1856 = vunpack.c.l.b16 %v1664
    %v1857 = vunpack.c.h.b16 %v1664
    %v1858 = vunpack.c.l.b16 %v1665
    %v1859 = vunpack.c.l.b16 %v1666
    %v1860 = vunpack.c.h.b16 %v1666
    %v1861 = vunpack.c.l.b16 %v1667
    %v1862 = vunpack.c.h.b16 %v1667
    %v1863 = vunpack.c.l.b16 %v1668
    %v1864 = vunpack.c.h.b16 %v1668
    %v1865 = vunpack.c.l.b16 %v1669
    %v1866 = vunpack.c.l.b16 %v1670
    %v1867 = vunpack.c.h.b16 %v1670
    %v1868 = vunpack.c.l.b16 %v1671
    %v1869 = vunpack.c.h.b16 %v1671
    %v1870 = vunpack.c.l.b16 %v1672
    %v1871 = vunpack.c.h.b16 %v1672
    %v1872 = vunpack.c.l.b16 %v1673
    %v1873 = vunpack.c.l.b16 %v1674
    %v1874 = vunpack.c.h.b16 %v1674
    %v1875 = vunpack.c.l.b16 %v1675
    %v1876 = vunpack.c.h.b16 %v1675
    %v1877 = vunpack.c.l.b16 %v1676
    %v1878 = vunpack.c.h.b16 %v1676
    %v1879 = vunpack.c.l.b16 %v1677
    %v1880 = vunpack.c.l.b16 %v1678
    %v1881 = vunpack.c.h.b16 %v1678
    %v1882 = vunpack.c.l.b16 %v1679
    %v1883 = vunpack.c.h.b16 %v1679
    %v1884 = vunpack.c.l.b16 %v1680
    %v1885 = vunpack.c.h.b16 %v1680
    %v1886 = vunpack.c.l.b16 %v1681
    %v1887 = vunpack.c.l.b16 %v1682
    %v1888 = vunpack.c.h.b16 %v1682
    %v1889 = vunpack.c.l.b16 %v1683
    %v1890 = vunpack.c.h.b16 %v1683
    %v1891 = vunpack.c.l.b16 %v1684
    %v1892 = vunpack.c.h.b16 %v1684
    %v1893 = vunpack.c.l.b16 %v1685
    %v1894 = vunpack.c.l.b16 %v1686
    %v1895 = vunpack.c.h.b16 %v1686
    %v1896 = vunpack.c.l.b16 %v1687
    %v1897 = vunpack.c.h.b16 %v1687
    %v1898 = vunpack.c.l.b16 %v1688
    %v1899 = vunpack.c.h.b16 %v1688
    %v1900 = vunpack.c.l.b16 %v1689
    %v1901 = vunpack.c.l.b16 %v1690
    %v1902 = vunpack.c.h.b16 %v1690
    %v1903 = vunpack.c.l.b16 %v1691
    %v1904 = vunpack.c.h.b16 %v1691
    %v1905 = vunpack.c.l.b16 %v1692
    %v1906 = vunpack.c.h.b16 %v1692
    %v1907 = vunpack.c.l.b16 %v1693
    %v1908 = vpack.c.b16 %v1803, %v1796
    %v1909 = vpack.c.b16 %v1804, %v1797
    %v1910 = vpack.c.b16 %v1805, %v1798
    %v1911 = vpack.c.b16 %v1806, %v1799
    %v1912 = vpack.c.b16 %v1807, %v1800
    %v1913 = vpack.c.b16 %v1808, %v1801
    %v1914 = vpack.c.b16 %v1809, %v1802
    %v1915 = vpack.c.b16 %v1817, %v1810
    %v1916 = vpack.c.b16 %v1818, %v1811
    %v1917 = vpack.c.b16 %v1819, %v1812
    %v1918 = vpack.c.b16 %v1820, %v1813
    %v1919 = vpack.c.b16 %v1821, %v1814
    %v1920 = vpack.c.b16 %v1822, %v1815
    %v1921 = vpack.c.b16 %v1823, %v1816
    %v1922 = vpack.c.b16 %v1831, %v1824
    %v1923 = vpack.c.b16 %v1832, %v1825
    %v1924 = vpack.c.b16 %v1833, %v1826
    %v1925 = vpack.c.b16 %v1834, %v1827
    %v1926 = vpack.c.b16 %v1835, %v1828
    %v1927 = vpack.c.b16 %v1836, %v1829
    %v1928 = vpack.c.b16 %v1837, %v1830
    %v1929 = vpack.c.b16 %v1845, %v1838
    %v1930 = vpack.c.b16 %v1846, %v1839
    %v1931 = vpack.c.b16 %v1847, %v1840
    %v1932 = vpack.c.b16 %v1848, %v1841
    %v1933 = vpack.c.b16 %v1849, %v1842
    %v1934 = vpack.c.b16 %v1850, %v1843
    %v1935 = vpack.c.b16 %v1851, %v1844
    %v1936 = vpack.c.b16 %v1859, %v1852
    %v1937 = vpack.c.b16 %v1860, %v1853
    %v1938 = vpack.c.b16 %v1861, %v1854
    %v1939 = vpack.c.b16 %v1862, %v1855
    %v1940 = vpack.c.b16 %v1863, %v1856
    %v1941 = vpack.c.b16 %v1864, %v1857
    %v1942 = vpack.c.b16 %v1865, %v1858
    %v1943 = vpack.c.b16 %v1873, %v1866
    %v1944 = vpack.c.b16 %v1874, %v1867
    %v1945 = vpack.c.b16 %v1875, %v1868
    %v1946 = vpack.c.b16 %v1876, %v1869
    %v1947 = vpack.c.b16 %v1877, %v1870
    %v1948 = vpack.c.b16 %v1878, %v1871
    %v1949 = vpack.c.b16 %v1879, %v1872
    %v1950 = vpack.c.b16 %v1887, %v1880
    %v1951 = vpack.c.b16 %v1888, %v1881
    %v1952 = vpack.c.b16 %v1889, %v1882
    %v1953 = vpack.c.b16 %v1890, %v1883
    %v1954 = vpack.c.b16 %v1891, %v1884
    %v1955 = vpack.c.b16 %v1892, %v1885
    %v1956 = vpack.c.b16 %v1893, %v1886
    %v1957 = vpack.c.b16 %v1901, %v1894
    %v1958 = vpack.c.b16 %v1902, %v1895
    %v1959 = vpack.c.b16 %v1903, %v1896
    %v1960 = vpack.c.b16 %v1904, %v1897
    %v1961 = vpack.c.b16 %v1905, %v1898
    %v1962 = vpack.c.b16 %v1906, %v1899
    %v1963 = vpack.c.b16 %v1907, %v1900
    %2020 = vmatprep.subr.bf16.mxu0 %v1909
    %2021 = vmatpush1.bf16.msra.mxu0 %v1908
    %2022 = vmatprep.subr.bf16.mxu0 %v1916
    %2023 = vmatpush1.bf16.msra.mxu0 %v1915
    %2024 = vmatprep.subr.bf16.mxu0 %v1923
    %2025 = vmatpush1.bf16.msra.mxu0 %v1922
    %2026 = vmatprep.subr.bf16.mxu0 %v1930
    %2027 = vmatpush1.bf16.msra.mxu0 %v1929
    %2028 = vmatprep.subr.bf16.mxu0 %v1937
    %2029 = vmatpush1.bf16.msra.mxu0 %v1936
    %2030 = vmatprep.subr.bf16.mxu0 %v1944
    %2031 = vmatpush1.bf16.msra.mxu0 %v1943
    %2032 = vmatprep.subr.bf16.mxu0 %v1951
    %2033 = vmatpush1.bf16.msra.mxu0 %v1950
    %2034 = vmatprep.subr.bf16.mxu0 %v1958
    %2035 = vmatpush1.bf16.msra.mxu0 %v1957
    %2036 = vmatprep.subr.bf16.mxu0 0
    %2037 = vmatpush1.bf16.msra.mxu0 0
    %2038 = vmatprep.subr.bf16.mxu0 0
    %2039 = vmatpush1.bf16.msra.mxu0 0
    %2040 = vmatprep.subr.bf16.mxu0 0
    %2041 = vmatpush1.bf16.msra.mxu0 0
    %2042 = vmatprep.subr.bf16.mxu0 0
    %2043 = vmatpush1.bf16.msra.mxu0 0
    %2044 = vmatprep.subr.bf16.mxu0 0
    %2045 = vmatpush1.bf16.msra.mxu0 0
    %2046 = vmatprep.subr.bf16.mxu0 0
    %2047 = vmatpush1.bf16.msra.mxu0 0
    %2048 = vmatprep.subr.bf16.mxu0 0
    %2049 = vmatpush1.bf16.msra.mxu0 0
    %2050 = vmatprep.subr.bf16.mxu0 0
    %2051 = vmatpush1.bf16.msra.mxu0 0
    %2052 = vmatprep.mubr.bf16.mxu0 0
    %2053 = vmatmul.mubr.bf16.gmra.mrb[0].mxu0 %v1695
    %v2054 = vpop.f32.mrb[0].mxu0
    %v2055 = vadd.f32 %v1700, %v2054
    %v2056 = vpop.f32.mrb[0].mxu0
    %v2057 = vadd.f32 %v1704, %v2056
    %v2058 = vpop.f32.mrb[0].mxu0
    %v2059 = vpop.f32.mrb[0].mxu0
    %2060 = vdwg.mxu0
    %2061 = vmatprep.subr.bf16.mxu0 %v1911
    %2062 = vmatpush1.bf16.msra.mxu0 %v1910
    %2063 = vmatprep.subr.bf16.mxu0 %v1918
    %2064 = vmatpush1.bf16.msra.mxu0 %v1917
    %2065 = vmatprep.subr.bf16.mxu0 %v1925
    %2066 = vmatpush1.bf16.msra.mxu0 %v1924
    %2067 = vmatprep.subr.bf16.mxu0 %v1932
    %2068 = vmatpush1.bf16.msra.mxu0 %v1931
    %2069 = vmatprep.subr.bf16.mxu0 %v1939
    %2070 = vmatpush1.bf16.msra.mxu0 %v1938
    %2071 = vmatprep.subr.bf16.mxu0 %v1946
    %2072 = vmatpush1.bf16.msra.mxu0 %v1945
    %2073 = vmatprep.subr.bf16.mxu0 %v1953
    %2074 = vmatpush1.bf16.msra.mxu0 %v1952
    %2075 = vmatprep.subr.bf16.mxu0 %v1960
    %2076 = vmatpush1.bf16.msra.mxu0 %v1959
    %2077 = vmatprep.subr.bf16.mxu0 0
    %2078 = vmatpush1.bf16.msra.mxu0 0
    %2079 = vmatprep.subr.bf16.mxu0 0
    %2080 = vmatpush1.bf16.msra.mxu0 0
    %2081 = vmatprep.subr.bf16.mxu0 0
    %2082 = vmatpush1.bf16.msra.mxu0 0
    %2083 = vmatprep.subr.bf16.mxu0 0
    %2084 = vmatpush1.bf16.msra.mxu0 0
    %2085 = vmatprep.subr.bf16.mxu0 0
    %2086 = vmatpush1.bf16.msra.mxu0 0
    %2087 = vmatprep.subr.bf16.mxu0 0
    %2088 = vmatpush1.bf16.msra.mxu0 0
    %2089 = vmatprep.subr.bf16.mxu0 0
    %2090 = vmatpush1.bf16.msra.mxu0 0
    %2091 = vmatprep.subr.bf16.mxu0 0
    %2092 = vmatpush1.bf16.msra.mxu0 0
    %2093 = vmatprep.mubr.bf16.mxu0 0
    %2094 = vmatmul.mubr.bf16.gmra.mrb[0].mxu0 %v1695
    %v2095 = vpop.f32.mrb[0].mxu0
    %v2096 = vadd.f32 %v1708, %v2095
    %v2097 = vpop.f32.mrb[0].mxu0
    %v2098 = vadd.f32 %v1712, %v2097
    %v2099 = vpop.f32.mrb[0].mxu0
    %v2100 = vpop.f32.mrb[0].mxu0
    %2101 = vdwg.mxu0
    %2102 = vmatprep.subr.bf16.mxu0 %v1913
    %2103 = vmatpush1.bf16.msra.mxu0 %v1912
    %2104 = vmatprep.subr.bf16.mxu0 %v1920
    %2105 = vmatpush1.bf16.msra.mxu0 %v1919
    %2106 = vmatprep.subr.bf16.mxu0 %v1927
    %2107 = vmatpush1.bf16.msra.mxu0 %v1926
    %2108 = vmatprep.subr.bf16.mxu0 %v1934
    %2109 = vmatpush1.bf16.msra.mxu0 %v1933
    %2110 = vmatprep.subr.bf16.mxu0 %v1941
    %2111 = vmatpush1.bf16.msra.mxu0 %v1940
    %2112 = vmatprep.subr.bf16.mxu0 %v1948
    %2113 = vmatpush1.bf16.msra.mxu0 %v1947
    %2114 = vmatprep.subr.bf16.mxu0 %v1955
    %2115 = vmatpush1.bf16.msra.mxu0 %v1954
    %2116 = vmatprep.subr.bf16.mxu0 %v1962
    %2117 = vmatpush1.bf16.msra.mxu0 %v1961
    %2118 = vmatprep.subr.bf16.mxu0 0
    %2119 = vmatpush1.bf16.msra.mxu0 0
    %2120 = vmatprep.subr.bf16.mxu0 0
    %2121 = vmatpush1.bf16.msra.mxu0 0
    %2122 = vmatprep.subr.bf16.mxu0 0
    %2123 = vmatpush1.bf16.msra.mxu0 0
    %2124 = vmatprep.subr.bf16.mxu0 0
    %2125 = vmatpush1.bf16.msra.mxu0 0
    %2126 = vmatprep.subr.bf16.mxu0 0
    %2127 = vmatpush1.bf16.msra.mxu0 0
    %2128 = vmatprep.subr.bf16.mxu0 0
    %2129 = vmatpush1.bf16.msra.mxu0 0
    %2130 = vmatprep.subr.bf16.mxu0 0
    %2131 = vmatpush1.bf16.msra.mxu0 0
    %2132 = vmatprep.subr.bf16.mxu0 0
    %2133 = vmatpush1.bf16.msra.mxu0 0
    %2134 = vmatprep.mubr.bf16.mxu0 0
    %2135 = vmatmul.mubr.bf16.gmra.mrb[0].mxu0 %v1695
    %v2136 = vpop.f32.mrb[0].mxu0
    %v2137 = vadd.f32 %v1716, %v2136
    %v2138 = vpop.f32.mrb[0].mxu0
    %v2139 = vadd.f32 %v1720, %v2138
    %v2140 = vpop.f32.mrb[0].mxu0
    %v2141 = vpop.f32.mrb[0].mxu0
    %2142 = vdwg.mxu0
    %2143 = vmatprep.subr.bf16.mxu0 0
    %2144 = vmatpush1.bf16.msra.mxu0 %v1914
    %2145 = vmatprep.subr.bf16.mxu0 0
    %2146 = vmatpush1.bf16.msra.mxu0 %v1921
    %2147 = vmatprep.subr.bf16.mxu0 0
    %2148 = vmatpush1.bf16.msra.mxu0 %v1928
    %2149 = vmatprep.subr.bf16.mxu0 0
    %2150 = vmatpush1.bf16.msra.mxu0 %v1935
    %2151 = vmatprep.subr.bf16.mxu0 0
    %2152 = vmatpush1.bf16.msra.mxu0 %v1942
    %2153 = vmatprep.subr.bf16.mxu0 0
    %2154 = vmatpush1.bf16.msra.mxu0 %v1949
    %2155 = vmatprep.subr.bf16.mxu0 0
    %2156 = vmatpush1.bf16.msra.mxu0 %v1956
    %2157 = vmatprep.subr.bf16.mxu0 0
    %2158 = vmatpush1.bf16.msra.mxu0 %v1963
    %2159 = vmatprep.subr.bf16.mxu0 0
    %2160 = vmatpush1.bf16.msra.mxu0 0
    %2161 = vmatprep.subr.bf16.mxu0 0
    %2162 = vmatpush1.bf16.msra.mxu0 0
    %2163 = vmatprep.subr.bf16.mxu0 0
    %2164 = vmatpush1.bf16.msra.mxu0 0
    %2165 = vmatprep.subr.bf16.mxu0 0
    %2166 = vmatpush1.bf16.msra.mxu0 0
    %2167 = vmatprep.subr.bf16.mxu0 0
    %2168 = vmatpush1.bf16.msra.mxu0 0
    %2169 = vmatprep.subr.bf16.mxu0 0
    %2170 = vmatpush1.bf16.msra.mxu0 0
    %2171 = vmatprep.subr.bf16.mxu0 0
    %2172 = vmatpush1.bf16.msra.mxu0 0
    %2173 = vmatprep.subr.bf16.mxu0 0
    %2174 = vmatpush1.bf16.msra.mxu0 0
    %2175 = vmatprep.mubr.bf16.mxu0 0
    %2176 = vmatmul.mubr.bf16.gmra.mrb[0].mxu0 %v1695
    %v2177 = vpop.f32.mrb[0].mxu0
    %v2178 = vadd.f32 %v1724, %v2177
    %v2179 = vpop.f32.mrb[0].mxu0
    %v2180 = vpop.f32.mrb[0].mxu0
    %v2181 = vpop.f32.mrb[0].mxu0
    %2182 = vdwg.mxu0
    %v2183 = vxor.u32 %v2055, 2147483648
    %v2184 = vxor.u32 %v2057, 2147483648
    %v2185 = vxor.u32 %v2096, 2147483648
    %v2186 = vxor.u32 %v2098, 2147483648
    %v2187 = vxor.u32 %v2137, 2147483648
    %v2188 = vxor.u32 %v2139, 2147483648
    %v2189 = vxor.u32 %v2178, 2147483648
    %v2190 = vmul.f32 %v2183, 1.442695
    %v2191 = vpow.pop %v2190
    %v2192 = vmul.f32 %v2184, 1.442695
    %v2193 = vpow.pop %v2192
    %v2194 = vmul.f32 %v2185, 1.442695
    %v2195 = vpow.pop %v2194
    %v2196 = vmul.f32 %v2186, 1.442695
    %v2197 = vpow.pop %v2196
    %v2198 = vmul.f32 %v2187, 1.442695
    %v2199 = vpow.pop %v2198
    %v2200 = vmul.f32 %v2188, 1.442695
    %v2201 = vpow.pop %v2200
    %v2202 = vmul.f32 %v2189, 1.442695
    %v2203 = vpow.pop %v2202
    %v2204 = vadd.f32 %v2191, 1.0
    %v2205 = vadd.f32 %v2193, 1.0
    %v2206 = vadd.f32 %v2195, 1.0
    %v2207 = vadd.f32 %v2197, 1.0
    %v2208 = vadd.f32 %v2199, 1.0
    %v2209 = vadd.f32 %v2201, 1.0
    %v2210 = vadd.f32 %v2203, 1.0
    %v2211 = vrcp.pop %v2204
    %v2212 = vmul.f32 1.0, %v2211
    %v2213 = vrcp.pop %v2205
    %v2214 = vmul.f32 1.0, %v2213
    %v2215 = vrcp.pop %v2206
    %v2216 = vmul.f32 1.0, %v2215
    %v2217 = vrcp.pop %v2207
    %v2218 = vmul.f32 1.0, %v2217
    %v2219 = vrcp.pop %v2208
    %v2220 = vmul.f32 1.0, %v2219
    %v2221 = vrcp.pop %v2209
    %v2222 = vmul.f32 1.0, %v2221
    %v2223 = vrcp.pop %v2210
    %v2224 = vmul.f32 1.0, %v2223
    %v2225 = vpack.c.bf16 %v2212, %v2212
    %v2226 = vpack.c.bf16 %v2214, %v2214
    %v2227 = vpack.c.bf16 %v2216, %v2216
    %v2228 = vpack.c.bf16 %v2218, %v2218
    %v2229 = vpack.c.bf16 %v2220, %v2220
    %v2230 = vpack.c.bf16 %v2222, %v2222
    %v2231 = vpack.c.bf16 %v2224, %v2224
    %v2239 = vcombine.low %v2225, %v2226
    %v2240 = vcombine.low %v2227, %v2228
    %v2241 = vcombine.low %v2229, %v2230
    %v2243 = vunpack.c.l.s4 1966171168
    %v2244 = vunpack.c.0.s8 %v2243
    %v2245 = vlaneseq
    %v2246 = vshrl.u32 %v2245, 7
    %v2247 = vsub.s32 %v2244, %v2246
    %v2248 = vrot.slane %v2239, %v2247
    %v2250 = vunpack.c.l.s4 1966171168
    %v2251 = vunpack.c.0.s8 %v2250
    %v2252 = vlaneseq
    %v2253 = vshrl.u32 %v2252, 7
    %v2254 = vsub.s32 %v2251, %v2253
    %v2255 = vrot.slane %v2240, %v2254
    %v2257 = vunpack.c.l.s4 1966171168
    %v2258 = vunpack.c.0.s8 %v2257
    %v2259 = vlaneseq
    %v2260 = vshrl.u32 %v2259, 7
    %v2261 = vsub.s32 %v2258, %v2260
    %v2262 = vrot.slane %v2241, %v2261
    %v2264 = vunpack.c.l.s4 1966171168
    %v2265 = vunpack.c.0.s8 %v2264
    %v2266 = vlaneseq
    %v2267 = vshrl.u32 %v2266, 7
    %v2268 = vsub.s32 %v2265, %v2267
    %v2269 = vrot.slane %v2231, %v2268
    %v2270 = vcombine.low %v2248, %v2255
    %v2271 = vcombine.low %v2262, %v2269
    %v2273 = vunpack.c.l.s4 1966171168
    %v2274 = vunpack.c.0.s8 %v2273
    %v2275 = vlaneseq
    %v2276 = vshrl.u32 %v2275, 7
    %v2277 = vsub.s32 %v2274, %v2276
    %v2278 = vrot.slane %v2270, %v2277
    %v2280 = vunpack.c.l.s4 1966171168
    %v2281 = vunpack.c.0.s8 %v2280
    %v2282 = vlaneseq
    %v2283 = vshrl.u32 %v2282, 7
    %v2284 = vsub.s32 %v2281, %v2283
    %v2285 = vrot.slane %v2271, %v2284
    %v2286 = vcombine.low %v2278, %v2285
    %vm2288 = vcmask 1040384
    %vm2289 = vcmask 1041409
    %vm2290 = vmor %vm2289, %vm2288
    %vm2291 = vcmask 1042434
    %vm2292 = vmor %vm2291, %vm2290
    %vm2293 = vcmask 1043459
    %vm2294 = vmor %vm2293, %vm2292
    %vm2295 = vcmask 1044484
    %vm2296 = vmor %vm2295, %vm2294
    %vm2297 = vcmask 1045509
    %vm2298 = vmor %vm2297, %vm2296
    %vm2299 = vcmask 129030
    %vm2300 = vmor %vm2299, %vm2298
    %2301 = vst.msk [vmem:[#allocation8] sm:$0x7f] %vm2300, %v2286
    // Predicated region
    $region98: #{tpu_custom_call.1} parent=1 // pred_check
      _
    $region99: #{tpu_custom_call.1} parent=1 // pred_check_branch
      %2303 = sbr.rel (0) target = $region101
    $region100: #{tpu_custom_call.1} parent=1 // pred_region
      %s2305 = ssub.s32 112, 112
      %2306 = vsyncadd [#allocation4], %s2305
      %s2308 = sshll.u32 [#allocation8], 4
      %s2309 = int_to_ptr.vmem [resolvable:$true] %s2308
      %2311 = dma.vmem_to_hbm [thread:$0]  %s2309, 112, %s21, [#allocation4]
    $region101: #{tpu_custom_call.1} parent=1 // pred_fallthru
      _
    // Predicated region
    $region102: #{tpu_custom_call.1} parent=1 // pred_check
      _
    $region103: #{tpu_custom_call.1} parent=1 // pred_check_branch
      %2313 = sbr.rel (0) target = $region105
    $region104: #{tpu_custom_call.1} parent=1 // pred_region
      %2314 = dma.done [#allocation4], 112
    $region105: #{tpu_custom_call.1} parent=1 // pred_fallthru
      _
    %2315 = vsyncpa [#allocation3], 1
    %2316 = vsyncpa [#allocation6], 1
    %2317 = vsyncpa [#allocation4], 1

// kernel: tpu_custom_call.1
$region0: #{tpu_custom_call.1}
  #allocation0 [shape = 'u32[]', space=smem, size = 0x4, offset = 0x4, fixed_abs, tag = 'smem constant byte address 0x4 - core index']
  #allocation1 [shape = 'u32[144,128]{1,0:T(1,128)}', space=vmem, size = 0x12000, scoped, tag = 'internal scratch']
  %s0 = inlined_call_operand.hbm [shape: bf16[2,784], index: 0, kind: input, shape index: {}]
  %s1 = inlined_call_operand.vmem [shape: bf16[784,128], index: 1, kind: input, shape index: {}]
  %s2 = inlined_call_operand.hbm [shape: f32[1,128], index: 2, kind: input, shape index: {}]
  %s3 = inlined_call_operand.vmem [shape: bf16[128,128], index: 3, kind: input, shape index: {}]
  %s4 = inlined_call_operand.vmem [shape: f32[1,128], index: 4, kind: input, shape index: {}]
  %s5 = inlined_call_operand.vmem [shape: bf16[128,128], index: 5, kind: input, shape index: {}]
  %s6 = inlined_call_operand.vmem [shape: f32[1,128], index: 6, kind: input, shape index: {}]
  %s7 = inlined_call_operand.vmem [shape: bf16[128,128], index: 7, kind: input, shape index: {}]
  %s8 = inlined_call_operand.vmem [shape: f32[1,128], index: 8, kind: input, shape index: {}]
  %s9 = inlined_call_operand.vmem [shape: bf16[128,128], index: 9, kind: input, shape index: {}]
  %s10 = inlined_call_operand.vmem [shape: f32[1,128], index: 10, kind: input, shape index: {}]
  %s11 = inlined_call_operand.vmem [shape: bf16[128,128], index: 11, kind: input, shape index: {}]
  %s12 = inlined_call_operand.vmem [shape: f32[1,128], index: 12, kind: input, shape index: {}]
  %s13 = inlined_call_operand.vmem [shape: bf16[128,128], index: 13, kind: input, shape index: {}]
  %s14 = inlined_call_operand.vmem [shape: f32[1,128], index: 14, kind: input, shape index: {}]
  %s15 = inlined_call_operand.vmem [shape: bf16[128,128], index: 15, kind: input, shape index: {}]
  %s16 = inlined_call_operand.vmem [shape: f32[1,128], index: 16, kind: input, shape index: {}]
  %s17 = inlined_call_operand.hbm [shape: bf16[128,128], index: 17, kind: input, shape index: {}]
  %s18 = inlined_call_operand.vmem [shape: f32[1,128], index: 18, kind: input, shape index: {}]
  %s19 = inlined_call_operand.vmem [shape: bf16[128,784], index: 19, kind: input, shape index: {}]
  %s20 = inlined_call_operand.vmem [shape: f32[1,784], index: 20, kind: input, shape index: {}]
  %s21 = inlined_call_operand.hbm [shape: bf16[2,784], index: 21, kind: output, shape index: {}]
  %s22 = sld [smem:[#allocation0]]
  $region106: #{tpu_custom_call.1} parent=0
    _
  %s24 = ssub.s32 1, %s22
  %s25 = scalar_select 0, %s24, %s22
  $region1: #{tpu_custom_call.1} parent=0
    #allocation2 [shape = 'u8[3584]{0}', space=vmem, size = 0x1000, scoped, tag = 'input window, operand 0, single buffered']
    #allocation3 [shape = 's32[1]{0}', space=sflag, size = 0x4, scoped, tag = 'scoped memory for tpu_custom_call.1']
    #allocation4 [shape = 's32[1]{0}', space=sflag, size = 0x4, scoped, tag = 'scoped memory for tpu_custom_call.1']
    #allocation5 [shape = 'u8[512]{0}', space=vmem, size = 0x400, scoped, tag = 'input window, operand 2, single buffered']
    #allocation6 [shape = 's32[1]{0}', space=sflag, size = 0x4, scoped, tag = 'scoped memory for tpu_custom_call.1']
    #allocation7 [shape = 'u8[32768]{0}', space=vmem, size = 0x8000, scoped, tag = 'input window, operand 17, single buffered']
    #allocation8 [shape = 'u8[3584]{0}', space=vmem, size = 0x1000, scoped, tag = 'output window, operand 0, single buffered']
    %26 = vsyncpa [#allocation3], 0
    %27 = vsyncpa [#allocation6], 0
    %28 = vsyncpa [#allocation4], 0
    // Predicated region
    $region2: #{tpu_custom_call.1} parent=1 // pred_check
      _
    $region3: #{tpu_custom_call.1} parent=1 // pred_check_branch
      %30 = sbr.rel (0) target = $region5
    $region4: #{tpu_custom_call.1} parent=1 // pred_region
      %s32 = ssub.s32 112, 112
      %33 = vsyncadd [#allocation3], %s32
      %s35 = sshll.u32 [#allocation2], 4
      %s36 = int_to_ptr.vmem [resolvable:$true] %s35
      %38 = dma.hbm_to_vmem [thread:$0]  %s0, 112, %s36, [#allocation3]
    $region5: #{tpu_custom_call.1} parent=1 // pred_fallthru
      _
    // Predicated region
    $region6: #{tpu_custom_call.1} parent=1 // pred_check
      _
    $region7: #{tpu_custom_call.1} parent=1 // pred_check_branch
      %40 = sbr.rel (0) target = $region9
    $region8: #{tpu_custom_call.1} parent=1 // pred_region
      _
    $region9: #{tpu_custom_call.1} parent=1 // pred_fallthru
      _
    // Predicated region
    $region10: #{tpu_custom_call.1} parent=1 // pred_check
      _
    $region11: #{tpu_custom_call.1} parent=1 // pred_check_branch
      %42 = sbr.rel (0) target = $region13
    $region12: #{tpu_custom_call.1} parent=1 // pred_region
      %s44 = ssub.s32 16, 16
      %45 = vsyncadd [#allocation6], %s44
      %s47 = sshll.u32 [#allocation5], 4
      %s48 = int_to_ptr.vmem [resolvable:$true] %s47
      %50 = dma.hbm_to_vmem [thread:$0]  %s2, 16, %s48, [#allocation6]
    $region13: #{tpu_custom_call.1} parent=1 // pred_fallthru
      _
    // Predicated region
    $region14: #{tpu_custom_call.1} parent=1 // pred_check
      _
    $region15: #{tpu_custom_call.1} parent=1 // pred_check_branch
      %52 = sbr.rel (0) target = $region17
    $region16: #{tpu_custom_call.1} parent=1 // pred_region
      _
    $region17: #{tpu_custom_call.1} parent=1 // pred_fallthru
      _
    // Predicated region
    $region18: #{tpu_custom_call.1} parent=1 // pred_check
      _
    $region19: #{tpu_custom_call.1} parent=1 // pred_check_branch
      %54 = sbr.rel (0) target = $region21
    $region20: #{tpu_custom_call.1} parent=1 // pred_region
      _
    $region21: #{tpu_custom_call.1} parent=1 // pred_fallthru
      _
    // Predicated region
    $region22: #{tpu_custom_call.1} parent=1 // pred_check
      _
    $region23: #{tpu_custom_call.1} parent=1 // pred_check_branch
      %56 = sbr.rel (0) target = $region25
    $region24: #{tpu_custom_call.1} parent=1 // pred_region
      _
    $region25: #{tpu_custom_call.1} parent=1 // pred_fallthru
      _
    // Predicated region
    $region26: #{tpu_custom_call.1} parent=1 // pred_check
      _
    $region27: #{tpu_custom_call.1} parent=1 // pred_check_branch
      %58 = sbr.rel (0) target = $region29
    $region28: #{tpu_custom_call.1} parent=1 // pred_region
      _
    $region29: #{tpu_custom_call.1} parent=1 // pred_fallthru
      _
    // Predicated region
    $region30: #{tpu_custom_call.1} parent=1 // pred_check
      _
    $region31: #{tpu_custom_call.1} parent=1 // pred_check_branch
      %60 = sbr.rel (0) target = $region33
    $region32: #{tpu_custom_call.1} parent=1 // pred_region
      _
    $region33: #{tpu_custom_call.1} parent=1 // pred_fallthru
      _
    // Predicated region
    $region34: #{tpu_custom_call.1} parent=1 // pred_check
      _
    $region35: #{tpu_custom_call.1} parent=1 // pred_check_branch
      %62 = sbr.rel (0) target = $region37
    $region36: #{tpu_custom_call.1} parent=1 // pred_region
      _
    $region37: #{tpu_custom_call.1} parent=1 // pred_fallthru
      _
    // Predicated region
    $region38: #{tpu_custom_call.1} parent=1 // pred_check
      _
    $region39: #{tpu_custom_call.1} parent=1 // pred_check_branch
      %64 = sbr.rel (0) target = $region41
    $region40: #{tpu_custom_call.1} parent=1 // pred_region
      _
    $region41: #{tpu_custom_call.1} parent=1 // pred_fallthru
      _
    // Predicated region
    $region42: #{tpu_custom_call.1} parent=1 // pred_check
      _
    $region43: #{tpu_custom_call.1} parent=1 // pred_check_branch
      %66 = sbr.rel (0) target = $region45
    $region44: #{tpu_custom_call.1} parent=1 // pred_region
      _
    $region45: #{tpu_custom_call.1} parent=1 // pred_fallthru
      _
    // Predicated region
    $region46: #{tpu_custom_call.1} parent=1 // pred_check
      _
    $region47: #{tpu_custom_call.1} parent=1 // pred_check_branch
      %68 = sbr.rel (0) target = $region49
    $region48: #{tpu_custom_call.1} parent=1 // pred_region
      _
    $region49: #{tpu_custom_call.1} parent=1 // pred_fallthru
      _
    // Predicated region
    $region50: #{tpu_custom_call.1} parent=1 // pred_check
      _
    $region51: #{tpu_custom_call.1} parent=1 // pred_check_branch
      %70 = sbr.rel (0) target = $region53
    $region52: #{tpu_custom_call.1} parent=1 // pred_region
      _
    $region53: #{tpu_custom_call.1} parent=1 // pred_fallthru
      _
    // Predicated region
    $region54: #{tpu_custom_call.1} parent=1 // pred_check
      _
    $region55: #{tpu_custom_call.1} parent=1 // pred_check_branch
      %72 = sbr.rel (0) target = $region57
    $region56: #{tpu_custom_call.1} parent=1 // pred_region
      _
    $region57: #{tpu_custom_call.1} parent=1 // pred_fallthru
      _
    // Predicated region
    $region58: #{tpu_custom_call.1} parent=1 // pred_check
      _
    $region59: #{tpu_custom_call.1} parent=1 // pred_check_branch
      %74 = sbr.rel (0) target = $region61
    $region60: #{tpu_custom_call.1} parent=1 // pred_region
      _
    $region61: #{tpu_custom_call.1} parent=1 // pred_fallthru
      _
    // Predicated region
    $region62: #{tpu_custom_call.1} parent=1 // pred_check
      _
    $region63: #{tpu_custom_call.1} parent=1 // pred_check_branch
      %76 = sbr.rel (0) target = $region65
    $region64: #{tpu_custom_call.1} parent=1 // pred_region
      _
    $region65: #{tpu_custom_call.1} parent=1 // pred_fallthru
      _
    // Predicated region
    $region66: #{tpu_custom_call.1} parent=1 // pred_check
      _
    $region67: #{tpu_custom_call.1} parent=1 // pred_check_branch
      %78 = sbr.rel (0) target = $region69
    $region68: #{tpu_custom_call.1} parent=1 // pred_region
      _
    $region69: #{tpu_custom_call.1} parent=1 // pred_fallthru
      _
    // Predicated region
    $region70: #{tpu_custom_call.1} parent=1 // pred_check
      _
    $region71: #{tpu_custom_call.1} parent=1 // pred_check_branch
      %80 = sbr.rel (0) target = $region73
    $region72: #{tpu_custom_call.1} parent=1 // pred_region
      %s82 = ssub.s32 1024, 1024
      %83 = vsyncadd [#allocation6], %s82
      %s84 = sshll.u32 [#allocation7], 4
      %s85 = int_to_ptr.vmem [resolvable:$true] %s84
      %90 = dma.hbm_to_vmem [thread:$0]  %s17, 1024, %s85, [#allocation6], 64, 64, 4
    $region73: #{tpu_custom_call.1} parent=1 // pred_fallthru
      _
    // Predicated region
    $region74: #{tpu_custom_call.1} parent=1 // pred_check
      _
    $region75: #{tpu_custom_call.1} parent=1 // pred_check_branch
      %92 = sbr.rel (0) target = $region77
    $region76: #{tpu_custom_call.1} parent=1 // pred_region
      _
    $region77: #{tpu_custom_call.1} parent=1 // pred_fallthru
      _
    // Predicated region
    $region78: #{tpu_custom_call.1} parent=1 // pred_check
      _
    $region79: #{tpu_custom_call.1} parent=1 // pred_check_branch
      %94 = sbr.rel (0) target = $region81
    $region80: #{tpu_custom_call.1} parent=1 // pred_region
      _
    $region81: #{tpu_custom_call.1} parent=1 // pred_fallthru
      _
    // Predicated region
    $region82: #{tpu_custom_call.1} parent=1 // pred_check
      _
    $region83: #{tpu_custom_call.1} parent=1 // pred_check_branch
      %96 = sbr.rel (0) target = $region85
    $region84: #{tpu_custom_call.1} parent=1 // pred_region
      _
    $region85: #{tpu_custom_call.1} parent=1 // pred_fallthru
      _
    // Predicated region
    $region86: #{tpu_custom_call.1} parent=1 // pred_check
      _
    $region87: #{tpu_custom_call.1} parent=1 // pred_check_branch
      %98 = sbr.rel (0) target = $region89
    $region88: #{tpu_custom_call.1} parent=1 // pred_region
      %99 = dma.done [#allocation3], 112
    $region89: #{tpu_custom_call.1} parent=1 // pred_fallthru
      _
    // Predicated region
    $region90: #{tpu_custom_call.1} parent=1 // pred_check
      _
    $region91: #{tpu_custom_call.1} parent=1 // pred_check_branch
      %101 = sbr.rel (0) target = $region93
    $region92: #{tpu_custom_call.1} parent=1 // pred_region
      %102 = dma.done [#allocation6], 16
    $region93: #{tpu_custom_call.1} parent=1 // pred_fallthru
      _
    // Predicated region
    $region94: #{tpu_custom_call.1} parent=1 // pred_check
      _
    $region95: #{tpu_custom_call.1} parent=1 // pred_check_branch
      %104 = sbr.rel (0) target = $region97
    $region96: #{tpu_custom_call.1} parent=1 // pred_region
      %105 = dma.done [#allocation6], 1024
    $region97: #{tpu_custom_call.1} parent=1 // pred_fallthru
      _
    %v107 = vld [vmem:[#allocation2] sm:$0x7f]
    %v108 = vld [vmem:[%s1] sm:$0xf]
    %v109 = vld [vmem:[%s1 + $0x4] sm:$0xf]
    %v110 = vld [vmem:[%s1 + $0x8] sm:$0xf]
    %v111 = vld [vmem:[%s1 + $0xc] sm:$0xf]
    %v112 = vld [vmem:[%s1 + $0x10] sm:$0xf]
    %v113 = vld [vmem:[%s1 + $0x14] sm:$0xf]
    %v114 = vld [vmem:[%s1 + $0x18] sm:$0xf]
    %v115 = vld [vmem:[%s1 + $0x1c] sm:$0xf]
    %v116 = vld [vmem:[%s1 + $0x20] sm:$0xf]
    %v117 = vld [vmem:[%s1 + $0x24] sm:$0xf]
    %v118 = vld [vmem:[%s1 + $0x28] sm:$0xf]
    %v119 = vld [vmem:[%s1 + $0x2c] sm:$0xf]
    %v120 = vld [vmem:[%s1 + $0x30] sm:$0xf]
    %v121 = vld [vmem:[%s1 + $0x34] sm:$0xf]
    %v122 = vld [vmem:[%s1 + $0x38] sm:$0xf]
    %v123 = vld [vmem:[%s1 + $0x3c] sm:$0xf]
    %v124 = vld [vmem:[%s1 + $0x40] sm:$0xf]
    %v125 = vld [vmem:[%s1 + $0x44] sm:$0xf]
    %v126 = vld [vmem:[%s1 + $0x48] sm:$0xf]
    %v127 = vld [vmem:[%s1 + $0x4c] sm:$0xf]
    %v128 = vld [vmem:[%s1 + $0x50] sm:$0xf]
    %v129 = vld [vmem:[%s1 + $0x54] sm:$0xf]
    %v130 = vld [vmem:[%s1 + $0x58] sm:$0xf]
    %v131 = vld [vmem:[%s1 + $0x5c] sm:$0xf]
    %v132 = vld [vmem:[%s1 + $0x60] sm:$0xf]
    %v133 = vld [vmem:[%s1 + $0x64] sm:$0xf]
    %v134 = vld [vmem:[%s1 + $0x68] sm:$0xf]
    %v135 = vld [vmem:[%s1 + $0x6c] sm:$0xf]
    %v136 = vld [vmem:[%s1 + $0x70] sm:$0xf]
    %v137 = vld [vmem:[%s1 + $0x74] sm:$0xf]
    %v138 = vld [vmem:[%s1 + $0x78] sm:$0xf]
    %v139 = vld [vmem:[%s1 + $0x7c] sm:$0xf]
    %v140 = vld [vmem:[%s1 + $0x80] sm:$0xf]
    %v141 = vld [vmem:[%s1 + $0x84] sm:$0xf]
    %v142 = vld [vmem:[%s1 + $0x88] sm:$0xf]
    %v143 = vld [vmem:[%s1 + $0x8c] sm:$0xf]
    %v144 = vld [vmem:[%s1 + $0x90] sm:$0xf]
    %v145 = vld [vmem:[%s1 + $0x94] sm:$0xf]
    %v146 = vld [vmem:[%s1 + $0x98] sm:$0xf]
    %v147 = vld [vmem:[%s1 + $0x9c] sm:$0xf]
    %v148 = vld [vmem:[%s1 + $0xa0] sm:$0xf]
    %v149 = vld [vmem:[%s1 + $0xa4] sm:$0xf]
    %v150 = vld [vmem:[%s1 + $0xa8] sm:$0xf]
    %v151 = vld [vmem:[%s1 + $0xac] sm:$0xf]
    %v152 = vld [vmem:[%s1 + $0xb0] sm:$0xf]
    %v153 = vld [vmem:[%s1 + $0xb4] sm:$0xf]
    %v154 = vld [vmem:[%s1 + $0xb8] sm:$0xf]
    %v155 = vld [vmem:[%s1 + $0xbc] sm:$0xf]
    %v156 = vld [vmem:[%s1 + $0xc0] sm:$0xf]
    %v157 = vld [vmem:[%s1 + $0xc4] sm:$0xf]
    %v158 = vld [vmem:[%s1 + $0xc8] sm:$0xf]
    %v159 = vld [vmem:[%s1 + $0xcc] sm:$0xf]
    %v160 = vld [vmem:[%s1 + $0xd0] sm:$0xf]
    %v161 = vld [vmem:[%s1 + $0xd4] sm:$0xf]
    %v162 = vld [vmem:[%s1 + $0xd8] sm:$0xf]
    %v163 = vld [vmem:[%s1 + $0xdc] sm:$0xf]
    %v164 = vld [vmem:[%s1 + $0xe0] sm:$0xf]
    %v165 = vld [vmem:[%s1 + $0xe4] sm:$0xf]
    %v166 = vld [vmem:[%s1 + $0xe8] sm:$0xf]
    %v167 = vld [vmem:[%s1 + $0xec] sm:$0xf]
    %v168 = vld [vmem:[%s1 + $0xf0] sm:$0xf]
    %v169 = vld [vmem:[%s1 + $0xf4] sm:$0xf]
    %v170 = vld [vmem:[%s1 + $0xf8] sm:$0xf]
    %v171 = vld [vmem:[%s1 + $0xfc] sm:$0xf]
    %v172 = vld [vmem:[%s1 + $0x100] sm:$0xf]
    %v173 = vld [vmem:[%s1 + $0x104] sm:$0xf]
    %v174 = vld [vmem:[%s1 + $0x108] sm:$0xf]
    %v175 = vld [vmem:[%s1 + $0x10c] sm:$0xf]
    %v176 = vld [vmem:[%s1 + $0x110] sm:$0xf]
    %v177 = vld [vmem:[%s1 + $0x114] sm:$0xf]
    %v178 = vld [vmem:[%s1 + $0x118] sm:$0xf]
    %v179 = vld [vmem:[%s1 + $0x11c] sm:$0xf]
    %v180 = vld [vmem:[%s1 + $0x120] sm:$0xf]
    %v181 = vld [vmem:[%s1 + $0x124] sm:$0xf]
    %v182 = vld [vmem:[%s1 + $0x128] sm:$0xf]
    %v183 = vld [vmem:[%s1 + $0x12c] sm:$0xf]
    %v184 = vld [vmem:[%s1 + $0x130] sm:$0xf]
    %v185 = vld [vmem:[%s1 + $0x134] sm:$0xf]
    %v186 = vld [vmem:[%s1 + $0x138] sm:$0xf]
    %v187 = vld [vmem:[%s1 + $0x13c] sm:$0xf]
    %v188 = vld [vmem:[%s1 + $0x140] sm:$0xf]
    %v189 = vld [vmem:[%s1 + $0x144] sm:$0xf]
    %v190 = vld [vmem:[%s1 + $0x148] sm:$0xf]
    %v191 = vld [vmem:[%s1 + $0x14c] sm:$0xf]
    %v192 = vld [vmem:[%s1 + $0x150] sm:$0xf]
    %v193 = vld [vmem:[%s1 + $0x154] sm:$0xf]
    %v194 = vld [vmem:[%s1 + $0x158] sm:$0xf]
    %v195 = vld [vmem:[%s1 + $0x15c] sm:$0xf]
    %v196 = vld [vmem:[%s1 + $0x160] sm:$0xf]
    %v197 = vld [vmem:[%s1 + $0x164] sm:$0xf]
    %v198 = vld [vmem:[%s1 + $0x168] sm:$0xf]
    %v199 = vld [vmem:[%s1 + $0x16c] sm:$0xf]
    %v200 = vld [vmem:[%s1 + $0x170] sm:$0xf]
    %v201 = vld [vmem:[%s1 + $0x174] sm:$0xf]
    %v202 = vld [vmem:[%s1 + $0x178] sm:$0xf]
    %v203 = vld [vmem:[%s1 + $0x17c] sm:$0xf]
    %v204 = vld [vmem:[%s1 + $0x180] sm:$0xf]
    %v205 = vld [vmem:[%s1 + $0x184] sm:$0xf]
    %v206 = vld [vmem:[#allocation5] sm:$0x1]
    %v208 = vlaneseq
    %v209 = vshrl.u32 %v208, 7
    %v210 = vsub.s32 0, %v209
    %v211 = vrot.slane %v206, %v210
    %v214 = vcombine.high %v107, %v107
    %v216 = vunpack.c.l.s4 1966171168
    %v217 = vunpack.c.0.s8 %v216
    %v218 = vlaneseq
    %v219 = vshrl.u32 %v218, 7
    %v220 = vsub.s32 %v217, %v219
    %v221 = vrot.slane %v107, %v220
    %v223 = vunpack.c.l.s4 1966171168
    %v224 = vunpack.c.0.s8 %v223
    %v225 = vlaneseq
    %v226 = vshrl.u32 %v225, 7
    %v227 = vsub.s32 %v224, %v226
    %v228 = vrot.slane %v214, %v227
    %v229 = vcombine.high %v221, %v221
    %v230 = vcombine.high %v228, %v228
    %v232 = vunpack.c.l.s4 1966171168
    %v233 = vunpack.c.0.s8 %v232
    %v234 = vlaneseq
    %v235 = vshrl.u32 %v234, 7
    %v236 = vsub.s32 %v233, %v235
    %v237 = vrot.slane %v221, %v236
    %v239 = vunpack.c.l.s4 1966171168
    %v240 = vunpack.c.0.s8 %v239
    %v241 = vlaneseq
    %v242 = vshrl.u32 %v241, 7
    %v243 = vsub.s32 %v240, %v242
    %v244 = vrot.slane %v228, %v243
    %v246 = vunpack.c.l.s4 1966171168
    %v247 = vunpack.c.0.s8 %v246
    %v248 = vlaneseq
    %v249 = vshrl.u32 %v248, 7
    %v250 = vsub.s32 %v247, %v249
    %v251 = vrot.slane %v229, %v250
    %v253 = vunpack.c.l.s4 1966171168
    %v254 = vunpack.c.0.s8 %v253
    %v255 = vlaneseq
    %v256 = vshrl.u32 %v255, 7
    %v257 = vsub.s32 %v254, %v256
    %v258 = vrot.slane %v230, %v257
    %v259 = vcombine.high %v237, %v237
    %v260 = vcombine.high %v244, %v244
    %v261 = vcombine.high %v251, %v251
    %v366 = vunpack.c.l.b16 %v108
    %v367 = vunpack.c.l.b16 %v109
    %v368 = vunpack.c.l.b16 %v110
    %v369 = vunpack.c.l.b16 %v111
    %v370 = vunpack.c.l.b16 %v112
    %v371 = vunpack.c.l.b16 %v113
    %v372 = vunpack.c.l.b16 %v114
    %v373 = vunpack.c.l.b16 %v115
    %v374 = vunpack.c.l.b16 %v116
    %v375 = vunpack.c.l.b16 %v117
    %v376 = vunpack.c.l.b16 %v118
    %v377 = vunpack.c.l.b16 %v119
    %v378 = vunpack.c.l.b16 %v120
    %v379 = vunpack.c.l.b16 %v121
    %v380 = vunpack.c.l.b16 %v122
    %v381 = vunpack.c.l.b16 %v123
    %v382 = vunpack.c.l.b16 %v124
    %v383 = vunpack.c.l.b16 %v125
    %v384 = vunpack.c.l.b16 %v126
    %v385 = vunpack.c.l.b16 %v127
    %v386 = vunpack.c.l.b16 %v128
    %v387 = vunpack.c.l.b16 %v129
    %v388 = vunpack.c.l.b16 %v130
    %v389 = vunpack.c.l.b16 %v131
    %v390 = vunpack.c.l.b16 %v132
    %v391 = vunpack.c.l.b16 %v133
    %v392 = vunpack.c.l.b16 %v134
    %v393 = vunpack.c.l.b16 %v135
    %v394 = vunpack.c.l.b16 %v136
    %v395 = vunpack.c.l.b16 %v137
    %v396 = vunpack.c.l.b16 %v138
    %v397 = vunpack.c.l.b16 %v139
    %v398 = vunpack.c.l.b16 %v140
    %v399 = vunpack.c.l.b16 %v141
    %v400 = vunpack.c.l.b16 %v142
    %v401 = vunpack.c.l.b16 %v143
    %v402 = vunpack.c.l.b16 %v144
    %v403 = vunpack.c.l.b16 %v145
    %v404 = vunpack.c.l.b16 %v146
    %v405 = vunpack.c.l.b16 %v147
    %v406 = vunpack.c.l.b16 %v148
    %v407 = vunpack.c.l.b16 %v149
    %v408 = vunpack.c.l.b16 %v150
    %v409 = vunpack.c.l.b16 %v151
    %v410 = vunpack.c.l.b16 %v152
    %v411 = vunpack.c.l.b16 %v153
    %v412 = vunpack.c.l.b16 %v154
    %v413 = vunpack.c.l.b16 %v155
    %v414 = vunpack.c.l.b16 %v156
    %v415 = vunpack.c.l.b16 %v157
    %v416 = vunpack.c.l.b16 %v158
    %v417 = vunpack.c.l.b16 %v159
    %v418 = vunpack.c.l.b16 %v160
    %v419 = vunpack.c.l.b16 %v161
    %v420 = vunpack.c.l.b16 %v162
    %v421 = vunpack.c.l.b16 %v163
    %v422 = vunpack.c.l.b16 %v164
    %v423 = vunpack.c.l.b16 %v165
    %v424 = vunpack.c.l.b16 %v166
    %v425 = vunpack.c.l.b16 %v167
    %v426 = vunpack.c.l.b16 %v168
    %v427 = vunpack.c.l.b16 %v169
    %v428 = vunpack.c.l.b16 %v170
    %v429 = vunpack.c.l.b16 %v171
    %v430 = vunpack.c.l.b16 %v172
    %v431 = vunpack.c.l.b16 %v173
    %v432 = vunpack.c.l.b16 %v174
    %v433 = vunpack.c.l.b16 %v175
    %v434 = vunpack.c.l.b16 %v176
    %v435 = vunpack.c.l.b16 %v177
    %v436 = vunpack.c.l.b16 %v178
    %v437 = vunpack.c.l.b16 %v179
    %v438 = vunpack.c.l.b16 %v180
    %v439 = vunpack.c.l.b16 %v181
    %v440 = vunpack.c.l.b16 %v182
    %v441 = vunpack.c.l.b16 %v183
    %v442 = vunpack.c.l.b16 %v184
    %v443 = vunpack.c.l.b16 %v185
    %v444 = vunpack.c.l.b16 %v186
    %v445 = vunpack.c.l.b16 %v187
    %v446 = vunpack.c.l.b16 %v188
    %v447 = vunpack.c.l.b16 %v189
    %v448 = vunpack.c.l.b16 %v190
    %v449 = vunpack.c.l.b16 %v191
    %v450 = vunpack.c.l.b16 %v192
    %v451 = vunpack.c.l.b16 %v193
    %v452 = vunpack.c.l.b16 %v194
    %v453 = vunpack.c.l.b16 %v195
    %v454 = vunpack.c.l.b16 %v196
    %v455 = vunpack.c.l.b16 %v197
    %v456 = vunpack.c.l.b16 %v198
    %v457 = vunpack.c.l.b16 %v199
    %v458 = vunpack.c.l.b16 %v200
    %v459 = vunpack.c.l.b16 %v201
    %v460 = vunpack.c.l.b16 %v202
    %v461 = vunpack.c.l.b16 %v203
    %v462 = vunpack.c.l.b16 %v204
    %v463 = vunpack.c.l.b16 %v205
    %v464 = vpack.c.b16 %v367, %v366
    %v465 = vpack.c.b16 %v369, %v368
    %v466 = vpack.c.b16 %v371, %v370
    %v467 = vpack.c.b16 %v373, %v372
    %v468 = vpack.c.b16 %v375, %v374
    %v469 = vpack.c.b16 %v377, %v376
    %v470 = vpack.c.b16 %v379, %v378
    %v471 = vpack.c.b16 %v381, %v380
    %v472 = vpack.c.b16 %v383, %v382
    %v473 = vpack.c.b16 %v385, %v384
    %v474 = vpack.c.b16 %v387, %v386
    %v475 = vpack.c.b16 %v389, %v388
    %v476 = vpack.c.b16 %v391, %v390
    %v477 = vpack.c.b16 %v393, %v392
    %v478 = vpack.c.b16 %v395, %v394
    %v479 = vpack.c.b16 %v397, %v396
    %v480 = vpack.c.b16 %v399, %v398
    %v481 = vpack.c.b16 %v401, %v400
    %v482 = vpack.c.b16 %v403, %v402
    %v483 = vpack.c.b16 %v405, %v404
    %v484 = vpack.c.b16 %v407, %v406
    %v485 = vpack.c.b16 %v409, %v408
    %v486 = vpack.c.b16 %v411, %v410
    %v487 = vpack.c.b16 %v413, %v412
    %v488 = vpack.c.b16 %v415, %v414
    %v489 = vpack.c.b16 %v417, %v416
    %v490 = vpack.c.b16 %v419, %v418
    %v491 = vpack.c.b16 %v421, %v420
    %v492 = vpack.c.b16 %v423, %v422
    %v493 = vpack.c.b16 %v425, %v424
    %v494 = vpack.c.b16 %v427, %v426
    %v495 = vpack.c.b16 %v429, %v428
    %v496 = vpack.c.b16 %v431, %v430
    %v497 = vpack.c.b16 %v433, %v432
    %v498 = vpack.c.b16 %v435, %v434
    %v499 = vpack.c.b16 %v437, %v436
    %v500 = vpack.c.b16 %v439, %v438
    %v501 = vpack.c.b16 %v441, %v440
    %v502 = vpack.c.b16 %v443, %v442
    %v503 = vpack.c.b16 %v445, %v444
    %v504 = vpack.c.b16 %v447, %v446
    %v505 = vpack.c.b16 %v449, %v448
    %v506 = vpack.c.b16 %v451, %v450
    %v507 = vpack.c.b16 %v453, %v452
    %v508 = vpack.c.b16 %v455, %v454
    %v509 = vpack.c.b16 %v457, %v456
    %v510 = vpack.c.b16 %v459, %v458
    %v511 = vpack.c.b16 %v461, %v460
    %v512 = vpack.c.b16 %v463, %v462
    %vm562 = vcmask 130048
    %v564 = vsel %vm562, %v260, 0
    %566 = vmatprep.subr.bf16.mxu0 0
    %567 = vmatpush1.bf16.msra.mxu0 %v464
    %568 = vmatprep.subr.bf16.mxu0 0
    %569 = vmatpush1.bf16.msra.mxu0 %v465
    %570 = vmatprep.subr.bf16.mxu0 0
    %571 = vmatpush1.bf16.msra.mxu0 %v466
    %572 = vmatprep.subr.bf16.mxu0 0
    %573 = vmatpush1.bf16.msra.mxu0 %v467
    %574 = vmatprep.subr.bf16.mxu0 0
    %575 = vmatpush1.bf16.msra.mxu0 %v468
    %576 = vmatprep.subr.bf16.mxu0 0
    %577 = vmatpush1.bf16.msra.mxu0 %v469
    %578 = vmatprep.subr.bf16.mxu0 0
    %579 = vmatpush1.bf16.msra.mxu0 %v470
    %580 = vmatprep.subr.bf16.mxu0 0
    %581 = vmatpush1.bf16.msra.mxu0 %v471
    %582 = vmatprep.subr.bf16.mxu0 0
    %583 = vmatpush1.bf16.msra.mxu0 %v472
    %584 = vmatprep.subr.bf16.mxu0 0
    %585 = vmatpush1.bf16.msra.mxu0 %v473
    %586 = vmatprep.subr.bf16.mxu0 0
    %587 = vmatpush1.bf16.msra.mxu0 %v474
    %588 = vmatprep.subr.bf16.mxu0 0
    %589 = vmatpush1.bf16.msra.mxu0 %v475
    %590 = vmatprep.subr.bf16.mxu0 0
    %591 = vmatpush1.bf16.msra.mxu0 %v476
    %592 = vmatprep.subr.bf16.mxu0 0
    %593 = vmatpush1.bf16.msra.mxu0 %v477
    %594 = vmatprep.subr.bf16.mxu0 0
    %595 = vmatpush1.bf16.msra.mxu0 %v478
    %596 = vmatprep.subr.bf16.mxu0 0
    %597 = vmatpush1.bf16.msra.mxu0 %v479
    %598 = vmatprep.mubr.bf16.mxu0 %v251
    %599 = vmatmul.mubr.bf16.gmra.mrb[0].mxu0 %v237
    %v600 = vpop.f32.mrb[0].mxu0
    %v601 = vadd.f32 %v211, %v600
    %v602 = vpop.f32.mrb[0].mxu0
    %v603 = vpop.f32.mrb[0].mxu0
    %v604 = vpop.f32.mrb[0].mxu0
    %605 = vdwg.mxu0
    %606 = vmatprep.subr.bf16.mxu0 0
    %607 = vmatpush1.bf16.msra.mxu0 %v480
    %608 = vmatprep.subr.bf16.mxu0 0
    %609 = vmatpush1.bf16.msra.mxu0 %v481
    %610 = vmatprep.subr.bf16.mxu0 0
    %611 = vmatpush1.bf16.msra.mxu0 %v482
    %612 = vmatprep.subr.bf16.mxu0 0
    %613 = vmatpush1.bf16.msra.mxu0 %v483
    %614 = vmatprep.subr.bf16.mxu0 0
    %615 = vmatpush1.bf16.msra.mxu0 %v484
    %616 = vmatprep.subr.bf16.mxu0 0
    %617 = vmatpush1.bf16.msra.mxu0 %v485
    %618 = vmatprep.subr.bf16.mxu0 0
    %619 = vmatpush1.bf16.msra.mxu0 %v486
    %620 = vmatprep.subr.bf16.mxu0 0
    %621 = vmatpush1.bf16.msra.mxu0 %v487
    %622 = vmatprep.subr.bf16.mxu0 0
    %623 = vmatpush1.bf16.msra.mxu0 %v488
    %624 = vmatprep.subr.bf16.mxu0 0
    %625 = vmatpush1.bf16.msra.mxu0 %v489
    %626 = vmatprep.subr.bf16.mxu0 0
    %627 = vmatpush1.bf16.msra.mxu0 %v490
    %628 = vmatprep.subr.bf16.mxu0 0
    %629 = vmatpush1.bf16.msra.mxu0 %v491
    %630 = vmatprep.subr.bf16.mxu0 0
    %631 = vmatpush1.bf16.msra.mxu0 %v492
    %632 = vmatprep.subr.bf16.mxu0 0
    %633 = vmatpush1.bf16.msra.mxu0 %v493
    %634 = vmatprep.subr.bf16.mxu0 0
    %635 = vmatpush1.bf16.msra.mxu0 %v494
    %636 = vmatprep.subr.bf16.mxu0 0
    %637 = vmatpush1.bf16.msra.mxu0 %v495
    %638 = vmatprep.mubr.bf16.mxu0 %v261
    %639 = vmatmul.mubr.bf16.gmra.mrb[0].mxu0 %v259
    %v640 = vpop.f32.mrb[0].mxu0
    %v641 = vadd.f32 %v601, %v640
    %v642 = vpop.f32.mrb[0].mxu0
    %v643 = vpop.f32.mrb[0].mxu0
    %v644 = vpop.f32.mrb[0].mxu0
    %645 = vdwg.mxu0
    %646 = vmatprep.subr.bf16.mxu0 0
    %647 = vmatpush1.bf16.msra.mxu0 %v496
    %648 = vmatprep.subr.bf16.mxu0 0
    %649 = vmatpush1.bf16.msra.mxu0 %v497
    %650 = vmatprep.subr.bf16.mxu0 0
    %651 = vmatpush1.bf16.msra.mxu0 %v498
    %652 = vmatprep.subr.bf16.mxu0 0
    %653 = vmatpush1.bf16.msra.mxu0 %v499
    %654 = vmatprep.subr.bf16.mxu0 0
    %655 = vmatpush1.bf16.msra.mxu0 %v500
    %656 = vmatprep.subr.bf16.mxu0 0
    %657 = vmatpush1.bf16.msra.mxu0 %v501
    %658 = vmatprep.subr.bf16.mxu0 0
    %659 = vmatpush1.bf16.msra.mxu0 %v502
    %660 = vmatprep.subr.bf16.mxu0 0
    %661 = vmatpush1.bf16.msra.mxu0 %v503
    %662 = vmatprep.subr.bf16.mxu0 0
    %663 = vmatpush1.bf16.msra.mxu0 %v504
    %664 = vmatprep.subr.bf16.mxu0 0
    %665 = vmatpush1.bf16.msra.mxu0 %v505
    %666 = vmatprep.subr.bf16.mxu0 0
    %667 = vmatpush1.bf16.msra.mxu0 %v506
    %668 = vmatprep.subr.bf16.mxu0 0
    %669 = vmatpush1.bf16.msra.mxu0 %v507
    %670 = vmatprep.subr.bf16.mxu0 0
    %671 = vmatpush1.bf16.msra.mxu0 %v508
    %672 = vmatprep.subr.bf16.mxu0 0
    %673 = vmatpush1.bf16.msra.mxu0 %v509
    %674 = vmatprep.subr.bf16.mxu0 0
    %675 = vmatpush1.bf16.msra.mxu0 %v510
    %676 = vmatprep.subr.bf16.mxu0 0
    %677 = vmatpush1.bf16.msra.mxu0 %v511
    %678 = vmatprep.mubr.bf16.mxu0 %v258
    %679 = vmatmul.mubr.bf16.gmra.mrb[0].mxu0 %v244
    %v680 = vpop.f32.mrb[0].mxu0
    %v681 = vadd.f32 %v641, %v680
    %v682 = vpop.f32.mrb[0].mxu0
    %v683 = vpop.f32.mrb[0].mxu0
    %v684 = vpop.f32.mrb[0].mxu0
    %685 = vdwg.mxu0
    %686 = vmatprep.subr.bf16.mxu0 0
    %687 = vmatpush1.bf16.msra.mxu0 %v512
    %688 = vmatprep.subr.bf16.mxu0 0
    %689 = vmatpush1.bf16.msra.mxu0 0
    %690 = vmatprep.subr.bf16.mxu0 0
    %691 = vmatpush1.bf16.msra.mxu0 0
    %692 = vmatprep.subr.bf16.mxu0 0
    %693 = vmatpush1.bf16.msra.mxu0 0
    %694 = vmatprep.subr.bf16.mxu0 0
    %695 = vmatpush1.bf16.msra.mxu0 0
    %696 = vmatprep.subr.bf16.mxu0 0
    %697 = vmatpush1.bf16.msra.mxu0 0
    %698 = vmatprep.subr.bf16.mxu0 0
    %699 = vmatpush1.bf16.msra.mxu0 0
    %700 = vmatprep.subr.bf16.mxu0 0
    %701 = vmatpush1.bf16.msra.mxu0 0
    %702 = vmatprep.subr.bf16.mxu0 0
    %703 = vmatpush1.bf16.msra.mxu0 0
    %704 = vmatprep.subr.bf16.mxu0 0
    %705 = vmatpush1.bf16.msra.mxu0 0
    %706 = vmatprep.subr.bf16.mxu0 0
    %707 = vmatpush1.bf16.msra.mxu0 0
    %708 = vmatprep.subr.bf16.mxu0 0
    %709 = vmatpush1.bf16.msra.mxu0 0
    %710 = vmatprep.subr.bf16.mxu0 0
    %711 = vmatpush1.bf16.msra.mxu0 0
    %712 = vmatprep.subr.bf16.mxu0 0
    %713 = vmatpush1.bf16.msra.mxu0 0
    %714 = vmatprep.subr.bf16.mxu0 0
    %715 = vmatpush1.bf16.msra.mxu0 0
    %716 = vmatprep.subr.bf16.mxu0 0
    %717 = vmatpush1.bf16.msra.mxu0 0
    %718 = vmatprep.mubr.bf16.mxu0 0
    %719 = vmatmul.mubr.bf16.gmra.mrb[0].mxu0 %v564
    %v720 = vpop.f32.mrb[0].mxu0
    %v721 = vadd.f32 %v681, %v720
    %v722 = vpop.f32.mrb[0].mxu0
    %v723 = vpop.f32.mrb[0].mxu0
    %v724 = vpop.f32.mrb[0].mxu0
    %725 = vdwg.mxu0
    %v726 = vmax.f32 %v721, 0.0
    %v727 = vld [vmem:[%s3] sm:$0xf]
    %v728 = vld [vmem:[%s3 + $0x4] sm:$0xf]
    %v729 = vld [vmem:[%s3 + $0x8] sm:$0xf]
    %v730 = vld [vmem:[%s3 + $0xc] sm:$0xf]
    %v731 = vld [vmem:[%s3 + $0x10] sm:$0xf]
    %v732 = vld [vmem:[%s3 + $0x14] sm:$0xf]
    %v733 = vld [vmem:[%s3 + $0x18] sm:$0xf]
    %v734 = vld [vmem:[%s3 + $0x1c] sm:$0xf]
    %v735 = vld [vmem:[%s3 + $0x20] sm:$0xf]
    %v736 = vld [vmem:[%s3 + $0x24] sm:$0xf]
    %v737 = vld [vmem:[%s3 + $0x28] sm:$0xf]
    %v738 = vld [vmem:[%s3 + $0x2c] sm:$0xf]
    %v739 = vld [vmem:[%s3 + $0x30] sm:$0xf]
    %v740 = vld [vmem:[%s3 + $0x34] sm:$0xf]
    %v741 = vld [vmem:[%s3 + $0x38] sm:$0xf]
    %v742 = vld [vmem:[%s3 + $0x3c] sm:$0xf]
    %v743 = vld [vmem:[%s4] sm:$0x1]
    %v744 = vpack.c.bf16 %v726, %v726
    %v746 = vlaneseq
    %v747 = vshrl.u32 %v746, 7
    %v748 = vsub.s32 0, %v747
    %v749 = vrot.slane %v743, %v748
    %v767 = vunpack.c.l.b16 %v727
    %v768 = vunpack.c.l.b16 %v728
    %v769 = vunpack.c.l.b16 %v729
    %v770 = vunpack.c.l.b16 %v730
    %v771 = vunpack.c.l.b16 %v731
    %v772 = vunpack.c.l.b16 %v732
    %v773 = vunpack.c.l.b16 %v733
    %v774 = vunpack.c.l.b16 %v734
    %v775 = vunpack.c.l.b16 %v735
    %v776 = vunpack.c.l.b16 %v736
    %v777 = vunpack.c.l.b16 %v737
    %v778 = vunpack.c.l.b16 %v738
    %v779 = vunpack.c.l.b16 %v739
    %v780 = vunpack.c.l.b16 %v740
    %v781 = vunpack.c.l.b16 %v741
    %v782 = vunpack.c.l.b16 %v742
    %v783 = vpack.c.b16 %v768, %v767
    %v784 = vpack.c.b16 %v770, %v769
    %v785 = vpack.c.b16 %v772, %v771
    %v786 = vpack.c.b16 %v774, %v773
    %v787 = vpack.c.b16 %v776, %v775
    %v788 = vpack.c.b16 %v778, %v777
    %v789 = vpack.c.b16 %v780, %v779
    %v790 = vpack.c.b16 %v782, %v781
    %799 = vmatprep.subr.bf16.mxu0 0
    %800 = vmatpush1.bf16.msra.mxu0 %v783
    %801 = vmatprep.subr.bf16.mxu0 0
    %802 = vmatpush1.bf16.msra.mxu0 %v784
    %803 = vmatprep.subr.bf16.mxu0 0
    %804 = vmatpush1.bf16.msra.mxu0 %v785
    %805 = vmatprep.subr.bf16.mxu0 0
    %806 = vmatpush1.bf16.msra.mxu0 %v786
    %807 = vmatprep.subr.bf16.mxu0 0
    %808 = vmatpush1.bf16.msra.mxu0 %v787
    %809 = vmatprep.subr.bf16.mxu0 0
    %810 = vmatpush1.bf16.msra.mxu0 %v788
    %811 = vmatprep.subr.bf16.mxu0 0
    %812 = vmatpush1.bf16.msra.mxu0 %v789
    %813 = vmatprep.subr.bf16.mxu0 0
    %814 = vmatpush1.bf16.msra.mxu0 %v790
    %815 = vmatprep.subr.bf16.mxu0 0
    %816 = vmatpush1.bf16.msra.mxu0 0
    %817 = vmatprep.subr.bf16.mxu0 0
    %818 = vmatpush1.bf16.msra.mxu0 0
    %819 = vmatprep.subr.bf16.mxu0 0
    %820 = vmatpush1.bf16.msra.mxu0 0
    %821 = vmatprep.subr.bf16.mxu0 0
    %822 = vmatpush1.bf16.msra.mxu0 0
    %823 = vmatprep.subr.bf16.mxu0 0
    %824 = vmatpush1.bf16.msra.mxu0 0
    %825 = vmatprep.subr.bf16.mxu0 0
    %826 = vmatpush1.bf16.msra.mxu0 0
    %827 = vmatprep.subr.bf16.mxu0 0
    %828 = vmatpush1.bf16.msra.mxu0 0
    %829 = vmatprep.subr.bf16.mxu0 0
    %830 = vmatpush1.bf16.msra.mxu0 0
    %831 = vmatprep.mubr.bf16.mxu0 0
    %832 = vmatmul.mubr.bf16.gmra.mrb[0].mxu0 %v744
    %v833 = vpop.f32.mrb[0].mxu0
    %v834 = vadd.f32 %v749, %v833
    %v835 = vpop.f32.mrb[0].mxu0
    %v836 = vpop.f32.mrb[0].mxu0
    %v837 = vpop.f32.mrb[0].mxu0
    %838 = vdwg.mxu0
    %v839 = vmax.f32 %v834, 0.0
    %v840 = vld [vmem:[%s5] sm:$0xf]
    %v841 = vld [vmem:[%s5 + $0x4] sm:$0xf]
    %v842 = vld [vmem:[%s5 + $0x8] sm:$0xf]
    %v843 = vld [vmem:[%s5 + $0xc] sm:$0xf]
    %v844 = vld [vmem:[%s5 + $0x10] sm:$0xf]
    %v845 = vld [vmem:[%s5 + $0x14] sm:$0xf]
    %v846 = vld [vmem:[%s5 + $0x18] sm:$0xf]
    %v847 = vld [vmem:[%s5 + $0x1c] sm:$0xf]
    %v848 = vld [vmem:[%s5 + $0x20] sm:$0xf]
    %v849 = vld [vmem:[%s5 + $0x24] sm:$0xf]
    %v850 = vld [vmem:[%s5 + $0x28] sm:$0xf]
    %v851 = vld [vmem:[%s5 + $0x2c] sm:$0xf]
    %v852 = vld [vmem:[%s5 + $0x30] sm:$0xf]
    %v853 = vld [vmem:[%s5 + $0x34] sm:$0xf]
    %v854 = vld [vmem:[%s5 + $0x38] sm:$0xf]
    %v855 = vld [vmem:[%s5 + $0x3c] sm:$0xf]
    %v856 = vld [vmem:[%s6] sm:$0x1]
    %v857 = vpack.c.bf16 %v839, %v839
    %v859 = vlaneseq
    %v860 = vshrl.u32 %v859, 7
    %v861 = vsub.s32 0, %v860
    %v862 = vrot.slane %v856, %v861
    %v880 = vunpack.c.l.b16 %v840
    %v881 = vunpack.c.l.b16 %v841
    %v882 = vunpack.c.l.b16 %v842
    %v883 = vunpack.c.l.b16 %v843
    %v884 = vunpack.c.l.b16 %v844
    %v885 = vunpack.c.l.b16 %v845
    %v886 = vunpack.c.l.b16 %v846
    %v887 = vunpack.c.l.b16 %v847
    %v888 = vunpack.c.l.b16 %v848
    %v889 = vunpack.c.l.b16 %v849
    %v890 = vunpack.c.l.b16 %v850
    %v891 = vunpack.c.l.b16 %v851
    %v892 = vunpack.c.l.b16 %v852
    %v893 = vunpack.c.l.b16 %v853
    %v894 = vunpack.c.l.b16 %v854
    %v895 = vunpack.c.l.b16 %v855
    %v896 = vpack.c.b16 %v881, %v880
    %v897 = vpack.c.b16 %v883, %v882
    %v898 = vpack.c.b16 %v885, %v884
    %v899 = vpack.c.b16 %v887, %v886
    %v900 = vpack.c.b16 %v889, %v888
    %v901 = vpack.c.b16 %v891, %v890
    %v902 = vpack.c.b16 %v893, %v892
    %v903 = vpack.c.b16 %v895, %v894
    %912 = vmatprep.subr.bf16.mxu0 0
    %913 = vmatpush1.bf16.msra.mxu0 %v896
    %914 = vmatprep.subr.bf16.mxu0 0
    %915 = vmatpush1.bf16.msra.mxu0 %v897
    %916 = vmatprep.subr.bf16.mxu0 0
    %917 = vmatpush1.bf16.msra.mxu0 %v898
    %918 = vmatprep.subr.bf16.mxu0 0
    %919 = vmatpush1.bf16.msra.mxu0 %v899
    %920 = vmatprep.subr.bf16.mxu0 0
    %921 = vmatpush1.bf16.msra.mxu0 %v900
    %922 = vmatprep.subr.bf16.mxu0 0
    %923 = vmatpush1.bf16.msra.mxu0 %v901
    %924 = vmatprep.subr.bf16.mxu0 0
    %925 = vmatpush1.bf16.msra.mxu0 %v902
    %926 = vmatprep.subr.bf16.mxu0 0
    %927 = vmatpush1.bf16.msra.mxu0 %v903
    %928 = vmatprep.subr.bf16.mxu0 0
    %929 = vmatpush1.bf16.msra.mxu0 0
    %930 = vmatprep.subr.bf16.mxu0 0
    %931 = vmatpush1.bf16.msra.mxu0 0
    %932 = vmatprep.subr.bf16.mxu0 0
    %933 = vmatpush1.bf16.msra.mxu0 0
    %934 = vmatprep.subr.bf16.mxu0 0
    %935 = vmatpush1.bf16.msra.mxu0 0
    %936 = vmatprep.subr.bf16.mxu0 0
    %937 = vmatpush1.bf16.msra.mxu0 0
    %938 = vmatprep.subr.bf16.mxu0 0
    %939 = vmatpush1.bf16.msra.mxu0 0
    %940 = vmatprep.subr.bf16.mxu0 0
    %941 = vmatpush1.bf16.msra.mxu0 0
    %942 = vmatprep.subr.bf16.mxu0 0
    %943 = vmatpush1.bf16.msra.mxu0 0
    %944 = vmatprep.mubr.bf16.mxu0 0
    %945 = vmatmul.mubr.bf16.gmra.mrb[0].mxu0 %v857
    %v946 = vpop.f32.mrb[0].mxu0
    %v947 = vadd.f32 %v862, %v946
    %v948 = vpop.f32.mrb[0].mxu0
    %v949 = vpop.f32.mrb[0].mxu0
    %v950 = vpop.f32.mrb[0].mxu0
    %951 = vdwg.mxu0
    %v952 = vmax.f32 %v947, 0.0
    %v953 = vld [vmem:[%s7] sm:$0xf]
    %v954 = vld [vmem:[%s7 + $0x4] sm:$0xf]
    %v955 = vld [vmem:[%s7 + $0x8] sm:$0xf]
    %v956 = vld [vmem:[%s7 + $0xc] sm:$0xf]
    %v957 = vld [vmem:[%s7 + $0x10] sm:$0xf]
    %v958 = vld [vmem:[%s7 + $0x14] sm:$0xf]
    %v959 = vld [vmem:[%s7 + $0x18] sm:$0xf]
    %v960 = vld [vmem:[%s7 + $0x1c] sm:$0xf]
    %v961 = vld [vmem:[%s7 + $0x20] sm:$0xf]
    %v962 = vld [vmem:[%s7 + $0x24] sm:$0xf]
    %v963 = vld [vmem:[%s7 + $0x28] sm:$0xf]
    %v964 = vld [vmem:[%s7 + $0x2c] sm:$0xf]
    %v965 = vld [vmem:[%s7 + $0x30] sm:$0xf]
    %v966 = vld [vmem:[%s7 + $0x34] sm:$0xf]
    %v967 = vld [vmem:[%s7 + $0x38] sm:$0xf]
    %v968 = vld [vmem:[%s7 + $0x3c] sm:$0xf]
    %v969 = vld [vmem:[%s8] sm:$0x1]
    %v970 = vpack.c.bf16 %v952, %v952
    %v972 = vlaneseq
    %v973 = vshrl.u32 %v972, 7
    %v974 = vsub.s32 0, %v973
    %v975 = vrot.slane %v969, %v974
    %v993 = vunpack.c.l.b16 %v953
    %v994 = vunpack.c.l.b16 %v954
    %v995 = vunpack.c.l.b16 %v955
    %v996 = vunpack.c.l.b16 %v956
    %v997 = vunpack.c.l.b16 %v957
    %v998 = vunpack.c.l.b16 %v958
    %v999 = vunpack.c.l.b16 %v959
    %v1000 = vunpack.c.l.b16 %v960
    %v1001 = vunpack.c.l.b16 %v961
    %v1002 = vunpack.c.l.b16 %v962
    %v1003 = vunpack.c.l.b16 %v963
    %v1004 = vunpack.c.l.b16 %v964
    %v1005 = vunpack.c.l.b16 %v965
    %v1006 = vunpack.c.l.b16 %v966
    %v1007 = vunpack.c.l.b16 %v967
    %v1008 = vunpack.c.l.b16 %v968
    %v1009 = vpack.c.b16 %v994, %v993
    %v1010 = vpack.c.b16 %v996, %v995
    %v1011 = vpack.c.b16 %v998, %v997
    %v1012 = vpack.c.b16 %v1000, %v999
    %v1013 = vpack.c.b16 %v1002, %v1001
    %v1014 = vpack.c.b16 %v1004, %v1003
    %v1015 = vpack.c.b16 %v1006, %v1005
    %v1016 = vpack.c.b16 %v1008, %v1007
    %1025 = vmatprep.subr.bf16.mxu0 0
    %1026 = vmatpush1.bf16.msra.mxu0 %v1009
    %1027 = vmatprep.subr.bf16.mxu0 0
    %1028 = vmatpush1.bf16.msra.mxu0 %v1010
    %1029 = vmatprep.subr.bf16.mxu0 0
    %1030 = vmatpush1.bf16.msra.mxu0 %v1011
    %1031 = vmatprep.subr.bf16.mxu0 0
    %1032 = vmatpush1.bf16.msra.mxu0 %v1012
    %1033 = vmatprep.subr.bf16.mxu0 0
    %1034 = vmatpush1.bf16.msra.mxu0 %v1013
    %1035 = vmatprep.subr.bf16.mxu0 0
    %1036 = vmatpush1.bf16.msra.mxu0 %v1014
    %1037 = vmatprep.subr.bf16.mxu0 0
    %1038 = vmatpush1.bf16.msra.mxu0 %v1015
    %1039 = vmatprep.subr.bf16.mxu0 0
    %1040 = vmatpush1.bf16.msra.mxu0 %v1016
    %1041 = vmatprep.subr.bf16.mxu0 0
    %1042 = vmatpush1.bf16.msra.mxu0 0
    %1043 = vmatprep.subr.bf16.mxu0 0
    %1044 = vmatpush1.bf16.msra.mxu0 0
    %1045 = vmatprep.subr.bf16.mxu0 0
    %1046 = vmatpush1.bf16.msra.mxu0 0
    %1047 = vmatprep.subr.bf16.mxu0 0
    %1048 = vmatpush1.bf16.msra.mxu0 0
    %1049 = vmatprep.subr.bf16.mxu0 0
    %1050 = vmatpush1.bf16.msra.mxu0 0
    %1051 = vmatprep.subr.bf16.mxu0 0
    %1052 = vmatpush1.bf16.msra.mxu0 0
    %1053 = vmatprep.subr.bf16.mxu0 0
    %1054 = vmatpush1.bf16.msra.mxu0 0
    %1055 = vmatprep.subr.bf16.mxu0 0
    %1056 = vmatpush1.bf16.msra.mxu0 0
    %1057 = vmatprep.mubr.bf16.mxu0 0
    %1058 = vmatmul.mubr.bf16.gmra.mrb[0].mxu0 %v970
    %v1059 = vpop.f32.mrb[0].mxu0
    %v1060 = vadd.f32 %v975, %v1059
    %v1061 = vpop.f32.mrb[0].mxu0
    %v1062 = vpop.f32.mrb[0].mxu0
    %v1063 = vpop.f32.mrb[0].mxu0
    %1064 = vdwg.mxu0
    %v1065 = vmax.f32 %v1060, 0.0
    %v1066 = vld [vmem:[%s9] sm:$0xf]
    %v1067 = vld [vmem:[%s9 + $0x4] sm:$0xf]
    %v1068 = vld [vmem:[%s9 + $0x8] sm:$0xf]
    %v1069 = vld [vmem:[%s9 + $0xc] sm:$0xf]
    %v1070 = vld [vmem:[%s9 + $0x10] sm:$0xf]
    %v1071 = vld [vmem:[%s9 + $0x14] sm:$0xf]
    %v1072 = vld [vmem:[%s9 + $0x18] sm:$0xf]
    %v1073 = vld [vmem:[%s9 + $0x1c] sm:$0xf]
    %v1074 = vld [vmem:[%s9 + $0x20] sm:$0xf]
    %v1075 = vld [vmem:[%s9 + $0x24] sm:$0xf]
    %v1076 = vld [vmem:[%s9 + $0x28] sm:$0xf]
    %v1077 = vld [vmem:[%s9 + $0x2c] sm:$0xf]
    %v1078 = vld [vmem:[%s9 + $0x30] sm:$0xf]
    %v1079 = vld [vmem:[%s9 + $0x34] sm:$0xf]
    %v1080 = vld [vmem:[%s9 + $0x38] sm:$0xf]
    %v1081 = vld [vmem:[%s9 + $0x3c] sm:$0xf]
    %v1082 = vld [vmem:[%s10] sm:$0x1]
    %v1083 = vpack.c.bf16 %v1065, %v1065
    %v1085 = vlaneseq
    %v1086 = vshrl.u32 %v1085, 7
    %v1087 = vsub.s32 0, %v1086
    %v1088 = vrot.slane %v1082, %v1087
    %v1106 = vunpack.c.l.b16 %v1066
    %v1107 = vunpack.c.l.b16 %v1067
    %v1108 = vunpack.c.l.b16 %v1068
    %v1109 = vunpack.c.l.b16 %v1069
    %v1110 = vunpack.c.l.b16 %v1070
    %v1111 = vunpack.c.l.b16 %v1071
    %v1112 = vunpack.c.l.b16 %v1072
    %v1113 = vunpack.c.l.b16 %v1073
    %v1114 = vunpack.c.l.b16 %v1074
    %v1115 = vunpack.c.l.b16 %v1075
    %v1116 = vunpack.c.l.b16 %v1076
    %v1117 = vunpack.c.l.b16 %v1077
    %v1118 = vunpack.c.l.b16 %v1078
    %v1119 = vunpack.c.l.b16 %v1079
    %v1120 = vunpack.c.l.b16 %v1080
    %v1121 = vunpack.c.l.b16 %v1081
    %v1122 = vpack.c.b16 %v1107, %v1106
    %v1123 = vpack.c.b16 %v1109, %v1108
    %v1124 = vpack.c.b16 %v1111, %v1110
    %v1125 = vpack.c.b16 %v1113, %v1112
    %v1126 = vpack.c.b16 %v1115, %v1114
    %v1127 = vpack.c.b16 %v1117, %v1116
    %v1128 = vpack.c.b16 %v1119, %v1118
    %v1129 = vpack.c.b16 %v1121, %v1120
    %1138 = vmatprep.subr.bf16.mxu0 0
    %1139 = vmatpush1.bf16.msra.mxu0 %v1122
    %1140 = vmatprep.subr.bf16.mxu0 0
    %1141 = vmatpush1.bf16.msra.mxu0 %v1123
    %1142 = vmatprep.subr.bf16.mxu0 0
    %1143 = vmatpush1.bf16.msra.mxu0 %v1124
    %1144 = vmatprep.subr.bf16.mxu0 0
    %1145 = vmatpush1.bf16.msra.mxu0 %v1125
    %1146 = vmatprep.subr.bf16.mxu0 0
    %1147 = vmatpush1.bf16.msra.mxu0 %v1126
    %1148 = vmatprep.subr.bf16.mxu0 0
    %1149 = vmatpush1.bf16.msra.mxu0 %v1127
    %1150 = vmatprep.subr.bf16.mxu0 0
    %1151 = vmatpush1.bf16.msra.mxu0 %v1128
    %1152 = vmatprep.subr.bf16.mxu0 0
    %1153 = vmatpush1.bf16.msra.mxu0 %v1129
    %1154 = vmatprep.subr.bf16.mxu0 0
    %1155 = vmatpush1.bf16.msra.mxu0 0
    %1156 = vmatprep.subr.bf16.mxu0 0
    %1157 = vmatpush1.bf16.msra.mxu0 0
    %1158 = vmatprep.subr.bf16.mxu0 0
    %1159 = vmatpush1.bf16.msra.mxu0 0
    %1160 = vmatprep.subr.bf16.mxu0 0
    %1161 = vmatpush1.bf16.msra.mxu0 0
    %1162 = vmatprep.subr.bf16.mxu0 0
    %1163 = vmatpush1.bf16.msra.mxu0 0
    %1164 = vmatprep.subr.bf16.mxu0 0
    %1165 = vmatpush1.bf16.msra.mxu0 0
    %1166 = vmatprep.subr.bf16.mxu0 0
    %1167 = vmatpush1.bf16.msra.mxu0 0
    %1168 = vmatprep.subr.bf16.mxu0 0
    %1169 = vmatpush1.bf16.msra.mxu0 0
    %1170 = vmatprep.mubr.bf16.mxu0 0
    %1171 = vmatmul.mubr.bf16.gmra.mrb[0].mxu0 %v1083
    %v1172 = vpop.f32.mrb[0].mxu0
    %v1173 = vadd.f32 %v1088, %v1172
    %v1174 = vpop.f32.mrb[0].mxu0
    %v1175 = vpop.f32.mrb[0].mxu0
    %v1176 = vpop.f32.mrb[0].mxu0
    %1177 = vdwg.mxu0
    %v1178 = vld [vmem:[%s11] sm:$0xf]
    %v1179 = vld [vmem:[%s11 + $0x4] sm:$0xf]
    %v1180 = vld [vmem:[%s11 + $0x8] sm:$0xf]
    %v1181 = vld [vmem:[%s11 + $0xc] sm:$0xf]
    %v1182 = vld [vmem:[%s11 + $0x10] sm:$0xf]
    %v1183 = vld [vmem:[%s11 + $0x14] sm:$0xf]
    %v1184 = vld [vmem:[%s11 + $0x18] sm:$0xf]
    %v1185 = vld [vmem:[%s11 + $0x1c] sm:$0xf]
    %v1186 = vld [vmem:[%s11 + $0x20] sm:$0xf]
    %v1187 = vld [vmem:[%s11 + $0x24] sm:$0xf]
    %v1188 = vld [vmem:[%s11 + $0x28] sm:$0xf]
    %v1189 = vld [vmem:[%s11 + $0x2c] sm:$0xf]
    %v1190 = vld [vmem:[%s11 + $0x30] sm:$0xf]
    %v1191 = vld [vmem:[%s11 + $0x34] sm:$0xf]
    %v1192 = vld [vmem:[%s11 + $0x38] sm:$0xf]
    %v1193 = vld [vmem:[%s11 + $0x3c] sm:$0xf]
    %v1194 = vld [vmem:[%s12] sm:$0x1]
    %v1195 = vpack.c.bf16 %v1173, %v1173
    %v1197 = vlaneseq
    %v1198 = vshrl.u32 %v1197, 7
    %v1199 = vsub.s32 0, %v1198
    %v1200 = vrot.slane %v1194, %v1199
    %v1218 = vunpack.c.l.b16 %v1178
    %v1219 = vunpack.c.l.b16 %v1179
    %v1220 = vunpack.c.l.b16 %v1180
    %v1221 = vunpack.c.l.b16 %v1181
    %v1222 = vunpack.c.l.b16 %v1182
    %v1223 = vunpack.c.l.b16 %v1183
    %v1224 = vunpack.c.l.b16 %v1184
    %v1225 = vunpack.c.l.b16 %v1185
    %v1226 = vunpack.c.l.b16 %v1186
    %v1227 = vunpack.c.l.b16 %v1187
    %v1228 = vunpack.c.l.b16 %v1188
    %v1229 = vunpack.c.l.b16 %v1189
    %v1230 = vunpack.c.l.b16 %v1190
    %v1231 = vunpack.c.l.b16 %v1191
    %v1232 = vunpack.c.l.b16 %v1192
    %v1233 = vunpack.c.l.b16 %v1193
    %v1234 = vpack.c.b16 %v1219, %v1218
    %v1235 = vpack.c.b16 %v1221, %v1220
    %v1236 = vpack.c.b16 %v1223, %v1222
    %v1237 = vpack.c.b16 %v1225, %v1224
    %v1238 = vpack.c.b16 %v1227, %v1226
    %v1239 = vpack.c.b16 %v1229, %v1228
    %v1240 = vpack.c.b16 %v1231, %v1230
    %v1241 = vpack.c.b16 %v1233, %v1232
    %1250 = vmatprep.subr.bf16.mxu0 0
    %1251 = vmatpush1.bf16.msra.mxu0 %v1234
    %1252 = vmatprep.subr.bf16.mxu0 0
    %1253 = vmatpush1.bf16.msra.mxu0 %v1235
    %1254 = vmatprep.subr.bf16.mxu0 0
    %1255 = vmatpush1.bf16.msra.mxu0 %v1236
    %1256 = vmatprep.subr.bf16.mxu0 0
    %1257 = vmatpush1.bf16.msra.mxu0 %v1237
    %1258 = vmatprep.subr.bf16.mxu0 0
    %1259 = vmatpush1.bf16.msra.mxu0 %v1238
    %1260 = vmatprep.subr.bf16.mxu0 0
    %1261 = vmatpush1.bf16.msra.mxu0 %v1239
    %1262 = vmatprep.subr.bf16.mxu0 0
    %1263 = vmatpush1.bf16.msra.mxu0 %v1240
    %1264 = vmatprep.subr.bf16.mxu0 0
    %1265 = vmatpush1.bf16.msra.mxu0 %v1241
    %1266 = vmatprep.subr.bf16.mxu0 0
    %1267 = vmatpush1.bf16.msra.mxu0 0
    %1268 = vmatprep.subr.bf16.mxu0 0
    %1269 = vmatpush1.bf16.msra.mxu0 0
    %1270 = vmatprep.subr.bf16.mxu0 0
    %1271 = vmatpush1.bf16.msra.mxu0 0
    %1272 = vmatprep.subr.bf16.mxu0 0
    %1273 = vmatpush1.bf16.msra.mxu0 0
    %1274 = vmatprep.subr.bf16.mxu0 0
    %1275 = vmatpush1.bf16.msra.mxu0 0
    %1276 = vmatprep.subr.bf16.mxu0 0
    %1277 = vmatpush1.bf16.msra.mxu0 0
    %1278 = vmatprep.subr.bf16.mxu0 0
    %1279 = vmatpush1.bf16.msra.mxu0 0
    %1280 = vmatprep.subr.bf16.mxu0 0
    %1281 = vmatpush1.bf16.msra.mxu0 0
    %1282 = vmatprep.mubr.bf16.mxu0 0
    %1283 = vmatmul.mubr.bf16.gmra.mrb[0].mxu0 %v1195
    %v1284 = vpop.f32.mrb[0].mxu0
    %v1285 = vadd.f32 %v1200, %v1284
    %v1286 = vpop.f32.mrb[0].mxu0
    %v1287 = vpop.f32.mrb[0].mxu0
    %v1288 = vpop.f32.mrb[0].mxu0
    %1289 = vdwg.mxu0
    %v1290 = vmax.f32 %v1285, 0.0
    %v1291 = vld [vmem:[%s13] sm:$0xf]
    %v1292 = vld [vmem:[%s13 + $0x4] sm:$0xf]
    %v1293 = vld [vmem:[%s13 + $0x8] sm:$0xf]
    %v1294 = vld [vmem:[%s13 + $0xc] sm:$0xf]
    %v1295 = vld [vmem:[%s13 + $0x10] sm:$0xf]
    %v1296 = vld [vmem:[%s13 + $0x14] sm:$0xf]
    %v1297 = vld [vmem:[%s13 + $0x18] sm:$0xf]
    %v1298 = vld [vmem:[%s13 + $0x1c] sm:$0xf]
    %v1299 = vld [vmem:[%s13 + $0x20] sm:$0xf]
    %v1300 = vld [vmem:[%s13 + $0x24] sm:$0xf]
    %v1301 = vld [vmem:[%s13 + $0x28] sm:$0xf]
    %v1302 = vld [vmem:[%s13 + $0x2c] sm:$0xf]
    %v1303 = vld [vmem:[%s13 + $0x30] sm:$0xf]
    %v1304 = vld [vmem:[%s13 + $0x34] sm:$0xf]
    %v1305 = vld [vmem:[%s13 + $0x38] sm:$0xf]
    %v1306 = vld [vmem:[%s13 + $0x3c] sm:$0xf]
    %v1307 = vld [vmem:[%s14] sm:$0x1]
    %v1308 = vpack.c.bf16 %v1290, %v1290
    %v1310 = vlaneseq
    %v1311 = vshrl.u32 %v1310, 7
    %v1312 = vsub.s32 0, %v1311
    %v1313 = vrot.slane %v1307, %v1312
    %v1331 = vunpack.c.l.b16 %v1291
    %v1332 = vunpack.c.l.b16 %v1292
    %v1333 = vunpack.c.l.b16 %v1293
    %v1334 = vunpack.c.l.b16 %v1294
    %v1335 = vunpack.c.l.b16 %v1295
    %v1336 = vunpack.c.l.b16 %v1296
    %v1337 = vunpack.c.l.b16 %v1297
    %v1338 = vunpack.c.l.b16 %v1298
    %v1339 = vunpack.c.l.b16 %v1299
    %v1340 = vunpack.c.l.b16 %v1300
    %v1341 = vunpack.c.l.b16 %v1301
    %v1342 = vunpack.c.l.b16 %v1302
    %v1343 = vunpack.c.l.b16 %v1303
    %v1344 = vunpack.c.l.b16 %v1304
    %v1345 = vunpack.c.l.b16 %v1305
    %v1346 = vunpack.c.l.b16 %v1306
    %v1347 = vpack.c.b16 %v1332, %v1331
    %v1348 = vpack.c.b16 %v1334, %v1333
    %v1349 = vpack.c.b16 %v1336, %v1335
    %v1350 = vpack.c.b16 %v1338, %v1337
    %v1351 = vpack.c.b16 %v1340, %v1339
    %v1352 = vpack.c.b16 %v1342, %v1341
    %v1353 = vpack.c.b16 %v1344, %v1343
    %v1354 = vpack.c.b16 %v1346, %v1345
    %1363 = vmatprep.subr.bf16.mxu0 0
    %1364 = vmatpush1.bf16.msra.mxu0 %v1347
    %1365 = vmatprep.subr.bf16.mxu0 0
    %1366 = vmatpush1.bf16.msra.mxu0 %v1348
    %1367 = vmatprep.subr.bf16.mxu0 0
    %1368 = vmatpush1.bf16.msra.mxu0 %v1349
    %1369 = vmatprep.subr.bf16.mxu0 0
    %1370 = vmatpush1.bf16.msra.mxu0 %v1350
    %1371 = vmatprep.subr.bf16.mxu0 0
    %1372 = vmatpush1.bf16.msra.mxu0 %v1351
    %1373 = vmatprep.subr.bf16.mxu0 0
    %1374 = vmatpush1.bf16.msra.mxu0 %v1352
    %1375 = vmatprep.subr.bf16.mxu0 0
    %1376 = vmatpush1.bf16.msra.mxu0 %v1353
    %1377 = vmatprep.subr.bf16.mxu0 0
    %1378 = vmatpush1.bf16.msra.mxu0 %v1354
    %1379 = vmatprep.subr.bf16.mxu0 0
    %1380 = vmatpush1.bf16.msra.mxu0 0
    %1381 = vmatprep.subr.bf16.mxu0 0
    %1382 = vmatpush1.bf16.msra.mxu0 0
    %1383 = vmatprep.subr.bf16.mxu0 0
    %1384 = vmatpush1.bf16.msra.mxu0 0
    %1385 = vmatprep.subr.bf16.mxu0 0
    %1386 = vmatpush1.bf16.msra.mxu0 0
    %1387 = vmatprep.subr.bf16.mxu0 0
    %1388 = vmatpush1.bf16.msra.mxu0 0
    %1389 = vmatprep.subr.bf16.mxu0 0
    %1390 = vmatpush1.bf16.msra.mxu0 0
    %1391 = vmatprep.subr.bf16.mxu0 0
    %1392 = vmatpush1.bf16.msra.mxu0 0
    %1393 = vmatprep.subr.bf16.mxu0 0
    %1394 = vmatpush1.bf16.msra.mxu0 0
    %1395 = vmatprep.mubr.bf16.mxu0 0
    %1396 = vmatmul.mubr.bf16.gmra.mrb[0].mxu0 %v1308
    %v1397 = vpop.f32.mrb[0].mxu0
    %v1398 = vadd.f32 %v1313, %v1397
    %v1399 = vpop.f32.mrb[0].mxu0
    %v1400 = vpop.f32.mrb[0].mxu0
    %v1401 = vpop.f32.mrb[0].mxu0
    %1402 = vdwg.mxu0
    %v1403 = vmax.f32 %v1398, 0.0
    %v1404 = vld [vmem:[%s15] sm:$0xf]
    %v1405 = vld [vmem:[%s15 + $0x4] sm:$0xf]
    %v1406 = vld [vmem:[%s15 + $0x8] sm:$0xf]
    %v1407 = vld [vmem:[%s15 + $0xc] sm:$0xf]
    %v1408 = vld [vmem:[%s15 + $0x10] sm:$0xf]
    %v1409 = vld [vmem:[%s15 + $0x14] sm:$0xf]
    %v1410 = vld [vmem:[%s15 + $0x18] sm:$0xf]
    %v1411 = vld [vmem:[%s15 + $0x1c] sm:$0xf]
    %v1412 = vld [vmem:[%s15 + $0x20] sm:$0xf]
    %v1413 = vld [vmem:[%s15 + $0x24] sm:$0xf]
    %v1414 = vld [vmem:[%s15 + $0x28] sm:$0xf]
    %v1415 = vld [vmem:[%s15 + $0x2c] sm:$0xf]
    %v1416 = vld [vmem:[%s15 + $0x30] sm:$0xf]
    %v1417 = vld [vmem:[%s15 + $0x34] sm:$0xf]
    %v1418 = vld [vmem:[%s15 + $0x38] sm:$0xf]
    %v1419 = vld [vmem:[%s15 + $0x3c] sm:$0xf]
    %v1420 = vld [vmem:[%s16] sm:$0x1]
    %v1421 = vpack.c.bf16 %v1403, %v1403
    %v1423 = vlaneseq
    %v1424 = vshrl.u32 %v1423, 7
    %v1425 = vsub.s32 0, %v1424
    %v1426 = vrot.slane %v1420, %v1425
    %v1444 = vunpack.c.l.b16 %v1404
    %v1445 = vunpack.c.l.b16 %v1405
    %v1446 = vunpack.c.l.b16 %v1406
    %v1447 = vunpack.c.l.b16 %v1407
    %v1448 = vunpack.c.l.b16 %v1408
    %v1449 = vunpack.c.l.b16 %v1409
    %v1450 = vunpack.c.l.b16 %v1410
    %v1451 = vunpack.c.l.b16 %v1411
    %v1452 = vunpack.c.l.b16 %v1412
    %v1453 = vunpack.c.l.b16 %v1413
    %v1454 = vunpack.c.l.b16 %v1414
    %v1455 = vunpack.c.l.b16 %v1415
    %v1456 = vunpack.c.l.b16 %v1416
    %v1457 = vunpack.c.l.b16 %v1417
    %v1458 = vunpack.c.l.b16 %v1418
    %v1459 = vunpack.c.l.b16 %v1419
    %v1460 = vpack.c.b16 %v1445, %v1444
    %v1461 = vpack.c.b16 %v1447, %v1446
    %v1462 = vpack.c.b16 %v1449, %v1448
    %v1463 = vpack.c.b16 %v1451, %v1450
    %v1464 = vpack.c.b16 %v1453, %v1452
    %v1465 = vpack.c.b16 %v1455, %v1454
    %v1466 = vpack.c.b16 %v1457, %v1456
    %v1467 = vpack.c.b16 %v1459, %v1458
    %1476 = vmatprep.subr.bf16.mxu0 0
    %1477 = vmatpush1.bf16.msra.mxu0 %v1460
    %1478 = vmatprep.subr.bf16.mxu0 0
    %1479 = vmatpush1.bf16.msra.mxu0 %v1461
    %1480 = vmatprep.subr.bf16.mxu0 0
    %1481 = vmatpush1.bf16.msra.mxu0 %v1462
    %1482 = vmatprep.subr.bf16.mxu0 0
    %1483 = vmatpush1.bf16.msra.mxu0 %v1463
    %1484 = vmatprep.subr.bf16.mxu0 0
    %1485 = vmatpush1.bf16.msra.mxu0 %v1464
    %1486 = vmatprep.subr.bf16.mxu0 0
    %1487 = vmatpush1.bf16.msra.mxu0 %v1465
    %1488 = vmatprep.subr.bf16.mxu0 0
    %1489 = vmatpush1.bf16.msra.mxu0 %v1466
    %1490 = vmatprep.subr.bf16.mxu0 0
    %1491 = vmatpush1.bf16.msra.mxu0 %v1467
    %1492 = vmatprep.subr.bf16.mxu0 0
    %1493 = vmatpush1.bf16.msra.mxu0 0
    %1494 = vmatprep.subr.bf16.mxu0 0
    %1495 = vmatpush1.bf16.msra.mxu0 0
    %1496 = vmatprep.subr.bf16.mxu0 0
    %1497 = vmatpush1.bf16.msra.mxu0 0
    %1498 = vmatprep.subr.bf16.mxu0 0
    %1499 = vmatpush1.bf16.msra.mxu0 0
    %1500 = vmatprep.subr.bf16.mxu0 0
    %1501 = vmatpush1.bf16.msra.mxu0 0
    %1502 = vmatprep.subr.bf16.mxu0 0
    %1503 = vmatpush1.bf16.msra.mxu0 0
    %1504 = vmatprep.subr.bf16.mxu0 0
    %1505 = vmatpush1.bf16.msra.mxu0 0
    %1506 = vmatprep.subr.bf16.mxu0 0
    %1507 = vmatpush1.bf16.msra.mxu0 0
    %1508 = vmatprep.mubr.bf16.mxu0 0
    %1509 = vmatmul.mubr.bf16.gmra.mrb[0].mxu0 %v1421
    %v1510 = vpop.f32.mrb[0].mxu0
    %v1511 = vadd.f32 %v1426, %v1510
    %v1512 = vpop.f32.mrb[0].mxu0
    %v1513 = vpop.f32.mrb[0].mxu0
    %v1514 = vpop.f32.mrb[0].mxu0
    %1515 = vdwg.mxu0
    %v1516 = vmax.f32 %v1511, 0.0
    %v1517 = vld [vmem:[#allocation7] sm:$0xf]
    %v1518 = vld [vmem:[#allocation7 + $0x4] sm:$0xf]
    %v1519 = vld [vmem:[#allocation7 + $0x8] sm:$0xf]
    %v1520 = vld [vmem:[#allocation7 + $0xc] sm:$0xf]
    %v1521 = vld [vmem:[#allocation7 + $0x10] sm:$0xf]
    %v1522 = vld [vmem:[#allocation7 + $0x14] sm:$0xf]
    %v1523 = vld [vmem:[#allocation7 + $0x18] sm:$0xf]
    %v1524 = vld [vmem:[#allocation7 + $0x1c] sm:$0xf]
    %v1525 = vld [vmem:[#allocation7 + $0x20] sm:$0xf]
    %v1526 = vld [vmem:[#allocation7 + $0x24] sm:$0xf]
    %v1527 = vld [vmem:[#allocation7 + $0x28] sm:$0xf]
    %v1528 = vld [vmem:[#allocation7 + $0x2c] sm:$0xf]
    %v1529 = vld [vmem:[#allocation7 + $0x30] sm:$0xf]
    %v1530 = vld [vmem:[#allocation7 + $0x34] sm:$0xf]
    %v1531 = vld [vmem:[#allocation7 + $0x38] sm:$0xf]
    %v1532 = vld [vmem:[#allocation7 + $0x3c] sm:$0xf]
    %v1533 = vld [vmem:[%s18] sm:$0x1]
    %v1534 = vpack.c.bf16 %v1516, %v1516
    %v1536 = vlaneseq
    %v1537 = vshrl.u32 %v1536, 7
    %v1538 = vsub.s32 0, %v1537
    %v1539 = vrot.slane %v1533, %v1538
    %v1557 = vunpack.c.l.b16 %v1517
    %v1558 = vunpack.c.l.b16 %v1518
    %v1559 = vunpack.c.l.b16 %v1519
    %v1560 = vunpack.c.l.b16 %v1520
    %v1561 = vunpack.c.l.b16 %v1521
    %v1562 = vunpack.c.l.b16 %v1522
    %v1563 = vunpack.c.l.b16 %v1523
    %v1564 = vunpack.c.l.b16 %v1524
    %v1565 = vunpack.c.l.b16 %v1525
    %v1566 = vunpack.c.l.b16 %v1526
    %v1567 = vunpack.c.l.b16 %v1527
    %v1568 = vunpack.c.l.b16 %v1528
    %v1569 = vunpack.c.l.b16 %v1529
    %v1570 = vunpack.c.l.b16 %v1530
    %v1571 = vunpack.c.l.b16 %v1531
    %v1572 = vunpack.c.l.b16 %v1532
    %v1573 = vpack.c.b16 %v1558, %v1557
    %v1574 = vpack.c.b16 %v1560, %v1559
    %v1575 = vpack.c.b16 %v1562, %v1561
    %v1576 = vpack.c.b16 %v1564, %v1563
    %v1577 = vpack.c.b16 %v1566, %v1565
    %v1578 = vpack.c.b16 %v1568, %v1567
    %v1579 = vpack.c.b16 %v1570, %v1569
    %v1580 = vpack.c.b16 %v1572, %v1571
    %1589 = vmatprep.subr.bf16.mxu0 0
    %1590 = vmatpush1.bf16.msra.mxu0 %v1573
    %1591 = vmatprep.subr.bf16.mxu0 0
    %1592 = vmatpush1.bf16.msra.mxu0 %v1574
    %1593 = vmatprep.subr.bf16.mxu0 0
    %1594 = vmatpush1.bf16.msra.mxu0 %v1575
    %1595 = vmatprep.subr.bf16.mxu0 0
    %1596 = vmatpush1.bf16.msra.mxu0 %v1576
    %1597 = vmatprep.subr.bf16.mxu0 0
    %1598 = vmatpush1.bf16.msra.mxu0 %v1577
    %1599 = vmatprep.subr.bf16.mxu0 0
    %1600 = vmatpush1.bf16.msra.mxu0 %v1578
    %1601 = vmatprep.subr.bf16.mxu0 0
    %1602 = vmatpush1.bf16.msra.mxu0 %v1579
    %1603 = vmatprep.subr.bf16.mxu0 0
    %1604 = vmatpush1.bf16.msra.mxu0 %v1580
    %1605 = vmatprep.subr.bf16.mxu0 0
    %1606 = vmatpush1.bf16.msra.mxu0 0
    %1607 = vmatprep.subr.bf16.mxu0 0
    %1608 = vmatpush1.bf16.msra.mxu0 0
    %1609 = vmatprep.subr.bf16.mxu0 0
    %1610 = vmatpush1.bf16.msra.mxu0 0
    %1611 = vmatprep.subr.bf16.mxu0 0
    %1612 = vmatpush1.bf16.msra.mxu0 0
    %1613 = vmatprep.subr.bf16.mxu0 0
    %1614 = vmatpush1.bf16.msra.mxu0 0
    %1615 = vmatprep.subr.bf16.mxu0 0
    %1616 = vmatpush1.bf16.msra.mxu0 0
    %1617 = vmatprep.subr.bf16.mxu0 0
    %1618 = vmatpush1.bf16.msra.mxu0 0
    %1619 = vmatprep.subr.bf16.mxu0 0
    %1620 = vmatpush1.bf16.msra.mxu0 0
    %1621 = vmatprep.mubr.bf16.mxu0 0
    %1622 = vmatmul.mubr.bf16.gmra.mrb[0].mxu0 %v1534
    %v1623 = vpop.f32.mrb[0].mxu0
    %v1624 = vadd.f32 %v1539, %v1623
    %v1625 = vpop.f32.mrb[0].mxu0
    %v1626 = vpop.f32.mrb[0].mxu0
    %v1627 = vpop.f32.mrb[0].mxu0
    %1628 = vdwg.mxu0
    %v1629 = vmax.f32 %v1624, 0.0
    %v1630 = vld [vmem:[%s19] sm:$0xff]
    %v1631 = vld [vmem:[%s19 + $0x8] sm:$0xff]
    %v1632 = vld [vmem:[%s19 + $0x10] sm:$0xff]
    %v1633 = vld [vmem:[%s19 + $0x18] sm:$0xf]
    %v1634 = vld [vmem:[%s19 + $0x1c] sm:$0xff]
    %v1635 = vld [vmem:[%s19 + $0x24] sm:$0xff]
    %v1636 = vld [vmem:[%s19 + $0x2c] sm:$0xff]
    %v1637 = vld [vmem:[%s19 + $0x34] sm:$0xf]
    %v1638 = vld [vmem:[%s19 + $0x38] sm:$0xff]
    %v1639 = vld [vmem:[%s19 + $0x40] sm:$0xff]
    %v1640 = vld [vmem:[%s19 + $0x48] sm:$0xff]
    %v1641 = vld [vmem:[%s19 + $0x50] sm:$0xf]
    %v1642 = vld [vmem:[%s19 + $0x54] sm:$0xff]
    %v1643 = vld [vmem:[%s19 + $0x5c] sm:$0xff]
    %v1644 = vld [vmem:[%s19 + $0x64] sm:$0xff]
    %v1645 = vld [vmem:[%s19 + $0x6c] sm:$0xf]
    %v1646 = vld [vmem:[%s19 + $0x70] sm:$0xff]
    %v1647 = vld [vmem:[%s19 + $0x78] sm:$0xff]
    %v1648 = vld [vmem:[%s19 + $0x80] sm:$0xff]
    %v1649 = vld [vmem:[%s19 + $0x88] sm:$0xf]
    %v1650 = vld [vmem:[%s19 + $0x8c] sm:$0xff]
    %v1651 = vld [vmem:[%s19 + $0x94] sm:$0xff]
    %v1652 = vld [vmem:[%s19 + $0x9c] sm:$0xff]
    %v1653 = vld [vmem:[%s19 + $0xa4] sm:$0xf]
    %v1654 = vld [vmem:[%s19 + $0xa8] sm:$0xff]
    %v1655 = vld [vmem:[%s19 + $0xb0] sm:$0xff]
    %v1656 = vld [vmem:[%s19 + $0xb8] sm:$0xff]
    %v1657 = vld [vmem:[%s19 + $0xc0] sm:$0xf]
    %v1658 = vld [vmem:[%s19 + $0xc4] sm:$0xff]
    %v1659 = vld [vmem:[%s19 + $0xcc] sm:$0xff]
    %v1660 = vld [vmem:[%s19 + $0xd4] sm:$0xff]
    %v1661 = vld [vmem:[%s19 + $0xdc] sm:$0xf]
    %v1662 = vld [vmem:[%s19 + $0xe0] sm:$0xff]
    %v1663 = vld [vmem:[%s19 + $0xe8] sm:$0xff]
    %v1664 = vld [vmem:[%s19 + $0xf0] sm:$0xff]
    %v1665 = vld [vmem:[%s19 + $0xf8] sm:$0xf]
    %v1666 = vld [vmem:[%s19 + $0xfc] sm:$0xff]
    %v1667 = vld [vmem:[%s19 + $0x104] sm:$0xff]
    %v1668 = vld [vmem:[%s19 + $0x10c] sm:$0xff]
    %v1669 = vld [vmem:[%s19 + $0x114] sm:$0xf]
    %v1670 = vld [vmem:[%s19 + $0x118] sm:$0xff]
    %v1671 = vld [vmem:[%s19 + $0x120] sm:$0xff]
    %v1672 = vld [vmem:[%s19 + $0x128] sm:$0xff]
    %v1673 = vld [vmem:[%s19 + $0x130] sm:$0xf]
    %v1674 = vld [vmem:[%s19 + $0x134] sm:$0xff]
    %v1675 = vld [vmem:[%s19 + $0x13c] sm:$0xff]
    %v1676 = vld [vmem:[%s19 + $0x144] sm:$0xff]
    %v1677 = vld [vmem:[%s19 + $0x14c] sm:$0xf]
    %v1678 = vld [vmem:[%s19 + $0x150] sm:$0xff]
    %v1679 = vld [vmem:[%s19 + $0x158] sm:$0xff]
    %v1680 = vld [vmem:[%s19 + $0x160] sm:$0xff]
    %v1681 = vld [vmem:[%s19 + $0x168] sm:$0xf]
    %v1682 = vld [vmem:[%s19 + $0x16c] sm:$0xff]
    %v1683 = vld [vmem:[%s19 + $0x174] sm:$0xff]
    %v1684 = vld [vmem:[%s19 + $0x17c] sm:$0xff]
    %v1685 = vld [vmem:[%s19 + $0x184] sm:$0xf]
    %v1686 = vld [vmem:[%s19 + $0x188] sm:$0xff]
    %v1687 = vld [vmem:[%s19 + $0x190] sm:$0xff]
    %v1688 = vld [vmem:[%s19 + $0x198] sm:$0xff]
    %v1689 = vld [vmem:[%s19 + $0x1a0] sm:$0xf]
    %v1690 = vld [vmem:[%s19 + $0x1a4] sm:$0xff]
    %v1691 = vld [vmem:[%s19 + $0x1ac] sm:$0xff]
    %v1692 = vld [vmem:[%s19 + $0x1b4] sm:$0xff]
    %v1693 = vld [vmem:[%s19 + $0x1bc] sm:$0xf]
    %v1694 = vld [vmem:[%s20] sm:$0x7f]
    %v1695 = vpack.c.bf16 %v1629, %v1629
    %v1697 = vlaneseq
    %v1698 = vshrl.u32 %v1697, 7
    %v1699 = vsub.s32 0, %v1698
    %v1700 = vrot.slane %v1694, %v1699
    %v1701 = vlaneseq
    %v1702 = vshrl.u32 %v1701, 7
    %v1703 = vsub.s32 1, %v1702
    %v1704 = vrot.slane %v1694, %v1703
    %v1705 = vlaneseq
    %v1706 = vshrl.u32 %v1705, 7
    %v1707 = vsub.s32 2, %v1706
    %v1708 = vrot.slane %v1694, %v1707
    %v1709 = vlaneseq
    %v1710 = vshrl.u32 %v1709, 7
    %v1711 = vsub.s32 3, %v1710
    %v1712 = vrot.slane %v1694, %v1711
    %v1713 = vlaneseq
    %v1714 = vshrl.u32 %v1713, 7
    %v1715 = vsub.s32 4, %v1714
    %v1716 = vrot.slane %v1694, %v1715
    %v1717 = vlaneseq
    %v1718 = vshrl.u32 %v1717, 7
    %v1719 = vsub.s32 5, %v1718
    %v1720 = vrot.slane %v1694, %v1719
    %v1721 = vlaneseq
    %v1722 = vshrl.u32 %v1721, 7
    %v1723 = vsub.s32 6, %v1722
    %v1724 = vrot.slane %v1694, %v1723
    %v1796 = vunpack.c.l.b16 %v1630
    %v1797 = vunpack.c.h.b16 %v1630
    %v1798 = vunpack.c.l.b16 %v1631
    %v1799 = vunpack.c.h.b16 %v1631
    %v1800 = vunpack.c.l.b16 %v1632
    %v1801 = vunpack.c.h.b16 %v1632
    %v1802 = vunpack.c.l.b16 %v1633
    %v1803 = vunpack.c.l.b16 %v1634
    %v1804 = vunpack.c.h.b16 %v1634
    %v1805 = vunpack.c.l.b16 %v1635
    %v1806 = vunpack.c.h.b16 %v1635
    %v1807 = vunpack.c.l.b16 %v1636
    %v1808 = vunpack.c.h.b16 %v1636
    %v1809 = vunpack.c.l.b16 %v1637
    %v1810 = vunpack.c.l.b16 %v1638
    %v1811 = vunpack.c.h.b16 %v1638
    %v1812 = vunpack.c.l.b16 %v1639
    %v1813 = vunpack.c.h.b16 %v1639
    %v1814 = vunpack.c.l.b16 %v1640
    %v1815 = vunpack.c.h.b16 %v1640
    %v1816 = vunpack.c.l.b16 %v1641
    %v1817 = vunpack.c.l.b16 %v1642
    %v1818 = vunpack.c.h.b16 %v1642
    %v1819 = vunpack.c.l.b16 %v1643
    %v1820 = vunpack.c.h.b16 %v1643
    %v1821 = vunpack.c.l.b16 %v1644
    %v1822 = vunpack.c.h.b16 %v1644
    %v1823 = vunpack.c.l.b16 %v1645
    %v1824 = vunpack.c.l.b16 %v1646
    %v1825 = vunpack.c.h.b16 %v1646
    %v1826 = vunpack.c.l.b16 %v1647
    %v1827 = vunpack.c.h.b16 %v1647
    %v1828 = vunpack.c.l.b16 %v1648
    %v1829 = vunpack.c.h.b16 %v1648
    %v1830 = vunpack.c.l.b16 %v1649
    %v1831 = vunpack.c.l.b16 %v1650
    %v1832 = vunpack.c.h.b16 %v1650
    %v1833 = vunpack.c.l.b16 %v1651
    %v1834 = vunpack.c.h.b16 %v1651
    %v1835 = vunpack.c.l.b16 %v1652
    %v1836 = vunpack.c.h.b16 %v1652
    %v1837 = vunpack.c.l.b16 %v1653
    %v1838 = vunpack.c.l.b16 %v1654
    %v1839 = vunpack.c.h.b16 %v1654
    %v1840 = vunpack.c.l.b16 %v1655
    %v1841 = vunpack.c.h.b16 %v1655
    %v1842 = vunpack.c.l.b16 %v1656
    %v1843 = vunpack.c.h.b16 %v1656
    %v1844 = vunpack.c.l.b16 %v1657
    %v1845 = vunpack.c.l.b16 %v1658
    %v1846 = vunpack.c.h.b16 %v1658
    %v1847 = vunpack.c.l.b16 %v1659
    %v1848 = vunpack.c.h.b16 %v1659
    %v1849 = vunpack.c.l.b16 %v1660
    %v1850 = vunpack.c.h.b16 %v1660
    %v1851 = vunpack.c.l.b16 %v1661
    %v1852 = vunpack.c.l.b16 %v1662
    %v1853 = vunpack.c.h.b16 %v1662
    %v1854 = vunpack.c.l.b16 %v1663
    %v1855 = vunpack.c.h.b16 %v1663
    %v1856 = vunpack.c.l.b16 %v1664
    %v1857 = vunpack.c.h.b16 %v1664
    %v1858 = vunpack.c.l.b16 %v1665
    %v1859 = vunpack.c.l.b16 %v1666
    %v1860 = vunpack.c.h.b16 %v1666
    %v1861 = vunpack.c.l.b16 %v1667
    %v1862 = vunpack.c.h.b16 %v1667
    %v1863 = vunpack.c.l.b16 %v1668
    %v1864 = vunpack.c.h.b16 %v1668
    %v1865 = vunpack.c.l.b16 %v1669
    %v1866 = vunpack.c.l.b16 %v1670
    %v1867 = vunpack.c.h.b16 %v1670
    %v1868 = vunpack.c.l.b16 %v1671
    %v1869 = vunpack.c.h.b16 %v1671
    %v1870 = vunpack.c.l.b16 %v1672
    %v1871 = vunpack.c.h.b16 %v1672
    %v1872 = vunpack.c.l.b16 %v1673
    %v1873 = vunpack.c.l.b16 %v1674
    %v1874 = vunpack.c.h.b16 %v1674
    %v1875 = vunpack.c.l.b16 %v1675
    %v1876 = vunpack.c.h.b16 %v1675
    %v1877 = vunpack.c.l.b16 %v1676
    %v1878 = vunpack.c.h.b16 %v1676
    %v1879 = vunpack.c.l.b16 %v1677
    %v1880 = vunpack.c.l.b16 %v1678
    %v1881 = vunpack.c.h.b16 %v1678
    %v1882 = vunpack.c.l.b16 %v1679
    %v1883 = vunpack.c.h.b16 %v1679
    %v1884 = vunpack.c.l.b16 %v1680
    %v1885 = vunpack.c.h.b16 %v1680
    %v1886 = vunpack.c.l.b16 %v1681
    %v1887 = vunpack.c.l.b16 %v1682
    %v1888 = vunpack.c.h.b16 %v1682
    %v1889 = vunpack.c.l.b16 %v1683
    %v1890 = vunpack.c.h.b16 %v1683
    %v1891 = vunpack.c.l.b16 %v1684
    %v1892 = vunpack.c.h.b16 %v1684
    %v1893 = vunpack.c.l.b16 %v1685
    %v1894 = vunpack.c.l.b16 %v1686
    %v1895 = vunpack.c.h.b16 %v1686
    %v1896 = vunpack.c.l.b16 %v1687
    %v1897 = vunpack.c.h.b16 %v1687
    %v1898 = vunpack.c.l.b16 %v1688
    %v1899 = vunpack.c.h.b16 %v1688
    %v1900 = vunpack.c.l.b16 %v1689
    %v1901 = vunpack.c.l.b16 %v1690
    %v1902 = vunpack.c.h.b16 %v1690
    %v1903 = vunpack.c.l.b16 %v1691
    %v1904 = vunpack.c.h.b16 %v1691
    %v1905 = vunpack.c.l.b16 %v1692
    %v1906 = vunpack.c.h.b16 %v1692
    %v1907 = vunpack.c.l.b16 %v1693
    %v1908 = vpack.c.b16 %v1803, %v1796
    %v1909 = vpack.c.b16 %v1804, %v1797
    %v1910 = vpack.c.b16 %v1805, %v1798
    %v1911 = vpack.c.b16 %v1806, %v1799
    %v1912 = vpack.c.b16 %v1807, %v1800
    %v1913 = vpack.c.b16 %v1808, %v1801
    %v1914 = vpack.c.b16 %v1809, %v1802
    %v1915 = vpack.c.b16 %v1817, %v1810
    %v1916 = vpack.c.b16 %v1818, %v1811
    %v1917 = vpack.c.b16 %v1819, %v1812
    %v1918 = vpack.c.b16 %v1820, %v1813
    %v1919 = vpack.c.b16 %v1821, %v1814
    %v1920 = vpack.c.b16 %v1822, %v1815
    %v1921 = vpack.c.b16 %v1823, %v1816
    %v1922 = vpack.c.b16 %v1831, %v1824
    %v1923 = vpack.c.b16 %v1832, %v1825
    %v1924 = vpack.c.b16 %v1833, %v1826
    %v1925 = vpack.c.b16 %v1834, %v1827
    %v1926 = vpack.c.b16 %v1835, %v1828
    %v1927 = vpack.c.b16 %v1836, %v1829
    %v1928 = vpack.c.b16 %v1837, %v1830
    %v1929 = vpack.c.b16 %v1845, %v1838
    %v1930 = vpack.c.b16 %v1846, %v1839
    %v1931 = vpack.c.b16 %v1847, %v1840
    %v1932 = vpack.c.b16 %v1848, %v1841
    %v1933 = vpack.c.b16 %v1849, %v1842
    %v1934 = vpack.c.b16 %v1850, %v1843
    %v1935 = vpack.c.b16 %v1851, %v1844
    %v1936 = vpack.c.b16 %v1859, %v1852
    %v1937 = vpack.c.b16 %v1860, %v1853
    %v1938 = vpack.c.b16 %v1861, %v1854
    %v1939 = vpack.c.b16 %v1862, %v1855
    %v1940 = vpack.c.b16 %v1863, %v1856
    %v1941 = vpack.c.b16 %v1864, %v1857
    %v1942 = vpack.c.b16 %v1865, %v1858
    %v1943 = vpack.c.b16 %v1873, %v1866
    %v1944 = vpack.c.b16 %v1874, %v1867
    %v1945 = vpack.c.b16 %v1875, %v1868
    %v1946 = vpack.c.b16 %v1876, %v1869
    %v1947 = vpack.c.b16 %v1877, %v1870
    %v1948 = vpack.c.b16 %v1878, %v1871
    %v1949 = vpack.c.b16 %v1879, %v1872
    %v1950 = vpack.c.b16 %v1887, %v1880
    %v1951 = vpack.c.b16 %v1888, %v1881
    %v1952 = vpack.c.b16 %v1889, %v1882
    %v1953 = vpack.c.b16 %v1890, %v1883
    %v1954 = vpack.c.b16 %v1891, %v1884
    %v1955 = vpack.c.b16 %v1892, %v1885
    %v1956 = vpack.c.b16 %v1893, %v1886
    %v1957 = vpack.c.b16 %v1901, %v1894
    %v1958 = vpack.c.b16 %v1902, %v1895
    %v1959 = vpack.c.b16 %v1903, %v1896
    %v1960 = vpack.c.b16 %v1904, %v1897
    %v1961 = vpack.c.b16 %v1905, %v1898
    %v1962 = vpack.c.b16 %v1906, %v1899
    %v1963 = vpack.c.b16 %v1907, %v1900
    %2020 = vmatprep.subr.bf16.mxu0 %v1909
    %2021 = vmatpush1.bf16.msra.mxu0 %v1908
    %2022 = vmatprep.subr.bf16.mxu0 %v1916
    %2023 = vmatpush1.bf16.msra.mxu0 %v1915
    %2024 = vmatprep.subr.bf16.mxu0 %v1923
    %2025 = vmatpush1.bf16.msra.mxu0 %v1922
    %2026 = vmatprep.subr.bf16.mxu0 %v1930
    %2027 = vmatpush1.bf16.msra.mxu0 %v1929
    %2028 = vmatprep.subr.bf16.mxu0 %v1937
    %2029 = vmatpush1.bf16.msra.mxu0 %v1936
    %2030 = vmatprep.subr.bf16.mxu0 %v1944
    %2031 = vmatpush1.bf16.msra.mxu0 %v1943
    %2032 = vmatprep.subr.bf16.mxu0 %v1951
    %2033 = vmatpush1.bf16.msra.mxu0 %v1950
    %2034 = vmatprep.subr.bf16.mxu0 %v1958
    %2035 = vmatpush1.bf16.msra.mxu0 %v1957
    %2036 = vmatprep.subr.bf16.mxu0 0
    %2037 = vmatpush1.bf16.msra.mxu0 0
    %2038 = vmatprep.subr.bf16.mxu0 0
    %2039 = vmatpush1.bf16.msra.mxu0 0
    %2040 = vmatprep.subr.bf16.mxu0 0
    %2041 = vmatpush1.bf16.msra.mxu0 0
    %2042 = vmatprep.subr.bf16.mxu0 0
    %2043 = vmatpush1.bf16.msra.mxu0 0
    %2044 = vmatprep.subr.bf16.mxu0 0
    %2045 = vmatpush1.bf16.msra.mxu0 0
    %2046 = vmatprep.subr.bf16.mxu0 0
    %2047 = vmatpush1.bf16.msra.mxu0 0
    %2048 = vmatprep.subr.bf16.mxu0 0
    %2049 = vmatpush1.bf16.msra.mxu0 0
    %2050 = vmatprep.subr.bf16.mxu0 0
    %2051 = vmatpush1.bf16.msra.mxu0 0
    %2052 = vmatprep.mubr.bf16.mxu0 0
    %2053 = vmatmul.mubr.bf16.gmra.mrb[0].mxu0 %v1695
    %v2054 = vpop.f32.mrb[0].mxu0
    %v2055 = vadd.f32 %v1700, %v2054
    %v2056 = vpop.f32.mrb[0].mxu0
    %v2057 = vadd.f32 %v1704, %v2056
    %v2058 = vpop.f32.mrb[0].mxu0
    %v2059 = vpop.f32.mrb[0].mxu0
    %2060 = vdwg.mxu0
    %2061 = vmatprep.subr.bf16.mxu0 %v1911
    %2062 = vmatpush1.bf16.msra.mxu0 %v1910
    %2063 = vmatprep.subr.bf16.mxu0 %v1918
    %2064 = vmatpush1.bf16.msra.mxu0 %v1917
    %2065 = vmatprep.subr.bf16.mxu0 %v1925
    %2066 = vmatpush1.bf16.msra.mxu0 %v1924
    %2067 = vmatprep.subr.bf16.mxu0 %v1932
    %2068 = vmatpush1.bf16.msra.mxu0 %v1931
    %2069 = vmatprep.subr.bf16.mxu0 %v1939
    %2070 = vmatpush1.bf16.msra.mxu0 %v1938
    %2071 = vmatprep.subr.bf16.mxu0 %v1946
    %2072 = vmatpush1.bf16.msra.mxu0 %v1945
    %2073 = vmatprep.subr.bf16.mxu0 %v1953
    %2074 = vmatpush1.bf16.msra.mxu0 %v1952
    %2075 = vmatprep.subr.bf16.mxu0 %v1960
    %2076 = vmatpush1.bf16.msra.mxu0 %v1959
    %2077 = vmatprep.subr.bf16.mxu0 0
    %2078 = vmatpush1.bf16.msra.mxu0 0
    %2079 = vmatprep.subr.bf16.mxu0 0
    %2080 = vmatpush1.bf16.msra.mxu0 0
    %2081 = vmatprep.subr.bf16.mxu0 0
    %2082 = vmatpush1.bf16.msra.mxu0 0
    %2083 = vmatprep.subr.bf16.mxu0 0
    %2084 = vmatpush1.bf16.msra.mxu0 0
    %2085 = vmatprep.subr.bf16.mxu0 0
    %2086 = vmatpush1.bf16.msra.mxu0 0
    %2087 = vmatprep.subr.bf16.mxu0 0
    %2088 = vmatpush1.bf16.msra.mxu0 0
    %2089 = vmatprep.subr.bf16.mxu0 0
    %2090 = vmatpush1.bf16.msra.mxu0 0
    %2091 = vmatprep.subr.bf16.mxu0 0
    %2092 = vmatpush1.bf16.msra.mxu0 0
    %2093 = vmatprep.mubr.bf16.mxu0 0
    %2094 = vmatmul.mubr.bf16.gmra.mrb[0].mxu0 %v1695
    %v2095 = vpop.f32.mrb[0].mxu0
    %v2096 = vadd.f32 %v1708, %v2095
    %v2097 = vpop.f32.mrb[0].mxu0
    %v2098 = vadd.f32 %v1712, %v2097
    %v2099 = vpop.f32.mrb[0].mxu0
    %v2100 = vpop.f32.mrb[0].mxu0
    %2101 = vdwg.mxu0
    %2102 = vmatprep.subr.bf16.mxu0 %v1913
    %2103 = vmatpush1.bf16.msra.mxu0 %v1912
    %2104 = vmatprep.subr.bf16.mxu0 %v1920
    %2105 = vmatpush1.bf16.msra.mxu0 %v1919
    %2106 = vmatprep.subr.bf16.mxu0 %v1927
    %2107 = vmatpush1.bf16.msra.mxu0 %v1926
    %2108 = vmatprep.subr.bf16.mxu0 %v1934
    %2109 = vmatpush1.bf16.msra.mxu0 %v1933
    %2110 = vmatprep.subr.bf16.mxu0 %v1941
    %2111 = vmatpush1.bf16.msra.mxu0 %v1940
    %2112 = vmatprep.subr.bf16.mxu0 %v1948
    %2113 = vmatpush1.bf16.msra.mxu0 %v1947
    %2114 = vmatprep.subr.bf16.mxu0 %v1955
    %2115 = vmatpush1.bf16.msra.mxu0 %v1954
    %2116 = vmatprep.subr.bf16.mxu0 %v1962
    %2117 = vmatpush1.bf16.msra.mxu0 %v1961
    %2118 = vmatprep.subr.bf16.mxu0 0
    %2119 = vmatpush1.bf16.msra.mxu0 0
    %2120 = vmatprep.subr.bf16.mxu0 0
    %2121 = vmatpush1.bf16.msra.mxu0 0
    %2122 = vmatprep.subr.bf16.mxu0 0
    %2123 = vmatpush1.bf16.msra.mxu0 0
    %2124 = vmatprep.subr.bf16.mxu0 0
    %2125 = vmatpush1.bf16.msra.mxu0 0
    %2126 = vmatprep.subr.bf16.mxu0 0
    %2127 = vmatpush1.bf16.msra.mxu0 0
    %2128 = vmatprep.subr.bf16.mxu0 0
    %2129 = vmatpush1.bf16.msra.mxu0 0
    %2130 = vmatprep.subr.bf16.mxu0 0
    %2131 = vmatpush1.bf16.msra.mxu0 0
    %2132 = vmatprep.subr.bf16.mxu0 0
    %2133 = vmatpush1.bf16.msra.mxu0 0
    %2134 = vmatprep.mubr.bf16.mxu0 0
    %2135 = vmatmul.mubr.bf16.gmra.mrb[0].mxu0 %v1695
    %v2136 = vpop.f32.mrb[0].mxu0
    %v2137 = vadd.f32 %v1716, %v2136
    %v2138 = vpop.f32.mrb[0].mxu0
    %v2139 = vadd.f32 %v1720, %v2138
    %v2140 = vpop.f32.mrb[0].mxu0
    %v2141 = vpop.f32.mrb[0].mxu0
    %2142 = vdwg.mxu0
    %2143 = vmatprep.subr.bf16.mxu0 0
    %2144 = vmatpush1.bf16.msra.mxu0 %v1914
    %2145 = vmatprep.subr.bf16.mxu0 0
    %2146 = vmatpush1.bf16.msra.mxu0 %v1921
    %2147 = vmatprep.subr.bf16.mxu0 0
    %2148 = vmatpush1.bf16.msra.mxu0 %v1928
    %2149 = vmatprep.subr.bf16.mxu0 0
    %2150 = vmatpush1.bf16.msra.mxu0 %v1935
    %2151 = vmatprep.subr.bf16.mxu0 0
    %2152 = vmatpush1.bf16.msra.mxu0 %v1942
    %2153 = vmatprep.subr.bf16.mxu0 0
    %2154 = vmatpush1.bf16.msra.mxu0 %v1949
    %2155 = vmatprep.subr.bf16.mxu0 0
    %2156 = vmatpush1.bf16.msra.mxu0 %v1956
    %2157 = vmatprep.subr.bf16.mxu0 0
    %2158 = vmatpush1.bf16.msra.mxu0 %v1963
    %2159 = vmatprep.subr.bf16.mxu0 0
    %2160 = vmatpush1.bf16.msra.mxu0 0
    %2161 = vmatprep.subr.bf16.mxu0 0
    %2162 = vmatpush1.bf16.msra.mxu0 0
    %2163 = vmatprep.subr.bf16.mxu0 0
    %2164 = vmatpush1.bf16.msra.mxu0 0
    %2165 = vmatprep.subr.bf16.mxu0 0
    %2166 = vmatpush1.bf16.msra.mxu0 0
    %2167 = vmatprep.subr.bf16.mxu0 0
    %2168 = vmatpush1.bf16.msra.mxu0 0
    %2169 = vmatprep.subr.bf16.mxu0 0
    %2170 = vmatpush1.bf16.msra.mxu0 0
    %2171 = vmatprep.subr.bf16.mxu0 0
    %2172 = vmatpush1.bf16.msra.mxu0 0
    %2173 = vmatprep.subr.bf16.mxu0 0
    %2174 = vmatpush1.bf16.msra.mxu0 0
    %2175 = vmatprep.mubr.bf16.mxu0 0
    %2176 = vmatmul.mubr.bf16.gmra.mrb[0].mxu0 %v1695
    %v2177 = vpop.f32.mrb[0].mxu0
    %v2178 = vadd.f32 %v1724, %v2177
    %v2179 = vpop.f32.mrb[0].mxu0
    %v2180 = vpop.f32.mrb[0].mxu0
    %v2181 = vpop.f32.mrb[0].mxu0
    %2182 = vdwg.mxu0
    %v2183 = vxor.u32 %v2055, 2147483648
    %v2184 = vxor.u32 %v2057, 2147483648
    %v2185 = vxor.u32 %v2096, 2147483648
    %v2186 = vxor.u32 %v2098, 2147483648
    %v2187 = vxor.u32 %v2137, 2147483648
    %v2188 = vxor.u32 %v2139, 2147483648
    %v2189 = vxor.u32 %v2178, 2147483648
    %v2190 = vmul.f32 %v2183, 1.442695
    %v2191 = vpow.pop %v2190
    %v2192 = vmul.f32 %v2184, 1.442695
    %v2193 = vpow.pop %v2192
    %v2194 = vmul.f32 %v2185, 1.442695
    %v2195 = vpow.pop %v2194
    %v2196 = vmul.f32 %v2186, 1.442695
    %v2197 = vpow.pop %v2196
    %v2198 = vmul.f32 %v2187, 1.442695
    %v2199 = vpow.pop %v2198
    %v2200 = vmul.f32 %v2188, 1.442695
    %v2201 = vpow.pop %v2200
    %v2202 = vmul.f32 %v2189, 1.442695
    %v2203 = vpow.pop %v2202
    %v2204 = vadd.f32 %v2191, 1.0
    %v2205 = vadd.f32 %v2193, 1.0
    %v2206 = vadd.f32 %v2195, 1.0
    %v2207 = vadd.f32 %v2197, 1.0
    %v2208 = vadd.f32 %v2199, 1.0
    %v2209 = vadd.f32 %v2201, 1.0
    %v2210 = vadd.f32 %v2203, 1.0
    %v2211 = vrcp.pop %v2204
    %v2212 = vmul.f32 1.0, %v2211
    %v2213 = vrcp.pop %v2205
    %v2214 = vmul.f32 1.0, %v2213
    %v2215 = vrcp.pop %v2206
    %v2216 = vmul.f32 1.0, %v2215
    %v2217 = vrcp.pop %v2207
    %v2218 = vmul.f32 1.0, %v2217
    %v2219 = vrcp.pop %v2208
    %v2220 = vmul.f32 1.0, %v2219
    %v2221 = vrcp.pop %v2209
    %v2222 = vmul.f32 1.0, %v2221
    %v2223 = vrcp.pop %v2210
    %v2224 = vmul.f32 1.0, %v2223
    %v2225 = vpack.c.bf16 %v2212, %v2212
    %v2226 = vpack.c.bf16 %v2214, %v2214
    %v2227 = vpack.c.bf16 %v2216, %v2216
    %v2228 = vpack.c.bf16 %v2218, %v2218
    %v2229 = vpack.c.bf16 %v2220, %v2220
    %v2230 = vpack.c.bf16 %v2222, %v2222
    %v2231 = vpack.c.bf16 %v2224, %v2224
    %v2239 = vcombine.low %v2225, %v2226
    %v2240 = vcombine.low %v2227, %v2228
    %v2241 = vcombine.low %v2229, %v2230
    %v2243 = vunpack.c.l.s4 1966171168
    %v2244 = vunpack.c.0.s8 %v2243
    %v2245 = vlaneseq
    %v2246 = vshrl.u32 %v2245, 7
    %v2247 = vsub.s32 %v2244, %v2246
    %v2248 = vrot.slane %v2239, %v2247
    %v2250 = vunpack.c.l.s4 1966171168
    %v2251 = vunpack.c.0.s8 %v2250
    %v2252 = vlaneseq
    %v2253 = vshrl.u32 %v2252, 7
    %v2254 = vsub.s32 %v2251, %v2253
    %v2255 = vrot.slane %v2240, %v2254
    %v2257 = vunpack.c.l.s4 1966171168
    %v2258 = vunpack.c.0.s8 %v2257
    %v2259 = vlaneseq
    %v2260 = vshrl.u32 %v2259, 7
    %v2261 = vsub.s32 %v2258, %v2260
    %v2262 = vrot.slane %v2241, %v2261
    %v2264 = vunpack.c.l.s4 1966171168
    %v2265 = vunpack.c.0.s8 %v2264
    %v2266 = vlaneseq
    %v2267 = vshrl.u32 %v2266, 7
    %v2268 = vsub.s32 %v2265, %v2267
    %v2269 = vrot.slane %v2231, %v2268
    %v2270 = vcombine.low %v2248, %v2255
    %v2271 = vcombine.low %v2262, %v2269
    %v2273 = vunpack.c.l.s4 1966171168
    %v2274 = vunpack.c.0.s8 %v2273
    %v2275 = vlaneseq
    %v2276 = vshrl.u32 %v2275, 7
    %v2277 = vsub.s32 %v2274, %v2276
    %v2278 = vrot.slane %v2270, %v2277
    %v2280 = vunpack.c.l.s4 1966171168
    %v2281 = vunpack.c.0.s8 %v2280
    %v2282 = vlaneseq
    %v2283 = vshrl.u32 %v2282, 7
    %v2284 = vsub.s32 %v2281, %v2283
    %v2285 = vrot.slane %v2271, %v2284
    %v2286 = vcombine.low %v2278, %v2285
    %vm2288 = vcmask 1040384
    %vm2289 = vcmask 1041409
    %vm2290 = vmor %vm2289, %vm2288
    %vm2291 = vcmask 1042434
    %vm2292 = vmor %vm2291, %vm2290
    %vm2293 = vcmask 1043459
    %vm2294 = vmor %vm2293, %vm2292
    %vm2295 = vcmask 1044484
    %vm2296 = vmor %vm2295, %vm2294
    %vm2297 = vcmask 1045509
    %vm2298 = vmor %vm2297, %vm2296
    %vm2299 = vcmask 129030
    %vm2300 = vmor %vm2299, %vm2298
    %2301 = vst.msk [vmem:[#allocation8] sm:$0x7f] %vm2300, %v2286
    // Predicated region
    $region98: #{tpu_custom_call.1} parent=1 // pred_check
      _
    $region99: #{tpu_custom_call.1} parent=1 // pred_check_branch
      %2303 = sbr.rel (0) target = $region101
    $region100: #{tpu_custom_call.1} parent=1 // pred_region
      %s2305 = ssub.s32 112, 112
      %2306 = vsyncadd [#allocation4], %s2305
      %s2308 = sshll.u32 [#allocation8], 4
      %s2309 = int_to_ptr.vmem [resolvable:$true] %s2308
      %2311 = dma.vmem_to_hbm [thread:$0]  %s2309, 112, %s21, [#allocation4]
    $region101: #{tpu_custom_call.1} parent=1 // pred_fallthru
      _
    // Predicated region
    $region102: #{tpu_custom_call.1} parent=1 // pred_check
      _
    $region103: #{tpu_custom_call.1} parent=1 // pred_check_branch
      %2313 = sbr.rel (0) target = $region105
    $region104: #{tpu_custom_call.1} parent=1 // pred_region
      %2314 = dma.done [#allocation4], 112
    $region105: #{tpu_custom_call.1} parent=1 // pred_fallthru
      _
    %2315 = vsyncpa [#allocation3], 1
    %2316 = vsyncpa [#allocation6], 1
    %2317 = vsyncpa [#allocation4], 1

</llo_original>
